<compile_context>
chip_gen: v7x
topology: tpu7x:2x2x1
jax: 0.10.0
libtpu: 0.0.40
codegen_flags: <defaults>
</compile_context>

<pallas_src>
import jax
import jax.numpy as jnp
from jax.experimental import pallas as pl
from jax.experimental.pallas import tpu as pltpu

WS_EPS = 1e-5            # weight-standardization eps (float32 input path)
GN_EPS = 1e-5            # nn.GroupNorm default eps
LANE = 128               # lane width: channel padding target


# ------------------------------- kernels -----------------------------------

def _conv3x3_kernel(x_ref, w_ref, b_ref, y_ref, s_ref, acc_ref):
    # 3x3 "same" conv for one (batch, row-tile) grid point.
    #   x_ref  : (1, H+2, W+2, CinP)  bf16, halo-padded image (resident across tiles)
    #   w_ref  : (9, CinP, CoutP)     bf16, standardized weight, tap order (kh, kw)
    #   b_ref  : (1, CoutP)           f32 bias
    #   y_ref  : (1, TH, W, CoutP)    bf16 conv output tile
    #   s_ref  : (1, 1, 2, CoutP)     f32 per-tile [channel_sum, channel_sumsq]
    #   acc_ref: (TH*W, CoutP)        f32 VMEM accumulator scratch
    TH, W, CoutP = y_ref.shape[1], y_ref.shape[2], y_ref.shape[3]
    CinP = x_ref.shape[3]
    t = pl.program_id(1)
    row0 = pl.multiple_of(t * TH, TH)

    xv = x_ref.at[0]                                   # (H+2, W+2, CinP) view
    for kh in range(3):
        for kw in range(3):
            tap = xv[pl.ds(row0 + kh, TH), pl.ds(kw, W), :]      # (TH, W, CinP) bf16
            tap = tap.reshape(TH * W, CinP)
            contrib = jnp.dot(tap, w_ref[kh * 3 + kw],
                              preferred_element_type=jnp.float32)
            if kh == 0 and kw == 0:
                acc_ref[...] = contrib
            else:
                acc_ref[...] += contrib

    y = acc_ref[...] + b_ref[...]                      # (TH*W, CoutP) f32
    y_ref[0] = y.reshape(TH, W, CoutP).astype(y_ref.dtype)       # bf16 store
    s = jnp.concatenate([jnp.sum(y, axis=0, keepdims=True),
                         jnp.sum(y * y, axis=0, keepdims=True)], axis=0)
    s_ref[...] = s.reshape(1, 1, 2, CoutP)


def _norm_act_kernel(y_ref, a_ref, b_ref, o_ref):
    # o = SiLU(y * a + b)   (GroupNorm + affine + optional scale/shift folded into a, b)
    z = y_ref[0].astype(jnp.float32) * a_ref[0] + b_ref[0]
    o_ref[0] = (z * jax.nn.sigmoid(z)).astype(o_ref.dtype)


def _norm_act_add_kernel(y_ref, a_ref, b_ref, x_ref, o_ref):
    # identity residual: o = SiLU(y * a + b) + x_interior   (no 1x1 matmul)
    TH, W = y_ref.shape[1], y_ref.shape[2]
    t = pl.program_id(1)
    row0 = pl.multiple_of(t * TH, TH)
    z = y_ref[0].astype(jnp.float32) * a_ref[0] + b_ref[0]
    z = z * jax.nn.sigmoid(z)
    xv = x_ref.at[0]                                   # (H+2, W+2, CP) halo-padded bf16
    xin = xv[pl.ds(row0 + 1, TH), pl.ds(1, W), :].astype(jnp.float32)
    o_ref[0] = (z + xin).astype(o_ref.dtype)


def _norm_act_proj_kernel(y_ref, a_ref, b_ref, x_ref, wr_ref, br_ref, o_ref):
    # channel-changing residual: o = SiLU(y * a + b) + (x_interior @ Wres + bres)
    TH, W, CoutP = y_ref.shape[1], y_ref.shape[2], y_ref.shape[3]
    CinP = x_ref.shape[3]
    t = pl.program_id(1)
    row0 = pl.multiple_of(t * TH, TH)
    z = y_ref[0].astype(jnp.float32) * a_ref[0] + b_ref[0]
    z = z * jax.nn.sigmoid(z)
    xv = x_ref.at[0]                                   # (H+2, W+2, CinP) halo-padded bf16
    xin = xv[pl.ds(row0 + 1, TH), pl.ds(1, W), :].reshape(TH * W, CinP)
    res = jnp.dot(xin, wr_ref[...],
                  preferred_element_type=jnp.float32) + br_ref[...]
    o_ref[0] = (z + res.reshape(TH, W, CoutP)).astype(o_ref.dtype)


# ------------------------------ glue (XLA) ----------------------------------

def _round_up(x, m):
    return ((x + m - 1) // m) * m


def _largest_divisor_leq(h, cap):
    cap = max(1, min(h, cap))
    for d in range(cap, 0, -1):
        if h % d == 0:
            return d
    return 1


def _vmem_limit_bytes():
    # ~3/4 of physical VMEM: ~96 MiB on v5e/v6e (128 MiB), ~48 MiB on v7x (64 MiB).
    cap = None
    try:
        info = pltpu.get_tpu_info()
        cap = getattr(info, "vmem_capacity_bytes", None)
    except Exception:
        cap = None
    if not cap:
        cap = 64 * 1024 * 1024
    return int(min(cap * 3 // 4, 100 * 1024 * 1024))


def _prep_ws_weight(w, cin_p, cout_p):
    # Weight standardization (hoisted, once per call), pad, reorder, cast bf16.
    # w: (Cout, Cin, 3, 3) f32  ->  (9, CinP, CoutP) bf16, tap index = kh*3 + kw
    mean = jnp.mean(w, axis=(1, 2, 3), keepdims=True)
    var = jnp.mean((w - mean) ** 2, axis=(1, 2, 3), keepdims=True)   # unbiased=False
    wn = (w - mean) * jax.lax.rsqrt(var + WS_EPS)
    cout, cin = w.shape[0], w.shape[1]
    wt = jnp.transpose(wn, (2, 3, 1, 0))                             # (3,3,Cin,Cout)
    wt = jnp.pad(wt, ((0, 0), (0, 0), (0, cin_p - cin), (0, cout_p - cout)))
    return wt.reshape(9, cin_p, cout_p).astype(jnp.bfloat16)


def _pad_bias(b, n):
    return jnp.zeros((1, n), jnp.float32).at[0, :b.shape[0]].set(b.astype(jnp.float32))


def _gn_affine(stats, gamma, beta, c_out, groups, hw, c_pad, scale=None, shift=None):
    # Combine per-tile channel sums into per-(batch, channel) affine: y*a + b
    # equals GroupNorm(y)*gamma + beta  (optionally followed by *(scale+1)+shift).
    s = jnp.sum(stats, axis=1)                        # (B, 2, CoutP)
    ch_sum = s[:, 0, :c_out]                          # real channels only
    ch_sq = s[:, 1, :c_out]
    cg = c_out // groups
    n = float(hw * cg)
    g_sum = ch_sum.reshape(-1, groups, cg).sum(-1)
    g_sq = ch_sq.reshape(-1, groups, cg).sum(-1)
    g_mean = g_sum / n
    g_var = jnp.maximum(g_sq / n - g_mean * g_mean, 0.0)   # clamp: no negative var
    g_rstd = jax.lax.rsqrt(g_var + GN_EPS)
    mean_c = jnp.repeat(g_mean, cg, axis=1)           # (B, Cout)
    rstd_c = jnp.repeat(g_rstd, cg, axis=1)
    a = rstd_c * gamma[None, :]
    b = beta[None, :] - mean_c * a
    if scale is not None:
        a = a * (scale + 1.0)
        b = b * (scale + 1.0) + shift
    bsz = a.shape[0]
    a_p = jnp.zeros((bsz, c_pad), jnp.float32).at[:, :c_out].set(a)
    b_p = jnp.zeros((bsz, c_pad), jnp.float32).at[:, :c_out].set(b)
    return a_p[:, None, :], b_p[:, None, :]           # (B, 1, CoutP)


def _conv3x3_call(x_halo, w9, bias_p, row_tile, cparams):
    B, Hp2, Wp2, CinP = x_halo.shape
    H, W = Hp2 - 2, Wp2 - 2
    CoutP = w9.shape[-1]
    nT = H // row_tile
    return pl.pallas_call(
        _conv3x3_kernel,
        out_shape=(jax.ShapeDtypeStruct((B, H, W, CoutP), jnp.bfloat16),
                   jax.ShapeDtypeStruct((B, nT, 2, CoutP), jnp.float32)),
        grid=(B, nT),
        in_specs=[pl.BlockSpec((1, Hp2, Wp2, CinP), lambda b, t: (b, 0, 0, 0)),
                  pl.BlockSpec((9, CinP, CoutP), lambda b, t: (0, 0, 0)),
                  pl.BlockSpec((1, CoutP), lambda b, t: (0, 0))],
        out_specs=[pl.BlockSpec((1, row_tile, W, CoutP), lambda b, t: (b, t, 0, 0)),
                   pl.BlockSpec((1, 1, 2, CoutP), lambda b, t: (b, t, 0, 0))],
        scratch_shapes=[pltpu.VMEM((row_tile * W, CoutP), jnp.float32)],
        compiler_params=cparams,
    )(x_halo, w9, bias_p)


def _norm_act_call(y, a, b, tile_rows, cparams):
    B, H, W, CP = y.shape
    nT = H // tile_rows
    return pl.pallas_call(
        _norm_act_kernel,
        out_shape=jax.ShapeDtypeStruct((B, H, W, CP), jnp.bfloat16),
        grid=(B, nT),
        in_specs=[pl.BlockSpec((1, tile_rows, W, CP), lambda bi, t: (bi, t, 0, 0)),
                  pl.BlockSpec((1, 1, CP), lambda bi, t: (bi, 0, 0)),
                  pl.BlockSpec((1, 1, CP), lambda bi, t: (bi, 0, 0))],
        out_specs=pl.BlockSpec((1, tile_rows, W, CP), lambda bi, t: (bi, t, 0, 0)),
        compiler_params=cparams,
    )(y, a, b)


def init_resblock_params(key, in_channels, d_emb, groups=8, out_channels=None):
    if out_channels is None:
        out_channels = in_channels
    ks = jax.random.split(key, 8)

    def conv_w(k, o, i, kh, kw):
        fan_in = i * kh * kw
        return jax.random.normal(k, (o, i, kh, kw), jnp.float32) / jnp.sqrt(fan_in)

    p = dict(in_channels=in_channels, out_channels=out_channels, groups=groups)
    p["mlp_w"] = jax.random.normal(ks[0], (d_emb, 2 * out_channels), jnp.float32) / jnp.sqrt(d_emb)
    p["mlp_b"] = jax.random.normal(ks[1], (1, 2 * out_channels), jnp.float32) * 0.01
    p["w1"] = conv_w(ks[2], out_channels, in_channels, 3, 3)
    p["b1"] = jax.random.normal(ks[3], (out_channels,), jnp.float32) * 0.01
    p["w2"] = conv_w(ks[4], out_channels, out_channels, 3, 3)
    p["b2"] = jax.random.normal(ks[5], (out_channels,), jnp.float32) * 0.01
    p["gamma1"] = jnp.ones((out_channels,), jnp.float32)
    p["beta1"] = jnp.zeros((out_channels,), jnp.float32)
    p["gamma2"] = jnp.ones((out_channels,), jnp.float32)
    p["beta2"] = jnp.zeros((out_channels,), jnp.float32)
    if in_channels != out_channels:
        wres = conv_w(ks[6], out_channels, in_channels, 1, 1)
        p["wres"] = wres[:, :, 0, 0]                                   # (Cout, Cin)
        p["bres"] = jax.random.normal(ks[7], (out_channels,), jnp.float32) * 0.01
    else:
        p["wres"] = None                                               # nn.Identity
        p["bres"] = None
    return p


def resblock_forward(params, x, emb, row_tile=None):
    x = x.astype(jnp.float32)
    emb = emb.astype(jnp.float32)
    B, Cin, H, W = x.shape
    Cout, G = params["out_channels"], params["groups"]
    CinP, CoutP = _round_up(Cin, LANE), _round_up(Cout, LANE)
    HW = H * W

    # Conv tiles target ~512 output rows (v6e/v7x MXU M); elementwise passes are
    # HBM-bound -> much larger tiles (~1024 rows) to reach roofline.
    TH = _largest_divisor_leq(H, max(1, 512 // max(W, 1))) if row_tile is None else row_tile
    assert H % TH == 0, "row_tile must divide H"
    THn = _largest_divisor_leq(H, max(1, 1024 // max(W, 1)))
    nTn = H // THn

    cparams = pltpu.CompilerParams(
        dimension_semantics=("parallel", "arbitrary"),     # batch carries the 2-TC split
        vmem_limit_bytes=_vmem_limit_bytes())

    # ---- emb MLP: SiLU -> Linear (tiny, plain XLA; folded into GN affine) ----
    e = emb * jax.nn.sigmoid(emb)
    ss = e @ params["mlp_w"] + params["mlp_b"]
    scale, shift = ss[:, :Cout], ss[:, Cout:]

    # ---- activations: NCHW -> NHWC, ONE fused pad (halo + channels) + bf16 cast ----
    x_nhwc = jnp.transpose(x, (0, 2, 3, 1))                            # (B, H, W, Cin)
    x_halo = jnp.pad(x_nhwc,
                     ((0, 0), (1, 1), (1, 1), (0, CinP - Cin))).astype(jnp.bfloat16)

    # ---- weights: standardize once (hoisted), pad, cast bf16 ----
    w1 = _prep_ws_weight(params["w1"], CinP, CoutP)
    b1 = _pad_bias(params["b1"], CoutP)
    w2 = _prep_ws_weight(params["w2"], CoutP, CoutP)
    b2 = _pad_bias(params["b2"], CoutP)

    # ---- block1: conv3x3 (+ per-tile stats) -> GN + scale/shift + SiLU ----
    y1, st1 = _conv3x3_call(x_halo, w1, b1, TH, cparams)
    a1, bb1 = _gn_affine(st1, params["gamma1"], params["beta1"], Cout, G, HW, CoutP,
                         scale=scale, shift=shift)
    h1 = _norm_act_call(y1, a1, bb1, THn, cparams)

    # ---- block2: conv3x3 (+ stats) -> GN + SiLU, fused residual ----
    # TODO(synk): write h1 halo-padded directly from _norm_act_kernel to drop this pad.
    h1_halo = jnp.pad(h1, ((0, 0), (1, 1), (1, 1), (0, 0)))            # bf16, one pass
    y2, st2 = _conv3x3_call(h1_halo, w2, b2, TH, cparams)
    a2, bb2 = _gn_affine(st2, params["gamma2"], params["beta2"], Cout, G, HW, CoutP)

    if params["wres"] is None:
        # identity residual: elementwise add, no 1x1 matmul / weight DMA.
        # (Cin == Cout here, so CinP == CoutP and the padded x image lines up.)
        out_p = pl.pallas_call(
            _norm_act_add_kernel,
            out_shape=jax.ShapeDtypeStruct((B, H, W, CoutP), jnp.float32),
            grid=(B, nTn),
            in_specs=[pl.BlockSpec((1, THn, W, CoutP), lambda bi, t: (bi, t, 0, 0)),
                      pl.BlockSpec((1, 1, CoutP), lambda bi, t: (bi, 0, 0)),
                      pl.BlockSpec((1, 1, CoutP), lambda bi, t: (bi, 0, 0)),
                      pl.BlockSpec((1, H + 2, W + 2, CinP), lambda bi, t: (bi, 0, 0, 0))],
            out_specs=pl.BlockSpec((1, THn, W, CoutP), lambda bi, t: (bi, t, 0, 0)),
            compiler_params=cparams,
        )(y2, a2, bb2, x_halo)
    else:
        wres = jnp.pad(jnp.transpose(params["wres"], (1, 0)),
                       ((0, CinP - Cin), (0, CoutP - Cout))).astype(jnp.bfloat16)
        bres = _pad_bias(params["bres"], CoutP)
        out_p = pl.pallas_call(
            _norm_act_proj_kernel,
            out_shape=jax.ShapeDtypeStruct((B, H, W, CoutP), jnp.float32),
            grid=(B, nTn),
            in_specs=[pl.BlockSpec((1, THn, W, CoutP), lambda bi, t: (bi, t, 0, 0)),
                      pl.BlockSpec((1, 1, CoutP), lambda bi, t: (bi, 0, 0)),
                      pl.BlockSpec((1, 1, CoutP), lambda bi, t: (bi, 0, 0)),
                      pl.BlockSpec((1, H + 2, W + 2, CinP), lambda bi, t: (bi, 0, 0, 0)),
                      pl.BlockSpec((CinP, CoutP), lambda bi, t: (0, 0)),
                      pl.BlockSpec((1, CoutP), lambda bi, t: (0, 0))],
            out_specs=pl.BlockSpec((1, THn, W, CoutP), lambda bi, t: (bi, t, 0, 0)),
            compiler_params=cparams,
        )(y2, a2, bb2, x_halo, wres, bres)

    out = out_p[:, :, :, :Cout]                       # drop channel padding
    return jnp.transpose(out, (0, 3, 1, 2))           # back to NCHW


# --------------------------- pure-JAX reference -----------------------------

def resblock_reference(params, x, emb):
    """Pure-JAX float32 reference with PyTorch ResBlock semantics."""
    C, G = params["out_channels"], params["groups"]

    def ws_conv(h, w, b):
        mean = jnp.mean(w, axis=(1, 2, 3), keepdims=True)
        var = jnp.mean((w - mean) ** 2, axis=(1, 2, 3), keepdims=True)
        wn = (w - mean) * jax.lax.rsqrt(var + WS_EPS)
        y = jax.lax.conv_general_dilated(
            h, wn, window_strides=(1, 1), padding=((1, 1), (1, 1)),
            dimension_numbers=("NCHW", "OIHW", "NCHW"))
        return y + b[None, :, None, None]

    def group_norm(h, gamma, beta):
        B, c, H, W = h.shape
        hr = h.reshape(B, G, -1)
        m = jnp.mean(hr, axis=-1, keepdims=True)
        v = jnp.mean((hr - m) ** 2, axis=-1, keepdims=True)
        hn = ((hr - m) * jax.lax.rsqrt(v + GN_EPS)).reshape(B, c, H, W)
        return hn * gamma[None, :, None, None] + beta[None, :, None, None]

    e = emb * jax.nn.sigmoid(emb)
    ss = e @ params["mlp_w"] + params["mlp_b"]
    scale = ss[:, :C][:, :, None, None]
    shift = ss[:, C:][:, :, None, None]

    h = ws_conv(x, params["w1"], params["b1"])
    h = group_norm(h, params["gamma1"], params["beta1"])
    h = h * (scale + 1.0) + shift
    h = h * jax.nn.sigmoid(h)

    h = ws_conv(h, params["w2"], params["b2"])
    h = group_norm(h, params["gamma2"], params["beta2"])
    h = h * jax.nn.sigmoid(h)

    if params["wres"] is None:
        res = x
    else:
        res = jnp.einsum("bihw,oi->bohw", x, params["wres"]) \
            + params["bres"][None, :, None, None]
    return h + res


# --------------------------------- main --------------------------------------

if __name__ == "__main__":
    key = jax.random.PRNGKey(0)
    kx, ke, kp, kp2 = jax.random.split(key, 4)

    # Case 1: channel-changing ResBlock (1x1-conv residual path, fused in kernel).
    # Explicit row_tile=4 exercises the multi-tile conv path + stat combining.
    B, Cin, H, W = 2, 4, 16, 16
    Cout, G, d_emb = 8, 4, 32
    x = jax.random.normal(kx, (B, Cin, H, W), jnp.float32)
    emb = jax.random.normal(ke, (B, d_emb), jnp.float32)
    params = init_resblock_params(kp, Cin, d_emb, groups=G, out_channels=Cout)

    fwd = jax.jit(lambda xx, ee: resblock_forward(params, xx, ee, row_tile=4))
    out = jax.block_until_ready(fwd(x, emb))
    ref = resblock_reference(params, x, emb)
    assert out.shape == (B, Cout, H, W), out.shape
    assert bool(jnp.all(jnp.isfinite(out)))
    # bf16 MXU operands / bf16 intermediates vs f32 reference -> loose but bug-catching
    assert float(jnp.max(jnp.abs(out - ref))) < 0.3

    # Case 2: identity residual (in_channels == out_channels), heuristic tiling.
    params2 = init_resblock_params(kp2, Cout, d_emb, groups=G, out_channels=Cout)
    x2 = jax.random.normal(kx, (B, Cout, H, W), jnp.float32)
    fwd2 = jax.jit(lambda xx, ee: resblock_forward(params2, xx, ee))
    out2 = jax.block_until_ready(fwd2(x2, emb))
    ref2 = resblock_reference(params2, x2, emb)
    assert out2.shape == (B, Cout, H, W), out2.shape
    assert bool(jnp.all(jnp.isfinite(out2)))
    assert float(jnp.max(jnp.abs(out2 - ref2))) < 0.3

    print("KERNEL_OK")
</pallas_src>

<mosaic_0001>
module attributes {stable_mosaic.version = 11 : i64} {
  func.func @_norm_act_kernel(%arg0: i32, %arg1: i32, %arg2: memref<1x16x16x128xbf16, #tpu.memory_space<vmem>>, %arg3: memref<1x1x128xf32, #tpu.memory_space<vmem>>, %arg4: memref<1x1x128xf32, #tpu.memory_space<vmem>>, %arg5: memref<1x16x16x128xbf16, #tpu.memory_space<vmem>>) attributes {dimension_semantics = [#tpu.dimension_semantics<parallel>, #tpu.dimension_semantics<arbitrary>], iteration_bounds = array<i64: 2, 1>, scalar_prefetch = 0 : i64, scratch_operands = 0 : i64, tpu.core_type = #tpu.core_type<tc>, window_params = [{transform_indices = @transform_0, window_bounds = array<i64: 1, 16, 16, 128>}, {transform_indices = @transform_1, window_bounds = array<i64: 1, 1, 128>}, {transform_indices = @transform_2, window_bounds = array<i64: 1, 1, 128>}, {transform_indices = @transform_3, window_bounds = array<i64: 1, 16, 16, 128>}]} {
    %c0 = arith.constant 0 : index
    %c0_0 = arith.constant 0 : index
    %c0_1 = arith.constant 0 : index
    %c0_2 = arith.constant 0 : index
    %0 = vector.load %arg2[%c0, %c0_0, %c0_1, %c0_2] : memref<1x16x16x128xbf16, #tpu.memory_space<vmem>>, vector<1x16x16x128xbf16>
    %1 = vector.shape_cast %0 : vector<1x16x16x128xbf16> to vector<16x16x128xbf16>
    %2 = arith.extf %1 : vector<16x16x128xbf16> to vector<16x16x128xf32>
    %c0_3 = arith.constant 0 : index
    %c0_4 = arith.constant 0 : index
    %c0_5 = arith.constant 0 : index
    %3 = vector.load %arg3[%c0_3, %c0_4, %c0_5] : memref<1x1x128xf32, #tpu.memory_space<vmem>>, vector<1x1x128xf32>
    %4 = vector.shape_cast %3 : vector<1x1x128xf32> to vector<1x128xf32>
    %5 = vector.shape_cast %4 : vector<1x128xf32> to vector<1x1x128xf32>
    %6 = vector.broadcast %5 : vector<1x1x128xf32> to vector<16x16x128xf32>
    %7 = arith.mulf %2, %6 : vector<16x16x128xf32>
    %c0_6 = arith.constant 0 : index
    %c0_7 = arith.constant 0 : index
    %c0_8 = arith.constant 0 : index
    %8 = vector.load %arg4[%c0_6, %c0_7, %c0_8] : memref<1x1x128xf32, #tpu.memory_space<vmem>>, vector<1x1x128xf32>
    %9 = vector.shape_cast %8 : vector<1x1x128xf32> to vector<1x128xf32>
    %10 = vector.shape_cast %9 : vector<1x128xf32> to vector<1x1x128xf32>
    %11 = vector.broadcast %10 : vector<1x1x128xf32> to vector<16x16x128xf32>
    %12 = arith.addf %7, %11 : vector<16x16x128xf32>
    %13 = arith.negf %12 : vector<16x16x128xf32>
    %14 = math.exp %13 : vector<16x16x128xf32>
    %cst = arith.constant 1.000000e+00 : f32
    %15 = vector.broadcast %cst : f32 to vector<16x16x128xf32>
    %16 = arith.addf %15, %14 : vector<16x16x128xf32>
    %17 = arith.divf %15, %16 : vector<16x16x128xf32>
    %18 = arith.mulf %12, %17 : vector<16x16x128xf32>
    %19 = arith.truncf %18 : vector<16x16x128xf32> to vector<16x16x128xbf16>
    %c0_9 = arith.constant 0 : index
    %c0_10 = arith.constant 0 : index
    %c0_11 = arith.constant 0 : index
    %c0_12 = arith.constant 0 : index
    %20 = vector.load %arg5[%c0_9, %c0_10, %c0_11, %c0_12] : memref<1x16x16x128xbf16, #tpu.memory_space<vmem>>, vector<1x16x16x128xbf16>
    %21 = vector.shape_cast %20 : vector<1x16x16x128xbf16> to vector<16x16x128xbf16>
    %22 = vector.shape_cast %19 : vector<16x16x128xbf16> to vector<1x16x16x128xbf16>
    tpu.vector_store %arg5[%c0_9, %c0_10, %c0_11, %c0_12], %22 {strides = array<i32>} : memref<1x16x16x128xbf16, #tpu.memory_space<vmem>>, vector<1x16x16x128xbf16>,
    return
  }
  func.func @transform_0(%arg0: i32, %arg1: i32) -> (i32, i32, i32, i32) {
    %c0_i32 = arith.constant 0 : i32
    %c0_i32_0 = arith.constant 0 : i32
    %c0_i32_1 = arith.constant 0 : i32
    return %arg0, %arg1, %c0_i32, %c0_i32_0 : i32, i32, i32, i32
  }
  func.func @transform_1(%arg0: i32, %arg1: i32) -> (i32, i32, i32) {
    %c0_i32 = arith.constant 0 : i32
    %c0_i32_0 = arith.constant 0 : i32
    %c0_i32_1 = arith.constant 0 : i32
    return %arg0, %c0_i32, %c0_i32_0 : i32, i32, i32
  }
  func.func @transform_2(%arg0: i32, %arg1: i32) -> (i32, i32, i32) {
    %c0_i32 = arith.constant 0 : i32
    %c0_i32_0 = arith.constant 0 : i32
    %c0_i32_1 = arith.constant 0 : i32
    return %arg0, %c0_i32, %c0_i32_0 : i32, i32, i32
  }
  func.func @transform_3(%arg0: i32, %arg1: i32) -> (i32, i32, i32, i32) {
    %c0_i32 = arith.constant 0 : i32
    %c0_i32_0 = arith.constant 0 : i32
    %c0_i32_1 = arith.constant 0 : i32
    return %arg0, %arg1, %c0_i32, %c0_i32_0 : i32, i32, i32, i32
  }
}

module attributes {stable_mosaic.version = 11 : i64} {
  func.func @_conv3x3_kernel(%arg0: i32, %arg1: i32, %arg2: memref<1x18x18x128xbf16, #tpu.memory_space<vmem>>, %arg3: memref<9x128x128xbf16, #tpu.memory_space<vmem>>, %arg4: memref<1x128xf32, #tpu.memory_space<vmem>>, %arg5: memref<1x4x16x128xbf16, #tpu.memory_space<vmem>>, %arg6: memref<1x1x2x128xf32, #tpu.memory_space<vmem>>, %arg7: memref<64x128xf32, #tpu.memory_space<vmem>>) attributes {dimension_semantics = [#tpu.dimension_semantics<parallel>, #tpu.dimension_semantics<arbitrary>], iteration_bounds = array<i64: 2, 4>, scalar_prefetch = 0 : i64, scratch_operands = 1 : i64, tpu.core_type = #tpu.core_type<tc>, window_params = [{transform_indices = @transform_0, window_bounds = array<i64: 1, 18, 18, 128>}, {pipeline_mode = #tpu.pipeline_mode<synchronous>, transform_indices = @transform_1, window_bounds = array<i64: 9, 128, 128>}, {pipeline_mode = #tpu.pipeline_mode<synchronous>, transform_indices = @transform_2, window_bounds = array<i64: 1, 128>}, {transform_indices = @transform_3, window_bounds = array<i64: 1, 4, 16, 128>}, {transform_indices = @transform_4, window_bounds = array<i64: 1, 1, 2, 128>}]} {
    %c4_i32 = arith.constant 4 : i32
    %0 = arith.muli %arg1, %c4_i32 : i32
    %1 = tpu.assume_multiple %0, 4 : i32
    %c0_i32 = arith.constant 0 : i32
    %2 = arith.addi %1, %c0_i32 : i32
    %c0_i32_0 = arith.constant 0 : i32
    %c0_i32_1 = arith.constant 0 : i32
    %c0_i32_2 = arith.constant 0 : i32
    %c0_i32_3 = arith.constant 0 : i32
    %3 = tpu.memref_slice %arg2[%c0_i32_0, %c0_i32_1, %c0_i32_2, %c0_i32_3] : memref<1x18x18x128xbf16, #tpu.memory_space<vmem>> -> memref<1x18x18x128xbf16, #tpu.memory_space<vmem>>
    %4 = tpu.memref_squeeze %3 : memref<1x18x18x128xbf16, #tpu.memory_space<vmem>> -> memref<18x18x128xbf16, #tpu.memory_space<vmem>>
    %5 = arith.index_cast %2 : i32 to index
    %c0 = arith.constant 0 : index
    %c0_4 = arith.constant 0 : index
    %6 = vector.load %4[%5, %c0, %c0_4] : memref<18x18x128xbf16, #tpu.memory_space<vmem>>, vector<4x16x128xbf16>
    %7 = vector.shape_cast %6 : vector<4x16x128xbf16> to vector<64x128xbf16>
    %c0_5 = arith.constant 0 : index
    %c0_6 = arith.constant 0 : index
    %c0_7 = arith.constant 0 : index
    %8 = vector.load %arg3[%c0_5, %c0_6, %c0_7] : memref<9x128x128xbf16, #tpu.memory_space<vmem>>, vector<1x128x128xbf16>
    %9 = vector.shape_cast %8 : vector<1x128x128xbf16> to vector<128x128xbf16>
    %cst = arith.constant dense<0.000000e+00> : vector<64x128xf32>
    %10 = tpu.matmul %7, %9, %cst {dimension_numbers = #tpu.dot_dimension_numbers<[1], [0], [0], [1], [0, 0, 1, 1], [], []>} : vector<64x128xbf16>, vector<128x128xbf16>, vector<64x128xf32> -> vector<64x128xf32>
    %c0_8 = arith.constant 0 : index
    %c0_9 = arith.constant 0 : index
    %11 = vector.load %arg7[%c0_8, %c0_9] : memref<64x128xf32, #tpu.memory_space<vmem>>, vector<64x128xf32>
    tpu.vector_store %arg7[%c0_8, %c0_9], %10 {strides = array<i32>} : memref<64x128xf32, #tpu.memory_space<vmem>>, vector<64x128xf32>,
    %c0_i32_10 = arith.constant 0 : i32
    %12 = arith.addi %1, %c0_i32_10 : i32
    %c0_i32_11 = arith.constant 0 : i32
    %c0_i32_12 = arith.constant 0 : i32
    %c0_i32_13 = arith.constant 0 : i32
    %c0_i32_14 = arith.constant 0 : i32
    %13 = tpu.memref_slice %arg2[%c0_i32_11, %c0_i32_12, %c0_i32_13, %c0_i32_14] : memref<1x18x18x128xbf16, #tpu.memory_space<vmem>> -> memref<1x18x18x128xbf16, #tpu.memory_space<vmem>>
    %14 = tpu.memref_squeeze %13 : memref<1x18x18x128xbf16, #tpu.memory_space<vmem>> -> memref<18x18x128xbf16, #tpu.memory_space<vmem>>
    %15 = arith.index_cast %12 : i32 to index
    %c1 = arith.constant 1 : index
    %c0_15 = arith.constant 0 : index
    %16 = vector.load %14[%15, %c1, %c0_15] : memref<18x18x128xbf16, #tpu.memory_space<vmem>>, vector<4x16x128xbf16>
    %17 = vector.shape_cast %16 : vector<4x16x128xbf16> to vector<64x128xbf16>
    %c1_16 = arith.constant 1 : index
    %c0_17 = arith.constant 0 : index
    %c0_18 = arith.constant 0 : index
    %18 = vector.load %arg3[%c1_16, %c0_17, %c0_18] : memref<9x128x128xbf16, #tpu.memory_space<vmem>>, vector<1x128x128xbf16>
    %19 = vector.shape_cast %18 : vector<1x128x128xbf16> to vector<128x128xbf16>
    %cst_19 = arith.constant dense<0.000000e+00> : vector<64x128xf32>
    %20 = tpu.matmul %17, %19, %cst_19 {dimension_numbers = #tpu.dot_dimension_numbers<[1], [0], [0], [1], [0, 0, 1, 1], [], []>} : vector<64x128xbf16>, vector<128x128xbf16>, vector<64x128xf32> -> vector<64x128xf32>
    %c0_20 = arith.constant 0 : index
    %c0_21 = arith.constant 0 : index
    %21 = vector.load %arg7[%c0_20, %c0_21] : memref<64x128xf32, #tpu.memory_space<vmem>>, vector<64x128xf32>
    %22 = arith.addf %21, %20 : vector<64x128xf32>
    %c0_22 = arith.constant 0 : index
    %c0_23 = arith.constant 0 : index
    %23 = vector.load %arg7[%c0_22, %c0_23] : memref<64x128xf32, #tpu.memory_space<vmem>>, vector<64x128xf32>
    tpu.vector_store %arg7[%c0_22, %c0_23], %22 {strides = array<i32>} : memref<64x128xf32, #tpu.memory_space<vmem>>, vector<64x128xf32>,
    %c0_i32_24 = arith.constant 0 : i32
    %24 = arith.addi %1, %c0_i32_24 : i32
    %c0_i32_25 = arith.constant 0 : i32
    %c0_i32_26 = arith.constant 0 : i32
    %c0_i32_27 = arith.constant 0 : i32
    %c0_i32_28 = arith.constant 0 : i32
    %25 = tpu.memref_slice %arg2[%c0_i32_25, %c0_i32_26, %c0_i32_27, %c0_i32_28] : memref<1x18x18x128xbf16, #tpu.memory_space<vmem>> -> memref<1x18x18x128xbf16, #tpu.memory_space<vmem>>
    %26 = tpu.memref_squeeze %25 : memref<1x18x18x128xbf16, #tpu.memory_space<vmem>> -> memref<18x18x128xbf16, #tpu.memory_space<vmem>>
    %27 = arith.index_cast %24 : i32 to index
    %c2 = arith.constant 2 : index
    %c0_29 = arith.constant 0 : index
    %28 = vector.load %26[%27, %c2, %c0_29] : memref<18x18x128xbf16, #tpu.memory_space<vmem>>, vector<4x16x128xbf16>
    %29 = vector.shape_cast %28 : vector<4x16x128xbf16> to vector<64x128xbf16>
    %c2_30 = arith.constant 2 : index
    %c0_31 = arith.constant 0 : index
    %c0_32 = arith.constant 0 : index
    %30 = vector.load %arg3[%c2_30, %c0_31, %c0_32] : memref<9x128x128xbf16, #tpu.memory_space<vmem>>, vector<1x128x128xbf16>
    %31 = vector.shape_cast %30 : vector<1x128x128xbf16> to vector<128x128xbf16>
    %cst_33 = arith.constant dense<0.000000e+00> : vector<64x128xf32>
    %32 = tpu.matmul %29, %31, %cst_33 {dimension_numbers = #tpu.dot_dimension_numbers<[1], [0], [0], [1], [0, 0, 1, 1], [], []>} : vector<64x128xbf16>, vector<128x128xbf16>, vector<64x128xf32> -> vector<64x128xf32>
    %c0_34 = arith.constant 0 : index
    %c0_35 = arith.constant 0 : index
    %33 = vector.load %arg7[%c0_34, %c0_35] : memref<64x128xf32, #tpu.memory_space<vmem>>, vector<64x128xf32>
    %34 = arith.addf %33, %32 : vector<64x128xf32>
    %c0_36 = arith.constant 0 : index
    %c0_37 = arith.constant 0 : index
    %35 = vector.load %arg7[%c0_36, %c0_37] : memref<64x128xf32, #tpu.memory_space<vmem>>, vector<64x128xf32>
    tpu.vector_store %arg7[%c0_36, %c0_37], %34 {strides = array<i32>} : memref<64x128xf32, #tpu.memory_space<vmem>>, vector<64x128xf32>,
    %c1_i32 = arith.constant 1 : i32
    %36 = arith.addi %1, %c1_i32 : i32
    %c0_i32_38 = arith.constant 0 : i32
    %c0_i32_39 = arith.constant 0 : i32
    %c0_i32_40 = arith.constant 0 : i32
    %c0_i32_41 = arith.constant 0 : i32
    %37 = tpu.memref_slice %arg2[%c0_i32_38, %c0_i32_39, %c0_i32_40, %c0_i32_41] : memref<1x18x18x128xbf16, #tpu.memory_space<vmem>> -> memref<1x18x18x128xbf16, #tpu.memory_space<vmem>>
    %38 = tpu.memref_squeeze %37 : memref<1x18x18x128xbf16, #tpu.memory_space<vmem>> -> memref<18x18x128xbf16, #tpu.memory_space<vmem>>
    %39 = arith.index_cast %36 : i32 to index
    %c0_42 = arith.constant 0 : index
    %c0_43 = arith.constant 0 : index
    %40 = vector.load %38[%39, %c0_42, %c0_43] : memref<18x18x128xbf16, #tpu.memory_space<vmem>>, vector<4x16x128xbf16>
    %41 = vector.shape_cast %40 : vector<4x16x128xbf16> to vector<64x128xbf16>
    %c3 = arith.constant 3 : index
    %c0_44 = arith.constant 0 : index
    %c0_45 = arith.constant 0 : index
    %42 = vector.load %arg3[%c3, %c0_44, %c0_45] : memref<9x128x128xbf16, #tpu.memory_space<vmem>>, vector<1x128x128xbf16>
    %43 = vector.shape_cast %42 : vector<1x128x128xbf16> to vector<128x128xbf16>
    %cst_46 = arith.constant dense<0.000000e+00> : vector<64x128xf32>
    %44 = tpu.matmul %41, %43, %cst_46 {dimension_numbers = #tpu.dot_dimension_numbers<[1], [0], [0], [1], [0, 0, 1, 1], [], []>} : vector<64x128xbf16>, vector<128x128xbf16>, vector<64x128xf32> -> vector<64x128xf32>
    %c0_47 = arith.constant 0 : index
    %c0_48 = arith.constant 0 : index
    %45 = vector.load %arg7[%c0_47, %c0_48] : memref<64x128xf32, #tpu.memory_space<vmem>>, vector<64x128xf32>
    %46 = arith.addf %45, %44 : vector<64x128xf32>
    %c0_49 = arith.constant 0 : index
    %c0_50 = arith.constant 0 : index
    %47 = vector.load %arg7[%c0_49, %c0_50] : memref<64x128xf32, #tpu.memory_space<vmem>>, vector<64x128xf32>
    tpu.vector_store %arg7[%c0_49, %c0_50], %46 {strides = array<i32>} : memref<64x128xf32, #tpu.memory_space<vmem>>, vector<64x128xf32>,
    %c1_i32_51 = arith.constant 1 : i32
    %48 = arith.addi %1, %c1_i32_51 : i32
    %c0_i32_52 = arith.constant 0 : i32
    %c0_i32_53 = arith.constant 0 : i32
    %c0_i32_54 = arith.constant 0 : i32
    %c0_i32_55 = arith.constant 0 : i32
    %49 = tpu.memref_slice %arg2[%c0_i32_52, %c0_i32_53, %c0_i32_54, %c0_i32_55] : memref<1x18x18x128xbf16, #tpu.memory_space<vmem>> -> memref<1x18x18x128xbf16, #tpu.memory_space<vmem>>
    %50 = tpu.memref_squeeze %49 : memref<1x18x18x128xbf16, #tpu.memory_space<vmem>> -> memref<18x18x128xbf16, #tpu.memory_space<vmem>>
    %51 = arith.index_cast %48 : i32 to index
    %c1_56 = arith.constant 1 : index
    %c0_57 = arith.constant 0 : index
    %52 = vector.load %50[%51, %c1_56, %c0_57] : memref<18x18x128xbf16, #tpu.memory_space<vmem>>, vector<4x16x128xbf16>
    %53 = vector.shape_cast %52 : vector<4x16x128xbf16> to vector<64x128xbf16>
    %c4 = arith.constant 4 : index
    %c0_58 = arith.constant 0 : index
    %c0_59 = arith.constant 0 : index
    %54 = vector.load %arg3[%c4, %c0_58, %c0_59] : memref<9x128x128xbf16, #tpu.memory_space<vmem>>, vector<1x128x128xbf16>
    %55 = vector.shape_cast %54 : vector<1x128x128xbf16> to vector<128x128xbf16>
    %cst_60 = arith.constant dense<0.000000e+00> : vector<64x128xf32>
    %56 = tpu.matmul %53, %55, %cst_60 {dimension_numbers = #tpu.dot_dimension_numbers<[1], [0], [0], [1], [0, 0, 1, 1], [], []>} : vector<64x128xbf16>, vector<128x128xbf16>, vector<64x128xf32> -> vector<64x128xf32>
    %c0_61 = arith.constant 0 : index
    %c0_62 = arith.constant 0 : index
    %57 = vector.load %arg7[%c0_61, %c0_62] : memref<64x128xf32, #tpu.memory_space<vmem>>, vector<64x128xf32>
    %58 = arith.addf %57, %56 : vector<64x128xf32>
    %c0_63 = arith.constant 0 : index
    %c0_64 = arith.constant 0 : index
    %59 = vector.load %arg7[%c0_63, %c0_64] : memref<64x128xf32, #tpu.memory_space<vmem>>, vector<64x128xf32>
    tpu.vector_store %arg7[%c0_63, %c0_64], %58 {strides = array<i32>} : memref<64x128xf32, #tpu.memory_space<vmem>>, vector<64x128xf32>,
    %c1_i32_65 = arith.constant 1 : i32
    %60 = arith.addi %1, %c1_i32_65 : i32
    %c0_i32_66 = arith.constant 0 : i32
    %c0_i32_67 = arith.constant 0 : i32
    %c0_i32_68 = arith.constant 0 : i32
    %c0_i32_69 = arith.constant 0 : i32
    %61 = tpu.memref_slice %arg2[%c0_i32_66, %c0_i32_67, %c0_i32_68, %c0_i32_69] : memref<1x18x18x128xbf16, #tpu.memory_space<vmem>> -> memref<1x18x18x128xbf16, #tpu.memory_space<vmem>>
    %62 = tpu.memref_squeeze %61 : memref<1x18x18x128xbf16, #tpu.memory_space<vmem>> -> memref<18x18x128xbf16, #tpu.memory_space<vmem>>
    %63 = arith.index_cast %60 : i32 to index
    %c2_70 = arith.constant 2 : index
    %c0_71 = arith.constant 0 : index
    %64 = vector.load %62[%63, %c2_70, %c0_71] : memref<18x18x128xbf16, #tpu.memory_space<vmem>>, vector<4x16x128xbf16>
    %65 = vector.shape_cast %64 : vector<4x16x128xbf16> to vector<64x128xbf16>
    %c5 = arith.constant 5 : index
    %c0_72 = arith.constant 0 : index
    %c0_73 = arith.constant 0 : index
    %66 = vector.load %arg3[%c5, %c0_72, %c0_73] : memref<9x128x128xbf16, #tpu.memory_space<vmem>>, vector<1x128x128xbf16>
    %67 = vector.shape_cast %66 : vector<1x128x128xbf16> to vector<128x128xbf16>
    %cst_74 = arith.constant dense<0.000000e+00> : vector<64x128xf32>
    %68 = tpu.matmul %65, %67, %cst_74 {dimension_numbers = #tpu.dot_dimension_numbers<[1], [0], [0], [1], [0, 0, 1, 1], [], []>} : vector<64x128xbf16>, vector<128x128xbf16>, vector<64x128xf32> -> vector<64x128xf32>
    %c0_75 = arith.constant 0 : index
    %c0_76 = arith.constant 0 : index
    %69 = vector.load %arg7[%c0_75, %c0_76] : memref<64x128xf32, #tpu.memory_space<vmem>>, vector<64x128xf32>
    %70 = arith.addf %69, %68 : vector<64x128xf32>
    %c0_77 = arith.constant 0 : index
    %c0_78 = arith.constant 0 : index
    %71 = vector.load %arg7[%c0_77, %c0_78] : memref<64x128xf32, #tpu.memory_space<vmem>>, vector<64x128xf32>
    tpu.vector_store %arg7[%c0_77, %c0_78], %70 {strides = array<i32>} : memref<64x128xf32, #tpu.memory_space<vmem>>, vector<64x128xf32>,
    %c2_i32 = arith.constant 2 : i32
    %72 = arith.addi %1, %c2_i32 : i32
    %c0_i32_79 = arith.constant 0 : i32
    %c0_i32_80 = arith.constant 0 : i32
    %c0_i32_81 = arith.constant 0 : i32
    %c0_i32_82 = arith.constant 0 : i32
    %73 = tpu.memref_slice %arg2[%c0_i32_79, %c0_i32_80, %c0_i32_81, %c0_i32_82] : memref<1x18x18x128xbf16, #tpu.memory_space<vmem>> -> memref<1x18x18x128xbf16, #tpu.memory_space<vmem>>
    %74 = tpu.memref_squeeze %73 : memref<1x18x18x128xbf16, #tpu.memory_space<vmem>> -> memref<18x18x128xbf16, #tpu.memory_space<vmem>>
    %75 = arith.index_cast %72 : i32 to index
    %c0_83 = arith.constant 0 : index
    %c0_84 = arith.constant 0 : index
    %76 = vector.load %74[%75, %c0_83, %c0_84] : memref<18x18x128xbf16, #tpu.memory_space<vmem>>, vector<4x16x128xbf16>
    %77 = vector.shape_cast %76 : vector<4x16x128xbf16> to vector<64x128xbf16>
    %c6 = arith.constant 6 : index
    %c0_85 = arith.constant 0 : index
    %c0_86 = arith.constant 0 : index
    %78 = vector.load %arg3[%c6, %c0_85, %c0_86] : memref<9x128x128xbf16, #tpu.memory_space<vmem>>, vector<1x128x128xbf16>
    %79 = vector.shape_cast %78 : vector<1x128x128xbf16> to vector<128x128xbf16>
    %cst_87 = arith.constant dense<0.000000e+00> : vector<64x128xf32>
    %80 = tpu.matmul %77, %79, %cst_87 {dimension_numbers = #tpu.dot_dimension_numbers<[1], [0], [0], [1], [0, 0, 1, 1], [], []>} : vector<64x128xbf16>, vector<128x128xbf16>, vector<64x128xf32> -> vector<64x128xf32>
    %c0_88 = arith.constant 0 : index
    %c0_89 = arith.constant 0 : index
    %81 = vector.load %arg7[%c0_88, %c0_89] : memref<64x128xf32, #tpu.memory_space<vmem>>, vector<64x128xf32>
    %82 = arith.addf %81, %80 : vector<64x128xf32>
    %c0_90 = arith.constant 0 : index
    %c0_91 = arith.constant 0 : index
    %83 = vector.load %arg7[%c0_90, %c0_91] : memref<64x128xf32, #tpu.memory_space<vmem>>, vector<64x128xf32>
    tpu.vector_store %arg7[%c0_90, %c0_91], %82 {strides = array<i32>} : memref<64x128xf32, #tpu.memory_space<vmem>>, vector<64x128xf32>,
    %c2_i32_92 = arith.constant 2 : i32
    %84 = arith.addi %1, %c2_i32_92 : i32
    %c0_i32_93 = arith.constant 0 : i32
    %c0_i32_94 = arith.constant 0 : i32
    %c0_i32_95 = arith.constant 0 : i32
    %c0_i32_96 = arith.constant 0 : i32
    %85 = tpu.memref_slice %arg2[%c0_i32_93, %c0_i32_94, %c0_i32_95, %c0_i32_96] : memref<1x18x18x128xbf16, #tpu.memory_space<vmem>> -> memref<1x18x18x128xbf16, #tpu.memory_space<vmem>>
    %86 = tpu.memref_squeeze %85 : memref<1x18x18x128xbf16, #tpu.memory_space<vmem>> -> memref<18x18x128xbf16, #tpu.memory_space<vmem>>
    %87 = arith.index_cast %84 : i32 to index
    %c1_97 = arith.constant 1 : index
    %c0_98 = arith.constant 0 : index
    %88 = vector.load %86[%87, %c1_97, %c0_98] : memref<18x18x128xbf16, #tpu.memory_space<vmem>>, vector<4x16x128xbf16>
    %89 = vector.shape_cast %88 : vector<4x16x128xbf16> to vector<64x128xbf16>
    %c7 = arith.constant 7 : index
    %c0_99 = arith.constant 0 : index
    %c0_100 = arith.constant 0 : index
    %90 = vector.load %arg3[%c7, %c0_99, %c0_100] : memref<9x128x128xbf16, #tpu.memory_space<vmem>>, vector<1x128x128xbf16>
    %91 = vector.shape_cast %90 : vector<1x128x128xbf16> to vector<128x128xbf16>
    %cst_101 = arith.constant dense<0.000000e+00> : vector<64x128xf32>
    %92 = tpu.matmul %89, %91, %cst_101 {dimension_numbers = #tpu.dot_dimension_numbers<[1], [0], [0], [1], [0, 0, 1, 1], [], []>} : vector<64x128xbf16>, vector<128x128xbf16>, vector<64x128xf32> -> vector<64x128xf32>
    %c0_102 = arith.constant 0 : index
    %c0_103 = arith.constant 0 : index
    %93 = vector.load %arg7[%c0_102, %c0_103] : memref<64x128xf32, #tpu.memory_space<vmem>>, vector<64x128xf32>
    %94 = arith.addf %93, %92 : vector<64x128xf32>
    %c0_104 = arith.constant 0 : index
    %c0_105 = arith.constant 0 : index
    %95 = vector.load %arg7[%c0_104, %c0_105] : memref<64x128xf32, #tpu.memory_space<vmem>>, vector<64x128xf32>
    tpu.vector_store %arg7[%c0_104, %c0_105], %94 {strides = array<i32>} : memref<64x128xf32, #tpu.memory_space<vmem>>, vector<64x128xf32>,
    %c2_i32_106 = arith.constant 2 : i32
    %96 = arith.addi %1, %c2_i32_106 : i32
    %c0_i32_107 = arith.constant 0 : i32
    %c0_i32_108 = arith.constant 0 : i32
    %c0_i32_109 = arith.constant 0 : i32
    %c0_i32_110 = arith.constant 0 : i32
    %97 = tpu.memref_slice %arg2[%c0_i32_107, %c0_i32_108, %c0_i32_109, %c0_i32_110] : memref<1x18x18x128xbf16, #tpu.memory_space<vmem>> -> memref<1x18x18x128xbf16, #tpu.memory_space<vmem>>
    %98 = tpu.memref_squeeze %97 : memref<1x18x18x128xbf16, #tpu.memory_space<vmem>> -> memref<18x18x128xbf16, #tpu.memory_space<vmem>>
    %99 = arith.index_cast %96 : i32 to index
    %c2_111 = arith.constant 2 : index
    %c0_112 = arith.constant 0 : index
    %100 = vector.load %98[%99, %c2_111, %c0_112] : memref<18x18x128xbf16, #tpu.memory_space<vmem>>, vector<4x16x128xbf16>
    %101 = vector.shape_cast %100 : vector<4x16x128xbf16> to vector<64x128xbf16>
    %c8 = arith.constant 8 : index
    %c0_113 = arith.constant 0 : index
    %c0_114 = arith.constant 0 : index
    %102 = vector.load %arg3[%c8, %c0_113, %c0_114] : memref<9x128x128xbf16, #tpu.memory_space<vmem>>, vector<1x128x128xbf16>
    %103 = vector.shape_cast %102 : vector<1x128x128xbf16> to vector<128x128xbf16>
    %cst_115 = arith.constant dense<0.000000e+00> : vector<64x128xf32>
    %104 = tpu.matmul %101, %103, %cst_115 {dimension_numbers = #tpu.dot_dimension_numbers<[1], [0], [0], [1], [0, 0, 1, 1], [], []>} : vector<64x128xbf16>, vector<128x128xbf16>, vector<64x128xf32> -> vector<64x128xf32>
    %c0_116 = arith.constant 0 : index
    %c0_117 = arith.constant 0 : index
    %105 = vector.load %arg7[%c0_116, %c0_117] : memref<64x128xf32, #tpu.memory_space<vmem>>, vector<64x128xf32>
    %106 = arith.addf %105, %104 : vector<64x128xf32>
    %c0_118 = arith.constant 0 : index
    %c0_119 = arith.constant 0 : index
    %107 = vector.load %arg7[%c0_118, %c0_119] : memref<64x128xf32, #tpu.memory_space<vmem>>, vector<64x128xf32>
    tpu.vector_store %arg7[%c0_118, %c0_119], %106 {strides = array<i32>} : memref<64x128xf32, #tpu.memory_space<vmem>>, vector<64x128xf32>,
    %c0_120 = arith.constant 0 : index
    %c0_121 = arith.constant 0 : index
    %108 = vector.load %arg7[%c0_120, %c0_121] : memref<64x128xf32, #tpu.memory_space<vmem>>, vector<64x128xf32>
    %c0_122 = arith.constant 0 : index
    %c0_123 = arith.constant 0 : index
    %109 = vector.load %arg4[%c0_122, %c0_123] : memref<1x128xf32, #tpu.memory_space<vmem>>, vector<1x128xf32>
    %110 = vector.broadcast %109 : vector<1x128xf32> to vector<64x128xf32>
    %111 = arith.addf %108, %110 : vector<64x128xf32>
    %112 = vector.shape_cast %111 : vector<64x128xf32> to vector<4x16x128xf32>
    %113 = arith.truncf %112 : vector<4x16x128xf32> to vector<4x16x128xbf16>
    %c0_124 = arith.constant 0 : index
    %c0_125 = arith.constant 0 : index
    %c0_126 = arith.constant 0 : index
    %c0_127 = arith.constant 0 : index
    %114 = vector.load %arg5[%c0_124, %c0_125, %c0_126, %c0_127] : memref<1x4x16x128xbf16, #tpu.memory_space<vmem>>, vector<1x4x16x128xbf16>
    %115 = vector.shape_cast %114 : vector<1x4x16x128xbf16> to vector<4x16x128xbf16>
    %116 = vector.shape_cast %113 : vector<4x16x128xbf16> to vector<1x4x16x128xbf16>
    tpu.vector_store %arg5[%c0_124, %c0_125, %c0_126, %c0_127], %116 {strides = array<i32>} : memref<1x4x16x128xbf16, #tpu.memory_space<vmem>>, vector<1x4x16x128xbf16>,
    %cst_128 = arith.constant dense<0.000000e+00> : vector<128xf32>
    %117 = vector.multi_reduction <add>, %111, %cst_128 [0] : vector<64x128xf32> to vector<128xf32>
    %118 = vector.shape_cast %117 : vector<128xf32> to vector<1x128xf32>
    %119 = arith.mulf %111, %111 : vector<64x128xf32>
    %cst_129 = arith.constant dense<0.000000e+00> : vector<128xf32>
    %120 = vector.multi_reduction <add>, %119, %cst_129 [0] : vector<64x128xf32> to vector<128xf32>
    %121 = vector.shape_cast %120 : vector<128xf32> to vector<1x128xf32>
    %122 = tpu.concatenate %118, %121 in 0 : vector<1x128xf32>, vector<1x128xf32> -> vector<2x128xf32>
    %123 = vector.shape_cast %122 : vector<2x128xf32> to vector<1x1x2x128xf32>
    %c0_130 = arith.constant 0 : index
    %c0_131 = arith.constant 0 : index
    %c0_132 = arith.constant 0 : index
    %c0_133 = arith.constant 0 : index
    %124 = vector.load %arg6[%c0_130, %c0_131, %c0_132, %c0_133] : memref<1x1x2x128xf32, #tpu.memory_space<vmem>>, vector<1x1x2x128xf32>
    tpu.vector_store %arg6[%c0_130, %c0_131, %c0_132, %c0_133], %123 {strides = array<i32>} : memref<1x1x2x128xf32, #tpu.memory_space<vmem>>, vector<1x1x2x128xf32>,
    return
  }
  func.func @transform_0(%arg0: i32, %arg1: i32) -> (i32, i32, i32, i32) {
    %c0_i32 = arith.constant 0 : i32
    %c0_i32_0 = arith.constant 0 : i32
    %c0_i32_1 = arith.constant 0 : i32
    %c0_i32_2 = arith.constant 0 : i32
    return %arg0, %c0_i32, %c0_i32_0, %c0_i32_1 : i32, i32, i32, i32
  }
  func.func @transform_1(%arg0: i32, %arg1: i32) -> (i32, i32, i32) {
    %c0_i32 = arith.constant 0 : i32
    %c0_i32_0 = arith.constant 0 : i32
    %c0_i32_1 = arith.constant 0 : i32
    %c0_i32_2 = arith.constant 0 : i32
    return %c0_i32, %c0_i32_0, %c0_i32_1 : i32, i32, i32
  }
  func.func @transform_2(%arg0: i32, %arg1: i32) -> (i32, i32) {
    %c0_i32 = arith.constant 0 : i32
    %c0_i32_0 = arith.constant 0 : i32
    %c0_i32_1 = arith.constant 0 : i32
    return %c0_i32, %c0_i32_0 : i32, i32
  }
  func.func @transform_3(%arg0: i32, %arg1: i32) -> (i32, i32, i32, i32) {
    %c0_i32 = arith.constant 0 : i32
    %c0_i32_0 = arith.constant 0 : i32
    %c0_i32_1 = arith.constant 0 : i32
    return %arg0, %arg1, %c0_i32, %c0_i32_0 : i32, i32, i32, i32
  }
  func.func @transform_4(%arg0: i32, %arg1: i32) -> (i32, i32, i32, i32) {
    %c0_i32 = arith.constant 0 : i32
    %c0_i32_0 = arith.constant 0 : i32
    %c0_i32_1 = arith.constant 0 : i32
    return %arg0, %arg1, %c0_i32, %c0_i32_0 : i32, i32, i32, i32
  }
}

module attributes {stable_mosaic.version = 11 : i64} {
  func.func @_norm_act_proj_kernel(%arg0: i32, %arg1: i32, %arg2: memref<1x16x16x128xbf16, #tpu.memory_space<vmem>>, %arg3: memref<1x1x128xf32, #tpu.memory_space<vmem>>, %arg4: memref<1x1x128xf32, #tpu.memory_space<vmem>>, %arg5: memref<1x18x18x128xbf16, #tpu.memory_space<vmem>>, %arg6: memref<128x128xbf16, #tpu.memory_space<vmem>>, %arg7: memref<1x128xf32, #tpu.memory_space<vmem>>, %arg8: memref<1x16x16x128xf32, #tpu.memory_space<vmem>>) attributes {dimension_semantics = [#tpu.dimension_semantics<parallel>, #tpu.dimension_semantics<arbitrary>], iteration_bounds = array<i64: 2, 1>, scalar_prefetch = 0 : i64, scratch_operands = 0 : i64, tpu.core_type = #tpu.core_type<tc>, window_params = [{transform_indices = @transform_0, window_bounds = array<i64: 1, 16, 16, 128>}, {transform_indices = @transform_1, window_bounds = array<i64: 1, 1, 128>}, {transform_indices = @transform_2, window_bounds = array<i64: 1, 1, 128>}, {transform_indices = @transform_3, window_bounds = array<i64: 1, 18, 18, 128>}, {pipeline_mode = #tpu.pipeline_mode<synchronous>, transform_indices = @transform_4, window_bounds = array<i64: 128, 128>}, {pipeline_mode = #tpu.pipeline_mode<synchronous>, transform_indices = @transform_5, window_bounds = array<i64: 1, 128>}, {transform_indices = @transform_6, window_bounds = array<i64: 1, 16, 16, 128>}]} {
    %c16_i32 = arith.constant 16 : i32
    %0 = arith.muli %arg1, %c16_i32 : i32
    %1 = tpu.assume_multiple %0, 16 : i32
    %c0 = arith.constant 0 : index
    %c0_0 = arith.constant 0 : index
    %c0_1 = arith.constant 0 : index
    %c0_2 = arith.constant 0 : index
    %2 = vector.load %arg2[%c0, %c0_0, %c0_1, %c0_2] : memref<1x16x16x128xbf16, #tpu.memory_space<vmem>>, vector<1x16x16x128xbf16>
    %3 = vector.shape_cast %2 : vector<1x16x16x128xbf16> to vector<16x16x128xbf16>
    %4 = arith.extf %3 : vector<16x16x128xbf16> to vector<16x16x128xf32>
    %c0_3 = arith.constant 0 : index
    %c0_4 = arith.constant 0 : index
    %c0_5 = arith.constant 0 : index
    %5 = vector.load %arg3[%c0_3, %c0_4, %c0_5] : memref<1x1x128xf32, #tpu.memory_space<vmem>>, vector<1x1x128xf32>
    %6 = vector.shape_cast %5 : vector<1x1x128xf32> to vector<1x128xf32>
    %7 = vector.shape_cast %6 : vector<1x128xf32> to vector<1x1x128xf32>
    %8 = vector.broadcast %7 : vector<1x1x128xf32> to vector<16x16x128xf32>
    %9 = arith.mulf %4, %8 : vector<16x16x128xf32>
    %c0_6 = arith.constant 0 : index
    %c0_7 = arith.constant 0 : index
    %c0_8 = arith.constant 0 : index
    %10 = vector.load %arg4[%c0_6, %c0_7, %c0_8] : memref<1x1x128xf32, #tpu.memory_space<vmem>>, vector<1x1x128xf32>
    %11 = vector.shape_cast %10 : vector<1x1x128xf32> to vector<1x128xf32>
    %12 = vector.shape_cast %11 : vector<1x128xf32> to vector<1x1x128xf32>
    %13 = vector.broadcast %12 : vector<1x1x128xf32> to vector<16x16x128xf32>
    %14 = arith.addf %9, %13 : vector<16x16x128xf32>
    %15 = arith.negf %14 : vector<16x16x128xf32>
    %16 = math.exp %15 : vector<16x16x128xf32>
    %cst = arith.constant 1.000000e+00 : f32
    %17 = vector.broadcast %cst : f32 to vector<16x16x128xf32>
    %18 = arith.addf %17, %16 : vector<16x16x128xf32>
    %19 = arith.divf %17, %18 : vector<16x16x128xf32>
    %20 = arith.mulf %14, %19 : vector<16x16x128xf32>
    %c1_i32 = arith.constant 1 : i32
    %21 = arith.addi %1, %c1_i32 : i32
    %c0_i32 = arith.constant 0 : i32
    %c0_i32_9 = arith.constant 0 : i32
    %c0_i32_10 = arith.constant 0 : i32
    %c0_i32_11 = arith.constant 0 : i32
    %22 = tpu.memref_slice %arg5[%c0_i32, %c0_i32_9, %c0_i32_10, %c0_i32_11] : memref<1x18x18x128xbf16, #tpu.memory_space<vmem>> -> memref<1x18x18x128xbf16, #tpu.memory_space<vmem>>
    %23 = tpu.memref_squeeze %22 : memref<1x18x18x128xbf16, #tpu.memory_space<vmem>> -> memref<18x18x128xbf16, #tpu.memory_space<vmem>>
    %24 = arith.index_cast %21 : i32 to index
    %c1 = arith.constant 1 : index
    %c0_12 = arith.constant 0 : index
    %25 = vector.load %23[%24, %c1, %c0_12] : memref<18x18x128xbf16, #tpu.memory_space<vmem>>, vector<16x16x128xbf16>
    %26 = vector.shape_cast %25 : vector<16x16x128xbf16> to vector<256x128xbf16>
    %c0_13 = arith.constant 0 : index
    %c0_14 = arith.constant 0 : index
    %27 = vector.load %arg6[%c0_13, %c0_14] : memref<128x128xbf16, #tpu.memory_space<vmem>>, vector<128x128xbf16>
    %cst_15 = arith.constant dense<0.000000e+00> : vector<256x128xf32>
    %28 = tpu.matmul %26, %27, %cst_15 {dimension_numbers = #tpu.dot_dimension_numbers<[1], [0], [0], [1], [0, 0, 1, 1], [], []>} : vector<256x128xbf16>, vector<128x128xbf16>, vector<256x128xf32> -> vector<256x128xf32>
    %c0_16 = arith.constant 0 : index
    %c0_17 = arith.constant 0 : index
    %29 = vector.load %arg7[%c0_16, %c0_17] : memref<1x128xf32, #tpu.memory_space<vmem>>, vector<1x128xf32>
    %30 = vector.broadcast %29 : vector<1x128xf32> to vector<256x128xf32>
    %31 = arith.addf %28, %30 : vector<256x128xf32>
    %32 = vector.shape_cast %31 : vector<256x128xf32> to vector<16x16x128xf32>
    %33 = arith.addf %20, %32 : vector<16x16x128xf32>
    %c0_18 = arith.constant 0 : index
    %c0_19 = arith.constant 0 : index
    %c0_20 = arith.constant 0 : index
    %c0_21 = arith.constant 0 : index
    %34 = vector.load %arg8[%c0_18, %c0_19, %c0_20, %c0_21] : memref<1x16x16x128xf32, #tpu.memory_space<vmem>>, vector<1x16x16x128xf32>
    %35 = vector.shape_cast %34 : vector<1x16x16x128xf32> to vector<16x16x128xf32>
    %36 = vector.shape_cast %33 : vector<16x16x128xf32> to vector<1x16x16x128xf32>
    tpu.vector_store %arg8[%c0_18, %c0_19, %c0_20, %c0_21], %36 {strides = array<i32>} : memref<1x16x16x128xf32, #tpu.memory_space<vmem>>, vector<1x16x16x128xf32>,
    return
  }
  func.func @transform_0(%arg0: i32, %arg1: i32) -> (i32, i32, i32, i32) {
    %c0_i32 = arith.constant 0 : i32
    %c0_i32_0 = arith.constant 0 : i32
    %c0_i32_1 = arith.constant 0 : i32
    return %arg0, %arg1, %c0_i32, %c0_i32_0 : i32, i32, i32, i32
  }
  func.func @transform_1(%arg0: i32, %arg1: i32) -> (i32, i32, i32) {
    %c0_i32 = arith.constant 0 : i32
    %c0_i32_0 = arith.constant 0 : i32
    %c0_i32_1 = arith.constant 0 : i32
    return %arg0, %c0_i32, %c0_i32_0 : i32, i32, i32
  }
  func.func @transform_2(%arg0: i32, %arg1: i32) -> (i32, i32, i32) {
    %c0_i32 = arith.constant 0 : i32
    %c0_i32_0 = arith.constant 0 : i32
    %c0_i32_1 = arith.constant 0 : i32
    return %arg0, %c0_i32, %c0_i32_0 : i32, i32, i32
  }
  func.func @transform_3(%arg0: i32, %arg1: i32) -> (i32, i32, i32, i32) {
    %c0_i32 = arith.constant 0 : i32
    %c0_i32_0 = arith.constant 0 : i32
    %c0_i32_1 = arith.constant 0 : i32
    %c0_i32_2 = arith.constant 0 : i32
    return %arg0, %c0_i32, %c0_i32_0, %c0_i32_1 : i32, i32, i32, i32
  }
  func.func @transform_4(%arg0: i32, %arg1: i32) -> (i32, i32) {
    %c0_i32 = arith.constant 0 : i32
    %c0_i32_0 = arith.constant 0 : i32
    %c0_i32_1 = arith.constant 0 : i32
    return %c0_i32, %c0_i32_0 : i32, i32
  }
  func.func @transform_5(%arg0: i32, %arg1: i32) -> (i32, i32) {
    %c0_i32 = arith.constant 0 : i32
    %c0_i32_0 = arith.constant 0 : i32
    %c0_i32_1 = arith.constant 0 : i32
    return %c0_i32, %c0_i32_0 : i32, i32
  }
  func.func @transform_6(%arg0: i32, %arg1: i32) -> (i32, i32, i32, i32) {
    %c0_i32 = arith.constant 0 : i32
    %c0_i32_0 = arith.constant 0 : i32
    %c0_i32_1 = arith.constant 0 : i32
    return %arg0, %arg1, %c0_i32, %c0_i32_0 : i32, i32, i32, i32
  }
}

</mosaic_0001>

<llo_original>
// kernel: squeeze.4
$region0: #{squeeze.4}
  %s0 = inlined_call_operand.vmem [shape: f32[2,8], index: 0, kind: input, shape index: {}]
  %s1 = inlined_call_operand.vmem [shape: f32[2,4,2], index: 1, kind: output, shape index: {}]
  $region1: #{squeeze.4} parent=0
    #allocation0 [shape = 'u8[8192]{0}', space=vmem, size = 0x2000, scoped, tag = 'scoped mem for output reshape']
    #allocation1 [shape = 'u8[4096]{0}', space=vmem, size = 0x1000, scoped, tag = 'scoped mem for input reshape']
    %s3 = sshllo.u32 0, 2
    %v4 = vld [vmem:[%s0] sm:%s3]
    %5 = vst [vmem:[#allocation1] sm:%s3] %v4
    %v6 = vld [vmem:[#allocation1] sm:$0x3]
    %vm7 = vcmask 15360
    %8 = vst.msk [vmem:[#allocation0] ss:$8 sm:$0x3] %vm7, %v6
    %v9 = vld [vmem:[#allocation1] sm:$0x3]
    %10 = vrot.lane.b32.xlu0 %v9, 126
    %v11 = vpop.permute.xlu0 %10
    %vm12 = vcmask 15360
    %s13 = scalar_lea.vmem [#allocation0], 1
    %14 = vst.msk [vmem:[%s13] ss:$8 sm:$0x3] %vm12, %v11
    %v15 = vld [vmem:[#allocation1] sm:$0x3]
    %16 = vrot.lane.b32.xlu0 %v15, 124
    %v17 = vpop.permute.xlu0 %16
    %vm18 = vcmask 15360
    %s19 = scalar_lea.vmem [#allocation0], 2
    %20 = vst.msk [vmem:[%s19] ss:$8 sm:$0x3] %vm18, %v17
    %v21 = vld [vmem:[#allocation1] sm:$0x3]
    %22 = vrot.lane.b32.xlu0 %v21, 122
    %v23 = vpop.permute.xlu0 %22
    %vm24 = vcmask 15360
    %s25 = scalar_lea.vmem [#allocation0], 3
    %26 = vst.msk [vmem:[%s25] ss:$8 sm:$0x3] %vm24, %v23
    %s28 = sshllo.u32 0, 4
    %v30 = vld [vmem:[#allocation0] sm:%s28]
    %s31 = sshllo.u32 0, 4
    %32 = vst [vmem:[%s1] sm:%s31] %v30
    %s33 = scalar_lea.vmem [#allocation0], 8
    %v34 = vld [vmem:[%s33] sm:%s28]
    %s35 = sshllo.u32 0, 4
    %s36 = scalar_lea.vmem %s1, 4
    %37 = vst [vmem:[%s36] sm:%s35] %v34

// kernel: _lambda_.5
$region0: #{_lambda_.5}
  #allocation0 [shape = 'u32[]', space=smem, size = 0x4, offset = 0x4, fixed_abs, tag = 'smem constant byte address 0x4 - core index']
  #allocation1 [shape = 'u32[144,128]{1,0:T(1,128)}', space=vmem, size = 0x12000, scoped, tag = 'internal scratch']
  %s0 = inlined_call_operand.vmem [shape: bf16[2,16,16,128], index: 0, kind: input, shape index: {}]
  %s1 = inlined_call_operand.vmem [shape: f32[2,1,128], index: 1, kind: input, shape index: {}]
  %s2 = inlined_call_operand.vmem [shape: f32[2,1,128], index: 2, kind: input, shape index: {}]
  %s3 = inlined_call_operand.vmem [shape: bf16[2,16,16,128], index: 3, kind: output, shape index: {}]
  %s4 = sld [smem:[#allocation0]]
  $region45: #{_lambda_.5} parent=0
    _
  %s6 = ssub.s32 1, %s4
  %s7 = scalar_select 0, %s6, %s4
  loop: start=0, step=1, limit=4
  $region2: #{_lambda_.5} parent=0 // loop_pre_header
    _
  $region3: #{_lambda_.5} parent=0 // loop_header
    %s9 = sphi 0, %s13
    %p10 = scmp.ge.s32.totalorder %s9, 4
    %s16 = sphi 0, %s28
    %s17 = sphi 0, %s24
    %s18 = sphi 0, %s16
    %s19 = sphi 0, %s17
    %s20 = sphi 0, %s18
    %s21 = sphi 0, %s19
    %s33 = sphi 0, %s35
    %s36 = sphi 0, %s33
    %s37 = sphi 0, %s36
    %s53 = sphi 0, %s37
    %s59 = sphi 0, %s61
    %s62 = sphi 0, %s59
    %s63 = sphi 0, %s62
    %s79 = sphi 0, %s63
    %s85 = sphi 0, %s87
    %s88 = sphi 0, %s85
    %s89 = sphi 0, %s88
    %s105 = sphi 0, %s89
    %s113 = sphi 0, %s115
    %s116 = sphi 0, %s113
    %s117 = sphi 0, %s116
    %s133 = sphi 0, %s117
  $region4: #{_lambda_.5} parent=0 // loop_header_branch
    %12 = sbr.rel (%p10) target = $region8
  $region5: #{_lambda_.5} parent=0 // loop_body
    %s14 = ssub.s32 %s9, 1
    %s15 = ssub.s32 %s9, 2
    %s22 = sadd.s32 1, %s17
    %p23 = scmp.ge.s32.totalorder %s22, 1
    %s24 = scalar_select %p23, 0, %s22
    %s25 = sadd.s32 1, %s16
    %s26 = scalar_select %p23, %s25, %s16
    %p27 = scmp.ge.s32.totalorder %s26, 2
    %s28 = scalar_select %p27, 0, %s26
    %s29 = ssub.s32 %s16, %s28
    %s30 = ssub.s32 %s17, %s24
    %s31 = sor.u32 %s29, %s30
    %p32 = scmp.eq.s32.totalorder %s31, 0
    %s34 = sadd.s32 %s33, 1
    %s35 = scalar_select %p32, %s33, %s34
    %p38 = pneg %p32
    %p39 = scmp.eq.s32.totalorder %s9, 1
    %p40 = por %p38, %p39
    %p41 = scmp.ne.s32.totalorder %s33, %s36
    %p42 = scmp.eq.s32.totalorder %s9, 0
    %p43 = por %p41, %p42
    %p44 = scmp.ne.s32.totalorder %s33, %s36
    %p45 = scmp.eq.s32.totalorder %s14, 1
    %p46 = por %p44, %p45
    %p47 = scmp.ne.s32.totalorder %s36, %s37
    %p48 = scmp.eq.s32.totalorder %s14, 0
    %p49 = por %p47, %p48
    %p50 = scmp.ne.s32.totalorder %s36, %s37
    %p51 = scmp.eq.s32.totalorder %s15, 1
    %p52 = por %p50, %p51
    %p54 = scmp.ne.s32.totalorder %s37, %s53
    %p55 = scmp.eq.s32.totalorder %s15, 0
    %p56 = por %p54, %p55
    %s57 = ssub.s32 %s16, %s28
    %p58 = scmp.eq.s32.totalorder %s57, 0
    %s60 = sadd.s32 %s59, 1
    %s61 = scalar_select %p58, %s59, %s60
    %p64 = pneg %p58
    %p65 = scmp.eq.s32.totalorder %s9, 1
    %p66 = por %p64, %p65
    %p67 = scmp.ne.s32.totalorder %s59, %s62
    %p68 = scmp.eq.s32.totalorder %s9, 0
    %p69 = por %p67, %p68
    %p70 = scmp.ne.s32.totalorder %s59, %s62
    %p71 = scmp.eq.s32.totalorder %s14, 1
    %p72 = por %p70, %p71
    %p73 = scmp.ne.s32.totalorder %s62, %s63
    %p74 = scmp.eq.s32.totalorder %s14, 0
    %p75 = por %p73, %p74
    %p76 = scmp.ne.s32.totalorder %s62, %s63
    %p77 = scmp.eq.s32.totalorder %s15, 1
    %p78 = por %p76, %p77
    %p80 = scmp.ne.s32.totalorder %s63, %s79
    %p81 = scmp.eq.s32.totalorder %s15, 0
    %p82 = por %p80, %p81
    %s83 = ssub.s32 %s16, %s28
    %p84 = scmp.eq.s32.totalorder %s83, 0
    %s86 = sadd.s32 %s85, 1
    %s87 = scalar_select %p84, %s85, %s86
    %p90 = pneg %p84
    %p91 = scmp.eq.s32.totalorder %s9, 1
    %p92 = por %p90, %p91
    %p93 = scmp.ne.s32.totalorder %s85, %s88
    %p94 = scmp.eq.s32.totalorder %s9, 0
    %p95 = por %p93, %p94
    %p96 = scmp.ne.s32.totalorder %s85, %s88
    %p97 = scmp.eq.s32.totalorder %s14, 1
    %p98 = por %p96, %p97
    %p99 = scmp.ne.s32.totalorder %s88, %s89
    %p100 = scmp.eq.s32.totalorder %s14, 0
    %p101 = por %p99, %p100
    %p102 = scmp.ne.s32.totalorder %s88, %s89
    %p103 = scmp.eq.s32.totalorder %s15, 1
    %p104 = por %p102, %p103
    %p106 = scmp.ne.s32.totalorder %s89, %s105
    %p107 = scmp.eq.s32.totalorder %s15, 0
    %p108 = por %p106, %p107
    %s109 = ssub.s32 %s16, %s28
    %s110 = ssub.s32 %s17, %s24
    %s111 = sor.u32 %s109, %s110
    %p112 = scmp.eq.s32.totalorder %s111, 0
    %s114 = sadd.s32 %s113, 1
    %s115 = scalar_select %p112, %s113, %s114
    %p118 = pneg %p112
    %p119 = scmp.eq.s32.totalorder %s9, 1
    %p120 = por %p118, %p119
    %p121 = scmp.ne.s32.totalorder %s113, %s116
    %p122 = scmp.eq.s32.totalorder %s9, 0
    %p123 = por %p121, %p122
    %p124 = scmp.ne.s32.totalorder %s113, %s116
    %p125 = scmp.eq.s32.totalorder %s14, 1
    %p126 = por %p124, %p125
    %p127 = scmp.ne.s32.totalorder %s116, %s117
    %p128 = scmp.eq.s32.totalorder %s14, 0
    %p129 = por %p127, %p128
    %p130 = scmp.ne.s32.totalorder %s116, %s117
    %p131 = scmp.eq.s32.totalorder %s15, 1
    %p132 = por %p130, %p131
    %p134 = scmp.ne.s32.totalorder %s117, %s133
    %p135 = scmp.eq.s32.totalorder %s15, 0
    %p136 = por %p134, %p135
    %p137 = scmp.le.s32.totalorder 1, %s9
    %p138 = scmp.lt.s32.totalorder %s9, 3
    %p139 = pnand %p137, %p138
    %p140 = pneg %p139
    // Predicated region
    $region9: #{_lambda_.5} parent=5 // pred_check
      _
    $region10: #{_lambda_.5} parent=5 // pred_check_branch
      %142 = sbr.rel (%p139) target = $region12
    $region11: #{_lambda_.5} parent=5 // pred_region
      %s143 = ssub.s32 %s9, 1
    $region12: #{_lambda_.5} parent=5 // pred_fallthru
      _
    %p144 = scmp.lt.s32.totalorder %s9, 2
    // Predicated region
    $region13: #{_lambda_.5} parent=5 // pred_check
      %p145 = pneg %p144
    $region14: #{_lambda_.5} parent=5 // pred_check_branch
      %147 = sbr.rel (%p145) target = $region16
    $region15: #{_lambda_.5} parent=5 // pred_region
      // Predicated region
      $region17: #{_lambda_.5} parent=15 // pred_check
        %p148 = pneg %p43
      $region18: #{_lambda_.5} parent=15 // pred_check_branch
        %150 = sbr.rel (%p148) target = $region20
      $region19: #{_lambda_.5} parent=15 // pred_region
        %s151 = smul.u32 16, %s17
        %p152 = scmp.lt.s32.totalorder %s16, 1
        %s153 = scalar_select %p152, %s16, 1
        %p154 = scmp.lt.s32.totalorder %s151, 15
        %s155 = scalar_select %p154, %s151, 15
        %s156 = smul.addr %s155, 2
        %s157 = smul.addr %s153, 32
        %s158 = sadd.s32 %s156, %s157
        %s159 = smul.addr %s158, 4
        %s160 = scalar_lea.vmem %s0, %s159
        %s161 = smul.u32 16, %s17
      $region20: #{_lambda_.5} parent=15 // pred_fallthru
        _
      // Predicated region
      $region21: #{_lambda_.5} parent=15 // pred_check
        %p162 = pneg %p69
      $region22: #{_lambda_.5} parent=15 // pred_check_branch
        %164 = sbr.rel (%p162) target = $region24
      $region23: #{_lambda_.5} parent=15 // pred_region
        %p165 = scmp.lt.s32.totalorder %s16, 1
        %s166 = scalar_select %p165, %s16, 1
        %s167 = scalar_lea.vmem %s1, %s166
      $region24: #{_lambda_.5} parent=15 // pred_fallthru
        _
      // Predicated region
      $region25: #{_lambda_.5} parent=15 // pred_check
        %p168 = pneg %p95
      $region26: #{_lambda_.5} parent=15 // pred_check_branch
        %170 = sbr.rel (%p168) target = $region28
      $region27: #{_lambda_.5} parent=15 // pred_region
        %p171 = scmp.lt.s32.totalorder %s16, 1
        %s172 = scalar_select %p171, %s16, 1
        %s173 = scalar_lea.vmem %s2, %s172
      $region28: #{_lambda_.5} parent=15 // pred_fallthru
        _
    $region16: #{_lambda_.5} parent=5 // pred_fallthru
      _
    %p174 = scmp.le.s32.totalorder 1, %s9
    %p175 = scmp.lt.s32.totalorder %s9, 3
    %p176 = pnand %p174, %p175
    %p177 = pneg %p176
    // Predicated region
    $region29: #{_lambda_.5} parent=5 // pred_check
      _
    $region30: #{_lambda_.5} parent=5 // pred_check_branch
      %179 = sbr.rel (%p176) target = $region32
    $region31: #{_lambda_.5} parent=5 // pred_region
      %s180 = ssub.s32 %s9, 1
      %s181 = smul.u32 16, %s19
      %p182 = scmp.lt.s32.totalorder %s18, 1
      %s183 = scalar_select %p182, %s18, 1
      %p184 = scmp.lt.s32.totalorder %s181, 15
      %s185 = scalar_select %p184, %s181, 15
      %s186 = smul.addr %s185, 2
      %s187 = smul.addr %s183, 32
      %s188 = sadd.s32 %s186, %s187
      %s189 = smul.addr %s188, 4
      %s190 = scalar_lea.vmem %s0, %s189
      %p191 = pneg %p49
      %p192 = pneg %p46
      %p193 = scmp.lt.s32.totalorder %s18, 1
      %s194 = scalar_select %p193, %s18, 1
      %s195 = scalar_lea.vmem %s1, %s194
      %p196 = pneg %p75
      %p197 = pneg %p72
      %p198 = scmp.lt.s32.totalorder %s18, 1
      %s199 = scalar_select %p198, %s18, 1
      %s200 = scalar_lea.vmem %s2, %s199
      %p201 = pneg %p101
      %p202 = pneg %p98
      %p203 = pneg %p129
      %p204 = pneg %p126
      %s205 = smul.u32 16, %s19
      %p206 = scmp.lt.s32.totalorder %s18, 1
      %s207 = scalar_select %p206, %s18, 1
      %p208 = scmp.lt.s32.totalorder %s205, 15
      %s209 = scalar_select %p208, %s205, 15
      %s210 = smul.addr %s209, 2
      %s211 = smul.addr %s207, 32
      %s212 = sadd.s32 %s210, %s211
      %s213 = smul.addr %s212, 4
      %s214 = scalar_lea.vmem %s3, %s213
      %s215 = smul.u32 16, %s19
      %p216 = scmp.lt.s32.totalorder %s18, 1
      %s217 = scalar_select %p216, %s18, 1
      %p218 = scmp.lt.s32.totalorder %s215, 15
      %s219 = scalar_select %p218, %s215, 15
      %s220 = smul.addr %s219, 2
      %s221 = smul.addr %s217, 32
      %s222 = sadd.s32 %s220, %s221
      %s223 = smul.addr %s222, 4
      %s224 = scalar_lea.vmem %s0, %s223
      %s225 = smul.u32 16, %s19
      %p226 = scmp.lt.s32.totalorder %s18, 1
      %s227 = scalar_select %p226, %s18, 1
      %s228 = scalar_lea.vmem %s1, %s227
      %p229 = scmp.lt.s32.totalorder %s18, 1
      %s230 = scalar_select %p229, %s18, 1
      %s231 = scalar_lea.vmem %s2, %s230
      %s232 = smul.u32 16, %s19
      %p233 = scmp.lt.s32.totalorder %s18, 1
      %s234 = scalar_select %p233, %s18, 1
      %p235 = scmp.lt.s32.totalorder %s232, 15
      %s236 = scalar_select %p235, %s232, 15
      %s237 = smul.addr %s236, 2
      %s238 = smul.addr %s234, 32
      %s239 = sadd.s32 %s237, %s238
      %s240 = smul.addr %s239, 4
      %s241 = scalar_lea.vmem %s3, %s240
      %s242 = smul.u32 16, %s19
      %v243 = vld [vmem:[%s224] sm:$0xf]
      %v244 = vld [vmem:[%s224 + $0x4] sm:$0xf]
      %v245 = vld [vmem:[%s224 + $0x8] sm:$0xf]
      %v246 = vld [vmem:[%s224 + $0xc] sm:$0xf]
      %v247 = vld [vmem:[%s224 + $0x10] sm:$0xf]
      %v248 = vld [vmem:[%s224 + $0x14] sm:$0xf]
      %v249 = vld [vmem:[%s224 + $0x18] sm:$0xf]
      %v250 = vld [vmem:[%s224 + $0x1c] sm:$0xf]
      %v251 = vld [vmem:[%s224 + $0x20] sm:$0xf]
      %v252 = vld [vmem:[%s224 + $0x24] sm:$0xf]
      %v253 = vld [vmem:[%s224 + $0x28] sm:$0xf]
      %v254 = vld [vmem:[%s224 + $0x2c] sm:$0xf]
      %v255 = vld [vmem:[%s224 + $0x30] sm:$0xf]
      %v256 = vld [vmem:[%s224 + $0x34] sm:$0xf]
      %v257 = vld [vmem:[%s224 + $0x38] sm:$0xf]
      %v258 = vld [vmem:[%s224 + $0x3c] sm:$0xf]
      %v259 = vld [vmem:[%s224 + $0x40] sm:$0xf]
      %v260 = vld [vmem:[%s224 + $0x44] sm:$0xf]
      %v261 = vld [vmem:[%s224 + $0x48] sm:$0xf]
      %v262 = vld [vmem:[%s224 + $0x4c] sm:$0xf]
      %v263 = vld [vmem:[%s224 + $0x50] sm:$0xf]
      %v264 = vld [vmem:[%s224 + $0x54] sm:$0xf]
      %v265 = vld [vmem:[%s224 + $0x58] sm:$0xf]
      %v266 = vld [vmem:[%s224 + $0x5c] sm:$0xf]
      %v267 = vld [vmem:[%s224 + $0x60] sm:$0xf]
      %v268 = vld [vmem:[%s224 + $0x64] sm:$0xf]
      %v269 = vld [vmem:[%s224 + $0x68] sm:$0xf]
      %v270 = vld [vmem:[%s224 + $0x6c] sm:$0xf]
      %v271 = vld [vmem:[%s224 + $0x70] sm:$0xf]
      %v272 = vld [vmem:[%s224 + $0x74] sm:$0xf]
      %v273 = vld [vmem:[%s224 + $0x78] sm:$0xf]
      %v274 = vld [vmem:[%s224 + $0x7c] sm:$0xf]
      %v275 = vunpack.c.l.bf16 %v243
      %v276 = vunpack.c.l.bf16 %v244
      %v277 = vunpack.c.l.bf16 %v245
      %v278 = vunpack.c.l.bf16 %v246
      %v279 = vunpack.c.l.bf16 %v247
      %v280 = vunpack.c.l.bf16 %v248
      %v281 = vunpack.c.l.bf16 %v249
      %v282 = vunpack.c.l.bf16 %v250
      %v283 = vunpack.c.l.bf16 %v251
      %v284 = vunpack.c.l.bf16 %v252
      %v285 = vunpack.c.l.bf16 %v253
      %v286 = vunpack.c.l.bf16 %v254
      %v287 = vunpack.c.l.bf16 %v255
      %v288 = vunpack.c.l.bf16 %v256
      %v289 = vunpack.c.l.bf16 %v257
      %v290 = vunpack.c.l.bf16 %v258
      %v291 = vunpack.c.l.bf16 %v259
      %v292 = vunpack.c.l.bf16 %v260
      %v293 = vunpack.c.l.bf16 %v261
      %v294 = vunpack.c.l.bf16 %v262
      %v295 = vunpack.c.l.bf16 %v263
      %v296 = vunpack.c.l.bf16 %v264
      %v297 = vunpack.c.l.bf16 %v265
      %v298 = vunpack.c.l.bf16 %v266
      %v299 = vunpack.c.l.bf16 %v267
      %v300 = vunpack.c.l.bf16 %v268
      %v301 = vunpack.c.l.bf16 %v269
      %v302 = vunpack.c.l.bf16 %v270
      %v303 = vunpack.c.l.bf16 %v271
      %v304 = vunpack.c.l.bf16 %v272
      %v305 = vunpack.c.l.bf16 %v273
      %v306 = vunpack.c.l.bf16 %v274
      %v307 = vld [vmem:[%s228] sm:$0x1]
      %v309 = vlaneseq
      %v310 = vshrl.u32 %v309, 7
      %v311 = vsub.s32 0, %v310
      %v312 = vrot.slane %v307, %v311
      %v314 = vmul.f32 %v275, %v312
      %v315 = vmul.f32 %v276, %v312
      %v316 = vmul.f32 %v277, %v312
      %v317 = vmul.f32 %v278, %v312
      %v318 = vmul.f32 %v279, %v312
      %v319 = vmul.f32 %v280, %v312
      %v320 = vmul.f32 %v281, %v312
      %v321 = vmul.f32 %v282, %v312
      %v322 = vmul.f32 %v283, %v312
      %v323 = vmul.f32 %v284, %v312
      %v324 = vmul.f32 %v285, %v312
      %v325 = vmul.f32 %v286, %v312
      %v326 = vmul.f32 %v287, %v312
      %v327 = vmul.f32 %v288, %v312
      %v328 = vmul.f32 %v289, %v312
      %v329 = vmul.f32 %v290, %v312
      %v330 = vmul.f32 %v291, %v312
      %v331 = vmul.f32 %v292, %v312
      %v332 = vmul.f32 %v293, %v312
      %v333 = vmul.f32 %v294, %v312
      %v334 = vmul.f32 %v295, %v312
      %v335 = vmul.f32 %v296, %v312
      %v336 = vmul.f32 %v297, %v312
      %v337 = vmul.f32 %v298, %v312
      %v338 = vmul.f32 %v299, %v312
      %v339 = vmul.f32 %v300, %v312
      %v340 = vmul.f32 %v301, %v312
      %v341 = vmul.f32 %v302, %v312
      %v342 = vmul.f32 %v303, %v312
      %v343 = vmul.f32 %v304, %v312
      %v344 = vmul.f32 %v305, %v312
      %v345 = vmul.f32 %v306, %v312
      %v346 = vld [vmem:[%s231] sm:$0x1]
      %v348 = vlaneseq
      %v349 = vshrl.u32 %v348, 7
      %v350 = vsub.s32 0, %v349
      %v351 = vrot.slane %v346, %v350
      %v353 = vadd.f32 %v314, %v351
      %v354 = vadd.f32 %v315, %v351
      %v355 = vadd.f32 %v316, %v351
      %v356 = vadd.f32 %v317, %v351
      %v357 = vadd.f32 %v318, %v351
      %v358 = vadd.f32 %v319, %v351
      %v359 = vadd.f32 %v320, %v351
      %v360 = vadd.f32 %v321, %v351
      %v361 = vadd.f32 %v322, %v351
      %v362 = vadd.f32 %v323, %v351
      %v363 = vadd.f32 %v324, %v351
      %v364 = vadd.f32 %v325, %v351
      %v365 = vadd.f32 %v326, %v351
      %v366 = vadd.f32 %v327, %v351
      %v367 = vadd.f32 %v328, %v351
      %v368 = vadd.f32 %v329, %v351
      %v369 = vadd.f32 %v330, %v351
      %v370 = vadd.f32 %v331, %v351
      %v371 = vadd.f32 %v332, %v351
      %v372 = vadd.f32 %v333, %v351
      %v373 = vadd.f32 %v334, %v351
      %v374 = vadd.f32 %v335, %v351
      %v375 = vadd.f32 %v336, %v351
      %v376 = vadd.f32 %v337, %v351
      %v377 = vadd.f32 %v338, %v351
      %v378 = vadd.f32 %v339, %v351
      %v379 = vadd.f32 %v340, %v351
      %v380 = vadd.f32 %v341, %v351
      %v381 = vadd.f32 %v342, %v351
      %v382 = vadd.f32 %v343, %v351
      %v383 = vadd.f32 %v344, %v351
      %v384 = vadd.f32 %v345, %v351
      %v385 = vxor.u32 %v353, 2147483648
      %v386 = vxor.u32 %v354, 2147483648
      %v387 = vxor.u32 %v355, 2147483648
      %v388 = vxor.u32 %v356, 2147483648
      %v389 = vxor.u32 %v357, 2147483648
      %v390 = vxor.u32 %v358, 2147483648
      %v391 = vxor.u32 %v359, 2147483648
      %v392 = vxor.u32 %v360, 2147483648
      %v393 = vxor.u32 %v361, 2147483648
      %v394 = vxor.u32 %v362, 2147483648
      %v395 = vxor.u32 %v363, 2147483648
      %v396 = vxor.u32 %v364, 2147483648
      %v397 = vxor.u32 %v365, 2147483648
      %v398 = vxor.u32 %v366, 2147483648
      %v399 = vxor.u32 %v367, 2147483648
      %v400 = vxor.u32 %v368, 2147483648
      %v401 = vxor.u32 %v369, 2147483648
      %v402 = vxor.u32 %v370, 2147483648
      %v403 = vxor.u32 %v371, 2147483648
      %v404 = vxor.u32 %v372, 2147483648
      %v405 = vxor.u32 %v373, 2147483648
      %v406 = vxor.u32 %v374, 2147483648
      %v407 = vxor.u32 %v375, 2147483648
      %v408 = vxor.u32 %v376, 2147483648
      %v409 = vxor.u32 %v377, 2147483648
      %v410 = vxor.u32 %v378, 2147483648
      %v411 = vxor.u32 %v379, 2147483648
      %v412 = vxor.u32 %v380, 2147483648
      %v413 = vxor.u32 %v381, 2147483648
      %v414 = vxor.u32 %v382, 2147483648
      %v415 = vxor.u32 %v383, 2147483648
      %v416 = vxor.u32 %v384, 2147483648
      %v417 = vmul.f32 %v385, 1.442695
      %v418 = vpow.pop %v417
      %v419 = vmul.f32 %v386, 1.442695
      %v420 = vpow.pop %v419
      %v421 = vmul.f32 %v387, 1.442695
      %v422 = vpow.pop %v421
      %v423 = vmul.f32 %v388, 1.442695
      %v424 = vpow.pop %v423
      %v425 = vmul.f32 %v389, 1.442695
      %v426 = vpow.pop %v425
      %v427 = vmul.f32 %v390, 1.442695
      %v428 = vpow.pop %v427
      %v429 = vmul.f32 %v391, 1.442695
      %v430 = vpow.pop %v429
      %v431 = vmul.f32 %v392, 1.442695
      %v432 = vpow.pop %v431
      %v433 = vmul.f32 %v393, 1.442695
      %v434 = vpow.pop %v433
      %v435 = vmul.f32 %v394, 1.442695
      %v436 = vpow.pop %v435
      %v437 = vmul.f32 %v395, 1.442695
      %v438 = vpow.pop %v437
      %v439 = vmul.f32 %v396, 1.442695
      %v440 = vpow.pop %v439
      %v441 = vmul.f32 %v397, 1.442695
      %v442 = vpow.pop %v441
      %v443 = vmul.f32 %v398, 1.442695
      %v444 = vpow.pop %v443
      %v445 = vmul.f32 %v399, 1.442695
      %v446 = vpow.pop %v445
      %v447 = vmul.f32 %v400, 1.442695
      %v448 = vpow.pop %v447
      %v449 = vmul.f32 %v401, 1.442695
      %v450 = vpow.pop %v449
      %v451 = vmul.f32 %v402, 1.442695
      %v452 = vpow.pop %v451
      %v453 = vmul.f32 %v403, 1.442695
      %v454 = vpow.pop %v453
      %v455 = vmul.f32 %v404, 1.442695
      %v456 = vpow.pop %v455
      %v457 = vmul.f32 %v405, 1.442695
      %v458 = vpow.pop %v457
      %v459 = vmul.f32 %v406, 1.442695
      %v460 = vpow.pop %v459
      %v461 = vmul.f32 %v407, 1.442695
      %v462 = vpow.pop %v461
      %v463 = vmul.f32 %v408, 1.442695
      %v464 = vpow.pop %v463
      %v465 = vmul.f32 %v409, 1.442695
      %v466 = vpow.pop %v465
      %v467 = vmul.f32 %v410, 1.442695
      %v468 = vpow.pop %v467
      %v469 = vmul.f32 %v411, 1.442695
      %v470 = vpow.pop %v469
      %v471 = vmul.f32 %v412, 1.442695
      %v472 = vpow.pop %v471
      %v473 = vmul.f32 %v413, 1.442695
      %v474 = vpow.pop %v473
      %v475 = vmul.f32 %v414, 1.442695
      %v476 = vpow.pop %v475
      %v477 = vmul.f32 %v415, 1.442695
      %v478 = vpow.pop %v477
      %v479 = vmul.f32 %v416, 1.442695
      %v480 = vpow.pop %v479
      %v481 = vadd.f32 %v418, 1.0
      %v482 = vadd.f32 %v420, 1.0
      %v483 = vadd.f32 %v422, 1.0
      %v484 = vadd.f32 %v424, 1.0
      %v485 = vadd.f32 %v426, 1.0
      %v486 = vadd.f32 %v428, 1.0
      %v487 = vadd.f32 %v430, 1.0
      %v488 = vadd.f32 %v432, 1.0
      %v489 = vadd.f32 %v434, 1.0
      %v490 = vadd.f32 %v436, 1.0
      %v491 = vadd.f32 %v438, 1.0
      %v492 = vadd.f32 %v440, 1.0
      %v493 = vadd.f32 %v442, 1.0
      %v494 = vadd.f32 %v444, 1.0
      %v495 = vadd.f32 %v446, 1.0
      %v496 = vadd.f32 %v448, 1.0
      %v497 = vadd.f32 %v450, 1.0
      %v498 = vadd.f32 %v452, 1.0
      %v499 = vadd.f32 %v454, 1.0
      %v500 = vadd.f32 %v456, 1.0
      %v501 = vadd.f32 %v458, 1.0
      %v502 = vadd.f32 %v460, 1.0
      %v503 = vadd.f32 %v462, 1.0
      %v504 = vadd.f32 %v464, 1.0
      %v505 = vadd.f32 %v466, 1.0
      %v506 = vadd.f32 %v468, 1.0
      %v507 = vadd.f32 %v470, 1.0
      %v508 = vadd.f32 %v472, 1.0
      %v509 = vadd.f32 %v474, 1.0
      %v510 = vadd.f32 %v476, 1.0
      %v511 = vadd.f32 %v478, 1.0
      %v512 = vadd.f32 %v480, 1.0
      %v513 = vrcp.pop %v481
      %v514 = vmul.f32 1.0, %v513
      %v515 = vrcp.pop %v482
      %v516 = vmul.f32 1.0, %v515
      %v517 = vrcp.pop %v483
      %v518 = vmul.f32 1.0, %v517
      %v519 = vrcp.pop %v484
      %v520 = vmul.f32 1.0, %v519
      %v521 = vrcp.pop %v485
      %v522 = vmul.f32 1.0, %v521
      %v523 = vrcp.pop %v486
      %v524 = vmul.f32 1.0, %v523
      %v525 = vrcp.pop %v487
      %v526 = vmul.f32 1.0, %v525
      %v527 = vrcp.pop %v488
      %v528 = vmul.f32 1.0, %v527
      %v529 = vrcp.pop %v489
      %v530 = vmul.f32 1.0, %v529
      %v531 = vrcp.pop %v490
      %v532 = vmul.f32 1.0, %v531
      %v533 = vrcp.pop %v491
      %v534 = vmul.f32 1.0, %v533
      %v535 = vrcp.pop %v492
      %v536 = vmul.f32 1.0, %v535
      %v537 = vrcp.pop %v493
      %v538 = vmul.f32 1.0, %v537
      %v539 = vrcp.pop %v494
      %v540 = vmul.f32 1.0, %v539
      %v541 = vrcp.pop %v495
      %v542 = vmul.f32 1.0, %v541
      %v543 = vrcp.pop %v496
      %v544 = vmul.f32 1.0, %v543
      %v545 = vrcp.pop %v497
      %v546 = vmul.f32 1.0, %v545
      %v547 = vrcp.pop %v498
      %v548 = vmul.f32 1.0, %v547
      %v549 = vrcp.pop %v499
      %v550 = vmul.f32 1.0, %v549
      %v551 = vrcp.pop %v500
      %v552 = vmul.f32 1.0, %v551
      %v553 = vrcp.pop %v501
      %v554 = vmul.f32 1.0, %v553
      %v555 = vrcp.pop %v502
      %v556 = vmul.f32 1.0, %v555
      %v557 = vrcp.pop %v503
      %v558 = vmul.f32 1.0, %v557
      %v559 = vrcp.pop %v504
      %v560 = vmul.f32 1.0, %v559
      %v561 = vrcp.pop %v505
      %v562 = vmul.f32 1.0, %v561
      %v563 = vrcp.pop %v506
      %v564 = vmul.f32 1.0, %v563
      %v565 = vrcp.pop %v507
      %v566 = vmul.f32 1.0, %v565
      %v567 = vrcp.pop %v508
      %v568 = vmul.f32 1.0, %v567
      %v569 = vrcp.pop %v509
      %v570 = vmul.f32 1.0, %v569
      %v571 = vrcp.pop %v510
      %v572 = vmul.f32 1.0, %v571
      %v573 = vrcp.pop %v511
      %v574 = vmul.f32 1.0, %v573
      %v575 = vrcp.pop %v512
      %v576 = vmul.f32 1.0, %v575
      %v577 = vmul.f32 %v353, %v514
      %v578 = vmul.f32 %v354, %v516
      %v579 = vmul.f32 %v355, %v518
      %v580 = vmul.f32 %v356, %v520
      %v581 = vmul.f32 %v357, %v522
      %v582 = vmul.f32 %v358, %v524
      %v583 = vmul.f32 %v359, %v526
      %v584 = vmul.f32 %v360, %v528
      %v585 = vmul.f32 %v361, %v530
      %v586 = vmul.f32 %v362, %v532
      %v587 = vmul.f32 %v363, %v534
      %v588 = vmul.f32 %v364, %v536
      %v589 = vmul.f32 %v365, %v538
      %v590 = vmul.f32 %v366, %v540
      %v591 = vmul.f32 %v367, %v542
      %v592 = vmul.f32 %v368, %v544
      %v593 = vmul.f32 %v369, %v546
      %v594 = vmul.f32 %v370, %v548
      %v595 = vmul.f32 %v371, %v550
      %v596 = vmul.f32 %v372, %v552
      %v597 = vmul.f32 %v373, %v554
      %v598 = vmul.f32 %v374, %v556
      %v599 = vmul.f32 %v375, %v558
      %v600 = vmul.f32 %v376, %v560
      %v601 = vmul.f32 %v377, %v562
      %v602 = vmul.f32 %v378, %v564
      %v603 = vmul.f32 %v379, %v566
      %v604 = vmul.f32 %v380, %v568
      %v605 = vmul.f32 %v381, %v570
      %v606 = vmul.f32 %v382, %v572
      %v607 = vmul.f32 %v383, %v574
      %v608 = vmul.f32 %v384, %v576
      %v609 = vpack.c.bf16 %v578, %v577
      %v610 = vpack.c.bf16 %v580, %v579
      %v611 = vpack.c.bf16 %v582, %v581
      %v612 = vpack.c.bf16 %v584, %v583
      %v613 = vpack.c.bf16 %v586, %v585
      %v614 = vpack.c.bf16 %v588, %v587
      %v615 = vpack.c.bf16 %v590, %v589
      %v616 = vpack.c.bf16 %v592, %v591
      %v617 = vpack.c.bf16 %v594, %v593
      %v618 = vpack.c.bf16 %v596, %v595
      %v619 = vpack.c.bf16 %v598, %v597
      %v620 = vpack.c.bf16 %v600, %v599
      %v621 = vpack.c.bf16 %v602, %v601
      %v622 = vpack.c.bf16 %v604, %v603
      %v623 = vpack.c.bf16 %v606, %v605
      %v624 = vpack.c.bf16 %v608, %v607
      %v641 = vunpack.c.l.b16 %v609
      %v642 = vunpack.c.h.b16 %v609
      %v643 = vunpack.c.l.b16 %v610
      %v644 = vunpack.c.h.b16 %v610
      %v645 = vunpack.c.l.b16 %v611
      %v646 = vunpack.c.h.b16 %v611
      %v647 = vunpack.c.l.b16 %v612
      %v648 = vunpack.c.h.b16 %v612
      %v649 = vunpack.c.l.b16 %v613
      %v650 = vunpack.c.h.b16 %v613
      %v651 = vunpack.c.l.b16 %v614
      %v652 = vunpack.c.h.b16 %v614
      %v653 = vunpack.c.l.b16 %v615
      %v654 = vunpack.c.h.b16 %v615
      %v655 = vunpack.c.l.b16 %v616
      %v656 = vunpack.c.h.b16 %v616
      %v657 = vunpack.c.l.b16 %v617
      %v658 = vunpack.c.h.b16 %v617
      %v659 = vunpack.c.l.b16 %v618
      %v660 = vunpack.c.h.b16 %v618
      %v661 = vunpack.c.l.b16 %v619
      %v662 = vunpack.c.h.b16 %v619
      %v663 = vunpack.c.l.b16 %v620
      %v664 = vunpack.c.h.b16 %v620
      %v665 = vunpack.c.l.b16 %v621
      %v666 = vunpack.c.h.b16 %v621
      %v667 = vunpack.c.l.b16 %v622
      %v668 = vunpack.c.h.b16 %v622
      %v669 = vunpack.c.l.b16 %v623
      %v670 = vunpack.c.h.b16 %v623
      %v671 = vunpack.c.l.b16 %v624
      %v672 = vunpack.c.h.b16 %v624
      %v673 = vpack.c.b16 %v641, %v641
      %v674 = vpack.c.b16 %v642, %v642
      %v675 = vpack.c.b16 %v643, %v643
      %v676 = vpack.c.b16 %v644, %v644
      %v677 = vpack.c.b16 %v645, %v645
      %v678 = vpack.c.b16 %v646, %v646
      %v679 = vpack.c.b16 %v647, %v647
      %v680 = vpack.c.b16 %v648, %v648
      %v681 = vpack.c.b16 %v649, %v649
      %v682 = vpack.c.b16 %v650, %v650
      %v683 = vpack.c.b16 %v651, %v651
      %v684 = vpack.c.b16 %v652, %v652
      %v685 = vpack.c.b16 %v653, %v653
      %v686 = vpack.c.b16 %v654, %v654
      %v687 = vpack.c.b16 %v655, %v655
      %v688 = vpack.c.b16 %v656, %v656
      %v689 = vpack.c.b16 %v657, %v657
      %v690 = vpack.c.b16 %v658, %v658
      %v691 = vpack.c.b16 %v659, %v659
      %v692 = vpack.c.b16 %v660, %v660
      %v693 = vpack.c.b16 %v661, %v661
      %v694 = vpack.c.b16 %v662, %v662
      %v695 = vpack.c.b16 %v663, %v663
      %v696 = vpack.c.b16 %v664, %v664
      %v697 = vpack.c.b16 %v665, %v665
      %v698 = vpack.c.b16 %v666, %v666
      %v699 = vpack.c.b16 %v667, %v667
      %v700 = vpack.c.b16 %v668, %v668
      %v701 = vpack.c.b16 %v669, %v669
      %v702 = vpack.c.b16 %v670, %v670
      %v703 = vpack.c.b16 %v671, %v671
      %v704 = vpack.c.b16 %v672, %v672
      %737 = vst [vmem:[%s241] sm:$0xf] %v673
      %738 = vst [vmem:[%s241 + $0x4] sm:$0xf] %v674
      %739 = vst [vmem:[%s241 + $0x8] sm:$0xf] %v675
      %740 = vst [vmem:[%s241 + $0xc] sm:$0xf] %v676
      %741 = vst [vmem:[%s241 + $0x10] sm:$0xf] %v677
      %742 = vst [vmem:[%s241 + $0x14] sm:$0xf] %v678
      %743 = vst [vmem:[%s241 + $0x18] sm:$0xf] %v679
      %744 = vst [vmem:[%s241 + $0x1c] sm:$0xf] %v680
      %745 = vst [vmem:[%s241 + $0x20] sm:$0xf] %v681
      %746 = vst [vmem:[%s241 + $0x24] sm:$0xf] %v682
      %747 = vst [vmem:[%s241 + $0x28] sm:$0xf] %v683
      %748 = vst [vmem:[%s241 + $0x2c] sm:$0xf] %v684
      %749 = vst [vmem:[%s241 + $0x30] sm:$0xf] %v685
      %750 = vst [vmem:[%s241 + $0x34] sm:$0xf] %v686
      %751 = vst [vmem:[%s241 + $0x38] sm:$0xf] %v687
      %752 = vst [vmem:[%s241 + $0x3c] sm:$0xf] %v688
      %753 = vst [vmem:[%s241 + $0x40] sm:$0xf] %v689
      %754 = vst [vmem:[%s241 + $0x44] sm:$0xf] %v690
      %755 = vst [vmem:[%s241 + $0x48] sm:$0xf] %v691
      %756 = vst [vmem:[%s241 + $0x4c] sm:$0xf] %v692
      %757 = vst [vmem:[%s241 + $0x50] sm:$0xf] %v693
      %758 = vst [vmem:[%s241 + $0x54] sm:$0xf] %v694
      %759 = vst [vmem:[%s241 + $0x58] sm:$0xf] %v695
      %760 = vst [vmem:[%s241 + $0x5c] sm:$0xf] %v696
      %761 = vst [vmem:[%s241 + $0x60] sm:$0xf] %v697
      %762 = vst [vmem:[%s241 + $0x64] sm:$0xf] %v698
      %763 = vst [vmem:[%s241 + $0x68] sm:$0xf] %v699
      %764 = vst [vmem:[%s241 + $0x6c] sm:$0xf] %v700
      %765 = vst [vmem:[%s241 + $0x70] sm:$0xf] %v701
      %766 = vst [vmem:[%s241 + $0x74] sm:$0xf] %v702
      %767 = vst [vmem:[%s241 + $0x78] sm:$0xf] %v703
      %768 = vst [vmem:[%s241 + $0x7c] sm:$0xf] %v704
      %s769 = smul.u32 16, %s19
      %p770 = scmp.lt.s32.totalorder %s18, 1
      %s771 = scalar_select %p770, %s18, 1
      %p772 = scmp.lt.s32.totalorder %s769, 15
      %s773 = scalar_select %p772, %s769, 15
      %s774 = smul.addr %s773, 2
      %s775 = smul.addr %s771, 32
      %s776 = sadd.s32 %s774, %s775
      %s777 = smul.addr %s776, 4
      %s778 = scalar_lea.vmem %s3, %s777
      // Predicated region
      $region33: #{_lambda_.5} parent=31 // pred_check
        %p779 = pneg %p126
      $region34: #{_lambda_.5} parent=31 // pred_check_branch
        %781 = sbr.rel (%p779) target = $region36
      $region35: #{_lambda_.5} parent=31 // pred_region
        %s782 = smul.u32 16, %s19
      $region36: #{_lambda_.5} parent=31 // pred_fallthru
        _
    $region32: #{_lambda_.5} parent=5 // pred_fallthru
      _
    %p783 = scmp.le.s32.totalorder 2, %s9
    // Predicated region
    $region37: #{_lambda_.5} parent=5 // pred_check
      %p784 = pneg %p783
    $region38: #{_lambda_.5} parent=5 // pred_check_branch
      %786 = sbr.rel (%p784) target = $region40
    $region39: #{_lambda_.5} parent=5 // pred_region
      %s787 = ssub.s32 %s9, 2
      // Predicated region
      $region41: #{_lambda_.5} parent=39 // pred_check
        %p788 = pneg %p132
      $region42: #{_lambda_.5} parent=39 // pred_check_branch
        %790 = sbr.rel (%p788) target = $region44
      $region43: #{_lambda_.5} parent=39 // pred_region
        %s791 = smul.u32 16, %s21
        %p792 = scmp.lt.s32.totalorder %s20, 1
        %s793 = scalar_select %p792, %s20, 1
        %p794 = scmp.lt.s32.totalorder %s791, 15
        %s795 = scalar_select %p794, %s791, 15
        %s796 = smul.addr %s795, 2
        %s797 = smul.addr %s793, 32
        %s798 = sadd.s32 %s796, %s797
        %s799 = smul.addr %s798, 4
        %s800 = scalar_lea.vmem %s3, %s799
      $region44: #{_lambda_.5} parent=39 // pred_fallthru
        _
    $region40: #{_lambda_.5} parent=5 // pred_fallthru
      _
  $region6: #{_lambda_.5} parent=0 // loop_footer
    %s13 = sadd.s32 1, %s9
  $region7: #{_lambda_.5} parent=0 // loop_footer_branch
    %8 = sbr.rel target = $region3
  $region8: #{_lambda_.5} parent=0 // loop_exit
    _

// kernel: _lambda_.7
$region0: #{_lambda_.7}
  #allocation0 [shape = 'u32[]', space=smem, size = 0x4, offset = 0x4, fixed_abs, tag = 'smem constant byte address 0x4 - core index']
  #allocation1 [shape = 'u32[144,128]{1,0:T(1,128)}', space=vmem, size = 0x12000, scoped, tag = 'internal scratch']
  %s0 = inlined_call_operand.vmem [shape: bf16[2,16,16,128], index: 0, kind: input, shape index: {}]
  %s1 = inlined_call_operand.vmem [shape: f32[2,1,128], index: 1, kind: input, shape index: {}]
  %s2 = inlined_call_operand.vmem [shape: f32[2,1,128], index: 2, kind: input, shape index: {}]
  %s3 = inlined_call_operand.vmem [shape: bf16[2,18,18,128], index: 3, kind: input, shape index: {}]
  %s4 = inlined_call_operand.vmem [shape: bf16[128,128], index: 4, kind: input, shape index: {}]
  %s5 = inlined_call_operand.vmem [shape: f32[1,128], index: 5, kind: input, shape index: {}]
  %s6 = inlined_call_operand.vmem [shape: f32[2,16,16,128], index: 6, kind: output, shape index: {}]
  %s7 = sld [smem:[#allocation0]]
  $region57: #{_lambda_.7} parent=0
    _
  %s9 = ssub.s32 1, %s7
  %s10 = scalar_select 0, %s9, %s7
  loop: start=0, step=1, limit=4
  $region2: #{_lambda_.7} parent=0 // loop_pre_header
    _
  $region3: #{_lambda_.7} parent=0 // loop_header
    %s12 = sphi 0, %s16
    %p13 = scmp.ge.s32.totalorder %s12, 4
    %s19 = sphi 0, %s31
    %s20 = sphi 0, %s27
    %s21 = sphi 0, %s19
    %s22 = sphi 0, %s20
    %s23 = sphi 0, %s21
    %s24 = sphi 0, %s22
    %s36 = sphi 0, %s38
    %s39 = sphi 0, %s36
    %s40 = sphi 0, %s39
    %s56 = sphi 0, %s40
    %s62 = sphi 0, %s64
    %s65 = sphi 0, %s62
    %s66 = sphi 0, %s65
    %s82 = sphi 0, %s66
    %s88 = sphi 0, %s90
    %s91 = sphi 0, %s88
    %s92 = sphi 0, %s91
    %s108 = sphi 0, %s92
    %s114 = sphi 0, %s116
    %s117 = sphi 0, %s114
    %s118 = sphi 0, %s117
    %s134 = sphi 0, %s118
    %s138 = sphi 0, %s138
    %s140 = sphi 0, %s138
    %s141 = sphi 0, %s140
    %s155 = sphi 0, %s141
    %s159 = sphi 0, %s159
    %s161 = sphi 0, %s159
    %s162 = sphi 0, %s161
    %s176 = sphi 0, %s162
    %s184 = sphi 0, %s186
    %s187 = sphi 0, %s184
    %s188 = sphi 0, %s187
    %s204 = sphi 0, %s188
  $region4: #{_lambda_.7} parent=0 // loop_header_branch
    %15 = sbr.rel (%p13) target = $region8
  $region5: #{_lambda_.7} parent=0 // loop_body
    %s17 = ssub.s32 %s12, 1
    %s18 = ssub.s32 %s12, 2
    %s25 = sadd.s32 1, %s20
    %p26 = scmp.ge.s32.totalorder %s25, 1
    %s27 = scalar_select %p26, 0, %s25
    %s28 = sadd.s32 1, %s19
    %s29 = scalar_select %p26, %s28, %s19
    %p30 = scmp.ge.s32.totalorder %s29, 2
    %s31 = scalar_select %p30, 0, %s29
    %s32 = ssub.s32 %s19, %s31
    %s33 = ssub.s32 %s20, %s27
    %s34 = sor.u32 %s32, %s33
    %p35 = scmp.eq.s32.totalorder %s34, 0
    %s37 = sadd.s32 %s36, 1
    %s38 = scalar_select %p35, %s36, %s37
    %p41 = pneg %p35
    %p42 = scmp.eq.s32.totalorder %s12, 1
    %p43 = por %p41, %p42
    %p44 = scmp.ne.s32.totalorder %s36, %s39
    %p45 = scmp.eq.s32.totalorder %s12, 0
    %p46 = por %p44, %p45
    %p47 = scmp.ne.s32.totalorder %s36, %s39
    %p48 = scmp.eq.s32.totalorder %s17, 1
    %p49 = por %p47, %p48
    %p50 = scmp.ne.s32.totalorder %s39, %s40
    %p51 = scmp.eq.s32.totalorder %s17, 0
    %p52 = por %p50, %p51
    %p53 = scmp.ne.s32.totalorder %s39, %s40
    %p54 = scmp.eq.s32.totalorder %s18, 1
    %p55 = por %p53, %p54
    %p57 = scmp.ne.s32.totalorder %s40, %s56
    %p58 = scmp.eq.s32.totalorder %s18, 0
    %p59 = por %p57, %p58
    %s60 = ssub.s32 %s19, %s31
    %p61 = scmp.eq.s32.totalorder %s60, 0
    %s63 = sadd.s32 %s62, 1
    %s64 = scalar_select %p61, %s62, %s63
    %p67 = pneg %p61
    %p68 = scmp.eq.s32.totalorder %s12, 1
    %p69 = por %p67, %p68
    %p70 = scmp.ne.s32.totalorder %s62, %s65
    %p71 = scmp.eq.s32.totalorder %s12, 0
    %p72 = por %p70, %p71
    %p73 = scmp.ne.s32.totalorder %s62, %s65
    %p74 = scmp.eq.s32.totalorder %s17, 1
    %p75 = por %p73, %p74
    %p76 = scmp.ne.s32.totalorder %s65, %s66
    %p77 = scmp.eq.s32.totalorder %s17, 0
    %p78 = por %p76, %p77
    %p79 = scmp.ne.s32.totalorder %s65, %s66
    %p80 = scmp.eq.s32.totalorder %s18, 1
    %p81 = por %p79, %p80
    %p83 = scmp.ne.s32.totalorder %s66, %s82
    %p84 = scmp.eq.s32.totalorder %s18, 0
    %p85 = por %p83, %p84
    %s86 = ssub.s32 %s19, %s31
    %p87 = scmp.eq.s32.totalorder %s86, 0
    %s89 = sadd.s32 %s88, 1
    %s90 = scalar_select %p87, %s88, %s89
    %p93 = pneg %p87
    %p94 = scmp.eq.s32.totalorder %s12, 1
    %p95 = por %p93, %p94
    %p96 = scmp.ne.s32.totalorder %s88, %s91
    %p97 = scmp.eq.s32.totalorder %s12, 0
    %p98 = por %p96, %p97
    %p99 = scmp.ne.s32.totalorder %s88, %s91
    %p100 = scmp.eq.s32.totalorder %s17, 1
    %p101 = por %p99, %p100
    %p102 = scmp.ne.s32.totalorder %s91, %s92
    %p103 = scmp.eq.s32.totalorder %s17, 0
    %p104 = por %p102, %p103
    %p105 = scmp.ne.s32.totalorder %s91, %s92
    %p106 = scmp.eq.s32.totalorder %s18, 1
    %p107 = por %p105, %p106
    %p109 = scmp.ne.s32.totalorder %s92, %s108
    %p110 = scmp.eq.s32.totalorder %s18, 0
    %p111 = por %p109, %p110
    %s112 = ssub.s32 %s19, %s31
    %p113 = scmp.eq.s32.totalorder %s112, 0
    %s115 = sadd.s32 %s114, 1
    %s116 = scalar_select %p113, %s114, %s115
    %p119 = pneg %p113
    %p120 = scmp.eq.s32.totalorder %s12, 1
    %p121 = por %p119, %p120
    %p122 = scmp.ne.s32.totalorder %s114, %s117
    %p123 = scmp.eq.s32.totalorder %s12, 0
    %p124 = por %p122, %p123
    %p125 = scmp.ne.s32.totalorder %s114, %s117
    %p126 = scmp.eq.s32.totalorder %s17, 1
    %p127 = por %p125, %p126
    %p128 = scmp.ne.s32.totalorder %s117, %s118
    %p129 = scmp.eq.s32.totalorder %s17, 0
    %p130 = por %p128, %p129
    %p131 = scmp.ne.s32.totalorder %s117, %s118
    %p132 = scmp.eq.s32.totalorder %s18, 1
    %p133 = por %p131, %p132
    %p135 = scmp.ne.s32.totalorder %s118, %s134
    %p136 = scmp.eq.s32.totalorder %s18, 0
    %p137 = por %p135, %p136
    %s139 = sadd.s32 %s138, 1
    %p142 = scmp.eq.s32.totalorder %s12, 1
    %p143 = scmp.ne.s32.totalorder %s138, %s140
    %p144 = scmp.eq.s32.totalorder %s12, 0
    %p145 = por %p143, %p144
    %p146 = scmp.ne.s32.totalorder %s138, %s140
    %p147 = scmp.eq.s32.totalorder %s17, 1
    %p148 = por %p146, %p147
    %p149 = scmp.ne.s32.totalorder %s140, %s141
    %p150 = scmp.eq.s32.totalorder %s17, 0
    %p151 = por %p149, %p150
    %p152 = scmp.ne.s32.totalorder %s140, %s141
    %p153 = scmp.eq.s32.totalorder %s18, 1
    %p154 = por %p152, %p153
    %p156 = scmp.ne.s32.totalorder %s141, %s155
    %p157 = scmp.eq.s32.totalorder %s18, 0
    %p158 = por %p156, %p157
    %s160 = sadd.s32 %s159, 1
    %p163 = scmp.eq.s32.totalorder %s12, 1
    %p164 = scmp.ne.s32.totalorder %s159, %s161
    %p165 = scmp.eq.s32.totalorder %s12, 0
    %p166 = por %p164, %p165
    %p167 = scmp.ne.s32.totalorder %s159, %s161
    %p168 = scmp.eq.s32.totalorder %s17, 1
    %p169 = por %p167, %p168
    %p170 = scmp.ne.s32.totalorder %s161, %s162
    %p171 = scmp.eq.s32.totalorder %s17, 0
    %p172 = por %p170, %p171
    %p173 = scmp.ne.s32.totalorder %s161, %s162
    %p174 = scmp.eq.s32.totalorder %s18, 1
    %p175 = por %p173, %p174
    %p177 = scmp.ne.s32.totalorder %s162, %s176
    %p178 = scmp.eq.s32.totalorder %s18, 0
    %p179 = por %p177, %p178
    %s180 = ssub.s32 %s19, %s31
    %s181 = ssub.s32 %s20, %s27
    %s182 = sor.u32 %s180, %s181
    %p183 = scmp.eq.s32.totalorder %s182, 0
    %s185 = sadd.s32 %s184, 1
    %s186 = scalar_select %p183, %s184, %s185
    %p189 = pneg %p183
    %p190 = scmp.eq.s32.totalorder %s12, 1
    %p191 = por %p189, %p190
    %p192 = scmp.ne.s32.totalorder %s184, %s187
    %p193 = scmp.eq.s32.totalorder %s12, 0
    %p194 = por %p192, %p193
    %p195 = scmp.ne.s32.totalorder %s184, %s187
    %p196 = scmp.eq.s32.totalorder %s17, 1
    %p197 = por %p195, %p196
    %p198 = scmp.ne.s32.totalorder %s187, %s188
    %p199 = scmp.eq.s32.totalorder %s17, 0
    %p200 = por %p198, %p199
    %p201 = scmp.ne.s32.totalorder %s187, %s188
    %p202 = scmp.eq.s32.totalorder %s18, 1
    %p203 = por %p201, %p202
    %p205 = scmp.ne.s32.totalorder %s188, %s204
    %p206 = scmp.eq.s32.totalorder %s18, 0
    %p207 = por %p205, %p206
    %p208 = scmp.le.s32.totalorder 1, %s12
    %p209 = scmp.lt.s32.totalorder %s12, 3
    %p210 = pnand %p208, %p209
    %p211 = pneg %p210
    // Predicated region
    $region9: #{_lambda_.7} parent=5 // pred_check
      _
    $region10: #{_lambda_.7} parent=5 // pred_check_branch
      %213 = sbr.rel (%p210) target = $region12
    $region11: #{_lambda_.7} parent=5 // pred_region
      %s214 = ssub.s32 %s12, 1
      // Predicated region
      $region13: #{_lambda_.7} parent=11 // pred_check
        %p215 = pneg %p151
      $region14: #{_lambda_.7} parent=11 // pred_check_branch
        %217 = sbr.rel (%p215) target = $region16
      $region15: #{_lambda_.7} parent=11 // pred_region
        _
      $region16: #{_lambda_.7} parent=11 // pred_fallthru
        _
      // Predicated region
      $region17: #{_lambda_.7} parent=11 // pred_check
        %p218 = pneg %p172
      $region18: #{_lambda_.7} parent=11 // pred_check_branch
        %220 = sbr.rel (%p218) target = $region20
      $region19: #{_lambda_.7} parent=11 // pred_region
        _
      $region20: #{_lambda_.7} parent=11 // pred_fallthru
        _
    $region12: #{_lambda_.7} parent=5 // pred_fallthru
      _
    %p221 = scmp.lt.s32.totalorder %s12, 2
    // Predicated region
    $region21: #{_lambda_.7} parent=5 // pred_check
      %p222 = pneg %p221
    $region22: #{_lambda_.7} parent=5 // pred_check_branch
      %224 = sbr.rel (%p222) target = $region24
    $region23: #{_lambda_.7} parent=5 // pred_region
      // Predicated region
      $region25: #{_lambda_.7} parent=23 // pred_check
        %p225 = pneg %p46
      $region26: #{_lambda_.7} parent=23 // pred_check_branch
        %227 = sbr.rel (%p225) target = $region28
      $region27: #{_lambda_.7} parent=23 // pred_region
        %s228 = smul.u32 16, %s20
        %p229 = scmp.lt.s32.totalorder %s19, 1
        %s230 = scalar_select %p229, %s19, 1
        %p231 = scmp.lt.s32.totalorder %s228, 15
        %s232 = scalar_select %p231, %s228, 15
        %s233 = smul.addr %s232, 2
        %s234 = smul.addr %s230, 32
        %s235 = sadd.s32 %s233, %s234
        %s236 = smul.addr %s235, 4
        %s237 = scalar_lea.vmem %s0, %s236
        %s238 = smul.u32 16, %s20
      $region28: #{_lambda_.7} parent=23 // pred_fallthru
        _
      // Predicated region
      $region29: #{_lambda_.7} parent=23 // pred_check
        %p239 = pneg %p72
      $region30: #{_lambda_.7} parent=23 // pred_check_branch
        %241 = sbr.rel (%p239) target = $region32
      $region31: #{_lambda_.7} parent=23 // pred_region
        %p242 = scmp.lt.s32.totalorder %s19, 1
        %s243 = scalar_select %p242, %s19, 1
        %s244 = scalar_lea.vmem %s1, %s243
      $region32: #{_lambda_.7} parent=23 // pred_fallthru
        _
      // Predicated region
      $region33: #{_lambda_.7} parent=23 // pred_check
        %p245 = pneg %p98
      $region34: #{_lambda_.7} parent=23 // pred_check_branch
        %247 = sbr.rel (%p245) target = $region36
      $region35: #{_lambda_.7} parent=23 // pred_region
        %p248 = scmp.lt.s32.totalorder %s19, 1
        %s249 = scalar_select %p248, %s19, 1
        %s250 = scalar_lea.vmem %s2, %s249
      $region36: #{_lambda_.7} parent=23 // pred_fallthru
        _
      // Predicated region
      $region37: #{_lambda_.7} parent=23 // pred_check
        %p251 = pneg %p124
      $region38: #{_lambda_.7} parent=23 // pred_check_branch
        %253 = sbr.rel (%p251) target = $region40
      $region39: #{_lambda_.7} parent=23 // pred_region
        %p254 = scmp.lt.s32.totalorder %s19, 1
        %s255 = scalar_select %p254, %s19, 1
        %s256 = smul.addr %s255, 54
        %s257 = smul.addr %s256, 4
        %s258 = scalar_lea.vmem %s3, %s257
      $region40: #{_lambda_.7} parent=23 // pred_fallthru
        _
    $region24: #{_lambda_.7} parent=5 // pred_fallthru
      _
    %p259 = scmp.le.s32.totalorder 1, %s12
    %p260 = scmp.lt.s32.totalorder %s12, 3
    %p261 = pnand %p259, %p260
    %p262 = pneg %p261
    // Predicated region
    $region41: #{_lambda_.7} parent=5 // pred_check
      _
    $region42: #{_lambda_.7} parent=5 // pred_check_branch
      %264 = sbr.rel (%p261) target = $region44
    $region43: #{_lambda_.7} parent=5 // pred_region
      %s265 = ssub.s32 %s12, 1
      %s266 = smul.u32 16, %s22
      %p267 = scmp.lt.s32.totalorder %s21, 1
      %s268 = scalar_select %p267, %s21, 1
      %p269 = scmp.lt.s32.totalorder %s266, 15
      %s270 = scalar_select %p269, %s266, 15
      %s271 = smul.addr %s270, 2
      %s272 = smul.addr %s268, 32
      %s273 = sadd.s32 %s271, %s272
      %s274 = smul.addr %s273, 4
      %s275 = scalar_lea.vmem %s0, %s274
      %p276 = pneg %p52
      %p277 = pneg %p49
      %p278 = scmp.lt.s32.totalorder %s21, 1
      %s279 = scalar_select %p278, %s21, 1
      %s280 = scalar_lea.vmem %s1, %s279
      %p281 = pneg %p78
      %p282 = pneg %p75
      %p283 = scmp.lt.s32.totalorder %s21, 1
      %s284 = scalar_select %p283, %s21, 1
      %s285 = scalar_lea.vmem %s2, %s284
      %p286 = pneg %p104
      %p287 = pneg %p101
      %p288 = scmp.lt.s32.totalorder %s21, 1
      %s289 = scalar_select %p288, %s21, 1
      %s290 = smul.addr %s289, 54
      %s291 = smul.addr %s290, 4
      %s292 = scalar_lea.vmem %s3, %s291
      %p293 = pneg %p130
      %p294 = pneg %p127
      %p295 = pneg %p151
      %p296 = pneg %p148
      %p297 = pneg %p172
      %p298 = pneg %p169
      %p299 = pneg %p200
      %p300 = pneg %p197
      %s301 = smul.u32 16, %s22
      %p302 = scmp.lt.s32.totalorder %s21, 1
      %s303 = scalar_select %p302, %s21, 1
      %p304 = scmp.lt.s32.totalorder %s301, 15
      %s305 = scalar_select %p304, %s301, 15
      %s306 = smul.addr %s305, 2
      %s307 = smul.addr %s303, 32
      %s308 = sadd.s32 %s306, %s307
      %s309 = smul.addr %s308, 8
      %s310 = scalar_lea.vmem %s6, %s309
      %s311 = smul.u32 16, %s22
      %p312 = scmp.lt.s32.totalorder %s21, 1
      %s313 = scalar_select %p312, %s21, 1
      %p314 = scmp.lt.s32.totalorder %s311, 15
      %s315 = scalar_select %p314, %s311, 15
      %s316 = smul.addr %s315, 2
      %s317 = smul.addr %s313, 32
      %s318 = sadd.s32 %s316, %s317
      %s319 = smul.addr %s318, 4
      %s320 = scalar_lea.vmem %s0, %s319
      %s321 = smul.u32 16, %s22
      %p322 = scmp.lt.s32.totalorder %s21, 1
      %s323 = scalar_select %p322, %s21, 1
      %s324 = scalar_lea.vmem %s1, %s323
      %p325 = scmp.lt.s32.totalorder %s21, 1
      %s326 = scalar_select %p325, %s21, 1
      %s327 = scalar_lea.vmem %s2, %s326
      %p328 = scmp.lt.s32.totalorder %s21, 1
      %s329 = scalar_select %p328, %s21, 1
      %s330 = smul.addr %s329, 54
      %s331 = smul.addr %s330, 4
      %s332 = scalar_lea.vmem %s3, %s331
      %s333 = smul.u32 16, %s22
      %p334 = scmp.lt.s32.totalorder %s21, 1
      %s335 = scalar_select %p334, %s21, 1
      %p336 = scmp.lt.s32.totalorder %s333, 15
      %s337 = scalar_select %p336, %s333, 15
      %s338 = smul.addr %s337, 2
      %s339 = smul.addr %s335, 32
      %s340 = sadd.s32 %s338, %s339
      %s341 = smul.addr %s340, 8
      %s342 = scalar_lea.vmem %s6, %s341
      %s343 = smul.u32 16, %s22
      %s345 = smul.u32 %s22, 16
      %v346 = vld [vmem:[%s320] sm:$0xf]
      %v347 = vld [vmem:[%s320 + $0x4] sm:$0xf]
      %v348 = vld [vmem:[%s320 + $0x8] sm:$0xf]
      %v349 = vld [vmem:[%s320 + $0xc] sm:$0xf]
      %v350 = vld [vmem:[%s320 + $0x10] sm:$0xf]
      %v351 = vld [vmem:[%s320 + $0x14] sm:$0xf]
      %v352 = vld [vmem:[%s320 + $0x18] sm:$0xf]
      %v353 = vld [vmem:[%s320 + $0x1c] sm:$0xf]
      %v354 = vld [vmem:[%s320 + $0x20] sm:$0xf]
      %v355 = vld [vmem:[%s320 + $0x24] sm:$0xf]
      %v356 = vld [vmem:[%s320 + $0x28] sm:$0xf]
      %v357 = vld [vmem:[%s320 + $0x2c] sm:$0xf]
      %v358 = vld [vmem:[%s320 + $0x30] sm:$0xf]
      %v359 = vld [vmem:[%s320 + $0x34] sm:$0xf]
      %v360 = vld [vmem:[%s320 + $0x38] sm:$0xf]
      %v361 = vld [vmem:[%s320 + $0x3c] sm:$0xf]
      %v362 = vld [vmem:[%s320 + $0x40] sm:$0xf]
      %v363 = vld [vmem:[%s320 + $0x44] sm:$0xf]
      %v364 = vld [vmem:[%s320 + $0x48] sm:$0xf]
      %v365 = vld [vmem:[%s320 + $0x4c] sm:$0xf]
      %v366 = vld [vmem:[%s320 + $0x50] sm:$0xf]
      %v367 = vld [vmem:[%s320 + $0x54] sm:$0xf]
      %v368 = vld [vmem:[%s320 + $0x58] sm:$0xf]
      %v369 = vld [vmem:[%s320 + $0x5c] sm:$0xf]
      %v370 = vld [vmem:[%s320 + $0x60] sm:$0xf]
      %v371 = vld [vmem:[%s320 + $0x64] sm:$0xf]
      %v372 = vld [vmem:[%s320 + $0x68] sm:$0xf]
      %v373 = vld [vmem:[%s320 + $0x6c] sm:$0xf]
      %v374 = vld [vmem:[%s320 + $0x70] sm:$0xf]
      %v375 = vld [vmem:[%s320 + $0x74] sm:$0xf]
      %v376 = vld [vmem:[%s320 + $0x78] sm:$0xf]
      %v377 = vld [vmem:[%s320 + $0x7c] sm:$0xf]
      %v378 = vunpack.c.l.bf16 %v346
      %v379 = vunpack.c.l.bf16 %v347
      %v380 = vunpack.c.l.bf16 %v348
      %v381 = vunpack.c.l.bf16 %v349
      %v382 = vunpack.c.l.bf16 %v350
      %v383 = vunpack.c.l.bf16 %v351
      %v384 = vunpack.c.l.bf16 %v352
      %v385 = vunpack.c.l.bf16 %v353
      %v386 = vunpack.c.l.bf16 %v354
      %v387 = vunpack.c.l.bf16 %v355
      %v388 = vunpack.c.l.bf16 %v356
      %v389 = vunpack.c.l.bf16 %v357
      %v390 = vunpack.c.l.bf16 %v358
      %v391 = vunpack.c.l.bf16 %v359
      %v392 = vunpack.c.l.bf16 %v360
      %v393 = vunpack.c.l.bf16 %v361
      %v394 = vunpack.c.l.bf16 %v362
      %v395 = vunpack.c.l.bf16 %v363
      %v396 = vunpack.c.l.bf16 %v364
      %v397 = vunpack.c.l.bf16 %v365
      %v398 = vunpack.c.l.bf16 %v366
      %v399 = vunpack.c.l.bf16 %v367
      %v400 = vunpack.c.l.bf16 %v368
      %v401 = vunpack.c.l.bf16 %v369
      %v402 = vunpack.c.l.bf16 %v370
      %v403 = vunpack.c.l.bf16 %v371
      %v404 = vunpack.c.l.bf16 %v372
      %v405 = vunpack.c.l.bf16 %v373
      %v406 = vunpack.c.l.bf16 %v374
      %v407 = vunpack.c.l.bf16 %v375
      %v408 = vunpack.c.l.bf16 %v376
      %v409 = vunpack.c.l.bf16 %v377
      %v410 = vld [vmem:[%s324] sm:$0x1]
      %v412 = vlaneseq
      %v413 = vshrl.u32 %v412, 7
      %v414 = vsub.s32 0, %v413
      %v415 = vrot.slane %v410, %v414
      %v417 = vmul.f32 %v378, %v415
      %v418 = vmul.f32 %v379, %v415
      %v419 = vmul.f32 %v380, %v415
      %v420 = vmul.f32 %v381, %v415
      %v421 = vmul.f32 %v382, %v415
      %v422 = vmul.f32 %v383, %v415
      %v423 = vmul.f32 %v384, %v415
      %v424 = vmul.f32 %v385, %v415
      %v425 = vmul.f32 %v386, %v415
      %v426 = vmul.f32 %v387, %v415
      %v427 = vmul.f32 %v388, %v415
      %v428 = vmul.f32 %v389, %v415
      %v429 = vmul.f32 %v390, %v415
      %v430 = vmul.f32 %v391, %v415
      %v431 = vmul.f32 %v392, %v415
      %v432 = vmul.f32 %v393, %v415
      %v433 = vmul.f32 %v394, %v415
      %v434 = vmul.f32 %v395, %v415
      %v435 = vmul.f32 %v396, %v415
      %v436 = vmul.f32 %v397, %v415
      %v437 = vmul.f32 %v398, %v415
      %v438 = vmul.f32 %v399, %v415
      %v439 = vmul.f32 %v400, %v415
      %v440 = vmul.f32 %v401, %v415
      %v441 = vmul.f32 %v402, %v415
      %v442 = vmul.f32 %v403, %v415
      %v443 = vmul.f32 %v404, %v415
      %v444 = vmul.f32 %v405, %v415
      %v445 = vmul.f32 %v406, %v415
      %v446 = vmul.f32 %v407, %v415
      %v447 = vmul.f32 %v408, %v415
      %v448 = vmul.f32 %v409, %v415
      %v449 = vld [vmem:[%s327] sm:$0x1]
      %v451 = vlaneseq
      %v452 = vshrl.u32 %v451, 7
      %v453 = vsub.s32 0, %v452
      %v454 = vrot.slane %v449, %v453
      %v456 = vadd.f32 %v417, %v454
      %v457 = vadd.f32 %v418, %v454
      %v458 = vadd.f32 %v419, %v454
      %v459 = vadd.f32 %v420, %v454
      %v460 = vadd.f32 %v421, %v454
      %v461 = vadd.f32 %v422, %v454
      %v462 = vadd.f32 %v423, %v454
      %v463 = vadd.f32 %v424, %v454
      %v464 = vadd.f32 %v425, %v454
      %v465 = vadd.f32 %v426, %v454
      %v466 = vadd.f32 %v427, %v454
      %v467 = vadd.f32 %v428, %v454
      %v468 = vadd.f32 %v429, %v454
      %v469 = vadd.f32 %v430, %v454
      %v470 = vadd.f32 %v431, %v454
      %v471 = vadd.f32 %v432, %v454
      %v472 = vadd.f32 %v433, %v454
      %v473 = vadd.f32 %v434, %v454
      %v474 = vadd.f32 %v435, %v454
      %v475 = vadd.f32 %v436, %v454
      %v476 = vadd.f32 %v437, %v454
      %v477 = vadd.f32 %v438, %v454
      %v478 = vadd.f32 %v439, %v454
      %v479 = vadd.f32 %v440, %v454
      %v480 = vadd.f32 %v441, %v454
      %v481 = vadd.f32 %v442, %v454
      %v482 = vadd.f32 %v443, %v454
      %v483 = vadd.f32 %v444, %v454
      %v484 = vadd.f32 %v445, %v454
      %v485 = vadd.f32 %v446, %v454
      %v486 = vadd.f32 %v447, %v454
      %v487 = vadd.f32 %v448, %v454
      %v488 = vxor.u32 %v456, 2147483648
      %v489 = vxor.u32 %v457, 2147483648
      %v490 = vxor.u32 %v458, 2147483648
      %v491 = vxor.u32 %v459, 2147483648
      %v492 = vxor.u32 %v460, 2147483648
      %v493 = vxor.u32 %v461, 2147483648
      %v494 = vxor.u32 %v462, 2147483648
      %v495 = vxor.u32 %v463, 2147483648
      %v496 = vxor.u32 %v464, 2147483648
      %v497 = vxor.u32 %v465, 2147483648
      %v498 = vxor.u32 %v466, 2147483648
      %v499 = vxor.u32 %v467, 2147483648
      %v500 = vxor.u32 %v468, 2147483648
      %v501 = vxor.u32 %v469, 2147483648
      %v502 = vxor.u32 %v470, 2147483648
      %v503 = vxor.u32 %v471, 2147483648
      %v504 = vxor.u32 %v472, 2147483648
      %v505 = vxor.u32 %v473, 2147483648
      %v506 = vxor.u32 %v474, 2147483648
      %v507 = vxor.u32 %v475, 2147483648
      %v508 = vxor.u32 %v476, 2147483648
      %v509 = vxor.u32 %v477, 2147483648
      %v510 = vxor.u32 %v478, 2147483648
      %v511 = vxor.u32 %v479, 2147483648
      %v512 = vxor.u32 %v480, 2147483648
      %v513 = vxor.u32 %v481, 2147483648
      %v514 = vxor.u32 %v482, 2147483648
      %v515 = vxor.u32 %v483, 2147483648
      %v516 = vxor.u32 %v484, 2147483648
      %v517 = vxor.u32 %v485, 2147483648
      %v518 = vxor.u32 %v486, 2147483648
      %v519 = vxor.u32 %v487, 2147483648
      %v520 = vmul.f32 %v488, 1.442695
      %v521 = vpow.pop %v520
      %v522 = vmul.f32 %v489, 1.442695
      %v523 = vpow.pop %v522
      %v524 = vmul.f32 %v490, 1.442695
      %v525 = vpow.pop %v524
      %v526 = vmul.f32 %v491, 1.442695
      %v527 = vpow.pop %v526
      %v528 = vmul.f32 %v492, 1.442695
      %v529 = vpow.pop %v528
      %v530 = vmul.f32 %v493, 1.442695
      %v531 = vpow.pop %v530
      %v532 = vmul.f32 %v494, 1.442695
      %v533 = vpow.pop %v532
      %v534 = vmul.f32 %v495, 1.442695
      %v535 = vpow.pop %v534
      %v536 = vmul.f32 %v496, 1.442695
      %v537 = vpow.pop %v536
      %v538 = vmul.f32 %v497, 1.442695
      %v539 = vpow.pop %v538
      %v540 = vmul.f32 %v498, 1.442695
      %v541 = vpow.pop %v540
      %v542 = vmul.f32 %v499, 1.442695
      %v543 = vpow.pop %v542
      %v544 = vmul.f32 %v500, 1.442695
      %v545 = vpow.pop %v544
      %v546 = vmul.f32 %v501, 1.442695
      %v547 = vpow.pop %v546
      %v548 = vmul.f32 %v502, 1.442695
      %v549 = vpow.pop %v548
      %v550 = vmul.f32 %v503, 1.442695
      %v551 = vpow.pop %v550
      %v552 = vmul.f32 %v504, 1.442695
      %v553 = vpow.pop %v552
      %v554 = vmul.f32 %v505, 1.442695
      %v555 = vpow.pop %v554
      %v556 = vmul.f32 %v506, 1.442695
      %v557 = vpow.pop %v556
      %v558 = vmul.f32 %v507, 1.442695
      %v559 = vpow.pop %v558
      %v560 = vmul.f32 %v508, 1.442695
      %v561 = vpow.pop %v560
      %v562 = vmul.f32 %v509, 1.442695
      %v563 = vpow.pop %v562
      %v564 = vmul.f32 %v510, 1.442695
      %v565 = vpow.pop %v564
      %v566 = vmul.f32 %v511, 1.442695
      %v567 = vpow.pop %v566
      %v568 = vmul.f32 %v512, 1.442695
      %v569 = vpow.pop %v568
      %v570 = vmul.f32 %v513, 1.442695
      %v571 = vpow.pop %v570
      %v572 = vmul.f32 %v514, 1.442695
      %v573 = vpow.pop %v572
      %v574 = vmul.f32 %v515, 1.442695
      %v575 = vpow.pop %v574
      %v576 = vmul.f32 %v516, 1.442695
      %v577 = vpow.pop %v576
      %v578 = vmul.f32 %v517, 1.442695
      %v579 = vpow.pop %v578
      %v580 = vmul.f32 %v518, 1.442695
      %v581 = vpow.pop %v580
      %v582 = vmul.f32 %v519, 1.442695
      %v583 = vpow.pop %v582
      %v584 = vadd.f32 %v521, 1.0
      %v585 = vadd.f32 %v523, 1.0
      %v586 = vadd.f32 %v525, 1.0
      %v587 = vadd.f32 %v527, 1.0
      %v588 = vadd.f32 %v529, 1.0
      %v589 = vadd.f32 %v531, 1.0
      %v590 = vadd.f32 %v533, 1.0
      %v591 = vadd.f32 %v535, 1.0
      %v592 = vadd.f32 %v537, 1.0
      %v593 = vadd.f32 %v539, 1.0
      %v594 = vadd.f32 %v541, 1.0
      %v595 = vadd.f32 %v543, 1.0
      %v596 = vadd.f32 %v545, 1.0
      %v597 = vadd.f32 %v547, 1.0
      %v598 = vadd.f32 %v549, 1.0
      %v599 = vadd.f32 %v551, 1.0
      %v600 = vadd.f32 %v553, 1.0
      %v601 = vadd.f32 %v555, 1.0
      %v602 = vadd.f32 %v557, 1.0
      %v603 = vadd.f32 %v559, 1.0
      %v604 = vadd.f32 %v561, 1.0
      %v605 = vadd.f32 %v563, 1.0
      %v606 = vadd.f32 %v565, 1.0
      %v607 = vadd.f32 %v567, 1.0
      %v608 = vadd.f32 %v569, 1.0
      %v609 = vadd.f32 %v571, 1.0
      %v610 = vadd.f32 %v573, 1.0
      %v611 = vadd.f32 %v575, 1.0
      %v612 = vadd.f32 %v577, 1.0
      %v613 = vadd.f32 %v579, 1.0
      %v614 = vadd.f32 %v581, 1.0
      %v615 = vadd.f32 %v583, 1.0
      %v616 = vrcp.pop %v584
      %v617 = vmul.f32 1.0, %v616
      %v618 = vrcp.pop %v585
      %v619 = vmul.f32 1.0, %v618
      %v620 = vrcp.pop %v586
      %v621 = vmul.f32 1.0, %v620
      %v622 = vrcp.pop %v587
      %v623 = vmul.f32 1.0, %v622
      %v624 = vrcp.pop %v588
      %v625 = vmul.f32 1.0, %v624
      %v626 = vrcp.pop %v589
      %v627 = vmul.f32 1.0, %v626
      %v628 = vrcp.pop %v590
      %v629 = vmul.f32 1.0, %v628
      %v630 = vrcp.pop %v591
      %v631 = vmul.f32 1.0, %v630
      %v632 = vrcp.pop %v592
      %v633 = vmul.f32 1.0, %v632
      %v634 = vrcp.pop %v593
      %v635 = vmul.f32 1.0, %v634
      %v636 = vrcp.pop %v594
      %v637 = vmul.f32 1.0, %v636
      %v638 = vrcp.pop %v595
      %v639 = vmul.f32 1.0, %v638
      %v640 = vrcp.pop %v596
      %v641 = vmul.f32 1.0, %v640
      %v642 = vrcp.pop %v597
      %v643 = vmul.f32 1.0, %v642
      %v644 = vrcp.pop %v598
      %v645 = vmul.f32 1.0, %v644
      %v646 = vrcp.pop %v599
      %v647 = vmul.f32 1.0, %v646
      %v648 = vrcp.pop %v600
      %v649 = vmul.f32 1.0, %v648
      %v650 = vrcp.pop %v601
      %v651 = vmul.f32 1.0, %v650
      %v652 = vrcp.pop %v602
      %v653 = vmul.f32 1.0, %v652
      %v654 = vrcp.pop %v603
      %v655 = vmul.f32 1.0, %v654
      %v656 = vrcp.pop %v604
      %v657 = vmul.f32 1.0, %v656
      %v658 = vrcp.pop %v605
      %v659 = vmul.f32 1.0, %v658
      %v660 = vrcp.pop %v606
      %v661 = vmul.f32 1.0, %v660
      %v662 = vrcp.pop %v607
      %v663 = vmul.f32 1.0, %v662
      %v664 = vrcp.pop %v608
      %v665 = vmul.f32 1.0, %v664
      %v666 = vrcp.pop %v609
      %v667 = vmul.f32 1.0, %v666
      %v668 = vrcp.pop %v610
      %v669 = vmul.f32 1.0, %v668
      %v670 = vrcp.pop %v611
      %v671 = vmul.f32 1.0, %v670
      %v672 = vrcp.pop %v612
      %v673 = vmul.f32 1.0, %v672
      %v674 = vrcp.pop %v613
      %v675 = vmul.f32 1.0, %v674
      %v676 = vrcp.pop %v614
      %v677 = vmul.f32 1.0, %v676
      %v678 = vrcp.pop %v615
      %v679 = vmul.f32 1.0, %v678
      %v680 = vmul.f32 %v456, %v617
      %v681 = vmul.f32 %v457, %v619
      %v682 = vmul.f32 %v458, %v621
      %v683 = vmul.f32 %v459, %v623
      %v684 = vmul.f32 %v460, %v625
      %v685 = vmul.f32 %v461, %v627
      %v686 = vmul.f32 %v462, %v629
      %v687 = vmul.f32 %v463, %v631
      %v688 = vmul.f32 %v464, %v633
      %v689 = vmul.f32 %v465, %v635
      %v690 = vmul.f32 %v466, %v637
      %v691 = vmul.f32 %v467, %v639
      %v692 = vmul.f32 %v468, %v641
      %v693 = vmul.f32 %v469, %v643
      %v694 = vmul.f32 %v470, %v645
      %v695 = vmul.f32 %v471, %v647
      %v696 = vmul.f32 %v472, %v649
      %v697 = vmul.f32 %v473, %v651
      %v698 = vmul.f32 %v474, %v653
      %v699 = vmul.f32 %v475, %v655
      %v700 = vmul.f32 %v476, %v657
      %v701 = vmul.f32 %v477, %v659
      %v702 = vmul.f32 %v478, %v661
      %v703 = vmul.f32 %v479, %v663
      %v704 = vmul.f32 %v480, %v665
      %v705 = vmul.f32 %v481, %v667
      %v706 = vmul.f32 %v482, %v669
      %v707 = vmul.f32 %v483, %v671
      %v708 = vmul.f32 %v484, %v673
      %v709 = vmul.f32 %v485, %v675
      %v710 = vmul.f32 %v486, %v677
      %v711 = vmul.f32 %v487, %v679
      %s712 = sadd.s32 %s345, 1
      %s713 = smul.u32 %s712, 3
      %s714 = smul.addr %s713, 4
      %s715 = scalar_lea.vmem %s332, %s714
      %v716 = vld [vmem:[%s715] sm:$0xf]
      %v717 = vld [vmem:[%s715 + $0x4] sm:$0xf]
      %v718 = vld [vmem:[%s715 + $0x8] sm:$0x1]
      %v719 = vld [vmem:[%s715 + $0xc] sm:$0xf]
      %v720 = vld [vmem:[%s715 + $0x10] sm:$0xf]
      %v721 = vld [vmem:[%s715 + $0x14] sm:$0x1]
      %v722 = vld [vmem:[%s715 + $0x18] sm:$0xf]
      %v723 = vld [vmem:[%s715 + $0x1c] sm:$0xf]
      %v724 = vld [vmem:[%s715 + $0x20] sm:$0x1]
      %v725 = vld [vmem:[%s715 + $0x24] sm:$0xf]
      %v726 = vld [vmem:[%s715 + $0x28] sm:$0xf]
      %v727 = vld [vmem:[%s715 + $0x2c] sm:$0x1]
      %v728 = vld [vmem:[%s715 + $0x30] sm:$0xf]
      %v729 = vld [vmem:[%s715 + $0x34] sm:$0xf]
      %v730 = vld [vmem:[%s715 + $0x38] sm:$0x1]
      %v731 = vld [vmem:[%s715 + $0x3c] sm:$0xf]
      %v732 = vld [vmem:[%s715 + $0x40] sm:$0xf]
      %v733 = vld [vmem:[%s715 + $0x44] sm:$0x1]
      %v734 = vld [vmem:[%s715 + $0x48] sm:$0xf]
      %v735 = vld [vmem:[%s715 + $0x4c] sm:$0xf]
      %v736 = vld [vmem:[%s715 + $0x50] sm:$0x1]
      %v737 = vld [vmem:[%s715 + $0x54] sm:$0xf]
      %v738 = vld [vmem:[%s715 + $0x58] sm:$0xf]
      %v739 = vld [vmem:[%s715 + $0x5c] sm:$0x1]
      %v740 = vld [vmem:[%s715 + $0x60] sm:$0xf]
      %v741 = vld [vmem:[%s715 + $0x64] sm:$0xf]
      %v742 = vld [vmem:[%s715 + $0x68] sm:$0x1]
      %v743 = vld [vmem:[%s715 + $0x6c] sm:$0xf]
      %v744 = vld [vmem:[%s715 + $0x70] sm:$0xf]
      %v745 = vld [vmem:[%s715 + $0x74] sm:$0x1]
      %v746 = vld [vmem:[%s715 + $0x78] sm:$0xf]
      %v747 = vld [vmem:[%s715 + $0x7c] sm:$0xf]
      %v748 = vld [vmem:[%s715 + $0x80] sm:$0x1]
      %v749 = vld [vmem:[%s715 + $0x84] sm:$0xf]
      %v750 = vld [vmem:[%s715 + $0x88] sm:$0xf]
      %v751 = vld [vmem:[%s715 + $0x8c] sm:$0x1]
      %v752 = vld [vmem:[%s715 + $0x90] sm:$0xf]
      %v753 = vld [vmem:[%s715 + $0x94] sm:$0xf]
      %v754 = vld [vmem:[%s715 + $0x98] sm:$0x1]
      %v755 = vld [vmem:[%s715 + $0x9c] sm:$0xf]
      %v756 = vld [vmem:[%s715 + $0xa0] sm:$0xf]
      %v757 = vld [vmem:[%s715 + $0xa4] sm:$0x1]
      %v758 = vld [vmem:[%s715 + $0xa8] sm:$0xf]
      %v759 = vld [vmem:[%s715 + $0xac] sm:$0xf]
      %v760 = vld [vmem:[%s715 + $0xb0] sm:$0x1]
      %v761 = vld [vmem:[%s715 + $0xb4] sm:$0xf]
      %v762 = vld [vmem:[%s715 + $0xb8] sm:$0xf]
      %v763 = vld [vmem:[%s715 + $0xbc] sm:$0x1]
      %vm764 = vsmask.f32 3328
      %vm765 = vsmask.f32 7440
      %vm766 = vmor %vm764, %vm765
      %v768 = vshrl.u32 %v716, 16
      %v770 = vrot.slane %v768, 4
      %v771 = vshll.u32 %v716, 16
      %v773 = vrot.slane %v771, 5
      %v774 = vor.u32 %v770, %v773
      %v775 = vrot.slane %v774, 4
      %v777 = vshll.u32 %v717, 16
      %v779 = vrot.slane %v777, 5
      %v780 = vsel %vm766, %v775, %v779
      %v781 = vshrl.u32 %v717, 16
      %v783 = vrot.slane %v781, 4
      %v784 = vor.u32 %v783, %v779
      %v785 = vrot.slane %v784, 4
      %v787 = vshll.u32 %v718, 16
      %v789 = vrot.slane %v787, 5
      %v790 = vsel %vm766, %v785, %v789
      %v792 = vshrl.u32 %v719, 16
      %v794 = vrot.slane %v792, 4
      %v795 = vshll.u32 %v719, 16
      %v797 = vrot.slane %v795, 5
      %v798 = vor.u32 %v794, %v797
      %v799 = vrot.slane %v798, 4
      %v801 = vshll.u32 %v720, 16
      %v803 = vrot.slane %v801, 5
      %v804 = vsel %vm766, %v799, %v803
      %v805 = vshrl.u32 %v720, 16
      %v807 = vrot.slane %v805, 4
      %v808 = vor.u32 %v807, %v803
      %v809 = vrot.slane %v808, 4
      %v811 = vshll.u32 %v721, 16
      %v813 = vrot.slane %v811, 5
      %v814 = vsel %vm766, %v809, %v813
      %v816 = vshrl.u32 %v722, 16
      %v818 = vrot.slane %v816, 4
      %v819 = vshll.u32 %v722, 16
      %v821 = vrot.slane %v819, 5
      %v822 = vor.u32 %v818, %v821
      %v823 = vrot.slane %v822, 4
      %v825 = vshll.u32 %v723, 16
      %v827 = vrot.slane %v825, 5
      %v828 = vsel %vm766, %v823, %v827
      %v829 = vshrl.u32 %v723, 16
      %v831 = vrot.slane %v829, 4
      %v832 = vor.u32 %v831, %v827
      %v833 = vrot.slane %v832, 4
      %v835 = vshll.u32 %v724, 16
      %v837 = vrot.slane %v835, 5
      %v838 = vsel %vm766, %v833, %v837
      %v840 = vshrl.u32 %v725, 16
      %v842 = vrot.slane %v840, 4
      %v843 = vshll.u32 %v725, 16
      %v845 = vrot.slane %v843, 5
      %v846 = vor.u32 %v842, %v845
      %v847 = vrot.slane %v846, 4
      %v849 = vshll.u32 %v726, 16
      %v851 = vrot.slane %v849, 5
      %v852 = vsel %vm766, %v847, %v851
      %v853 = vshrl.u32 %v726, 16
      %v855 = vrot.slane %v853, 4
      %v856 = vor.u32 %v855, %v851
      %v857 = vrot.slane %v856, 4
      %v859 = vshll.u32 %v727, 16
      %v861 = vrot.slane %v859, 5
      %v862 = vsel %vm766, %v857, %v861
      %v864 = vshrl.u32 %v728, 16
      %v866 = vrot.slane %v864, 4
      %v867 = vshll.u32 %v728, 16
      %v869 = vrot.slane %v867, 5
      %v870 = vor.u32 %v866, %v869
      %v871 = vrot.slane %v870, 4
      %v873 = vshll.u32 %v729, 16
      %v875 = vrot.slane %v873, 5
      %v876 = vsel %vm766, %v871, %v875
      %v877 = vshrl.u32 %v729, 16
      %v879 = vrot.slane %v877, 4
      %v880 = vor.u32 %v879, %v875
      %v881 = vrot.slane %v880, 4
      %v883 = vshll.u32 %v730, 16
      %v885 = vrot.slane %v883, 5
      %v886 = vsel %vm766, %v881, %v885
      %v888 = vshrl.u32 %v731, 16
      %v890 = vrot.slane %v888, 4
      %v891 = vshll.u32 %v731, 16
      %v893 = vrot.slane %v891, 5
      %v894 = vor.u32 %v890, %v893
      %v895 = vrot.slane %v894, 4
      %v897 = vshll.u32 %v732, 16
      %v899 = vrot.slane %v897, 5
      %v900 = vsel %vm766, %v895, %v899
      %v901 = vshrl.u32 %v732, 16
      %v903 = vrot.slane %v901, 4
      %v904 = vor.u32 %v903, %v899
      %v905 = vrot.slane %v904, 4
      %v907 = vshll.u32 %v733, 16
      %v909 = vrot.slane %v907, 5
      %v910 = vsel %vm766, %v905, %v909
      %v912 = vshrl.u32 %v734, 16
      %v914 = vrot.slane %v912, 4
      %v915 = vshll.u32 %v734, 16
      %v917 = vrot.slane %v915, 5
      %v918 = vor.u32 %v914, %v917
      %v919 = vrot.slane %v918, 4
      %v921 = vshll.u32 %v735, 16
      %v923 = vrot.slane %v921, 5
      %v924 = vsel %vm766, %v919, %v923
      %v925 = vshrl.u32 %v735, 16
      %v927 = vrot.slane %v925, 4
      %v928 = vor.u32 %v927, %v923
      %v929 = vrot.slane %v928, 4
      %v931 = vshll.u32 %v736, 16
      %v933 = vrot.slane %v931, 5
      %v934 = vsel %vm766, %v929, %v933
      %v936 = vshrl.u32 %v737, 16
      %v938 = vrot.slane %v936, 4
      %v939 = vshll.u32 %v737, 16
      %v941 = vrot.slane %v939, 5
      %v942 = vor.u32 %v938, %v941
      %v943 = vrot.slane %v942, 4
      %v945 = vshll.u32 %v738, 16
      %v947 = vrot.slane %v945, 5
      %v948 = vsel %vm766, %v943, %v947
      %v949 = vshrl.u32 %v738, 16
      %v951 = vrot.slane %v949, 4
      %v952 = vor.u32 %v951, %v947
      %v953 = vrot.slane %v952, 4
      %v955 = vshll.u32 %v739, 16
      %v957 = vrot.slane %v955, 5
      %v958 = vsel %vm766, %v953, %v957
      %v960 = vshrl.u32 %v740, 16
      %v962 = vrot.slane %v960, 4
      %v963 = vshll.u32 %v740, 16
      %v965 = vrot.slane %v963, 5
      %v966 = vor.u32 %v962, %v965
      %v967 = vrot.slane %v966, 4
      %v969 = vshll.u32 %v741, 16
      %v971 = vrot.slane %v969, 5
      %v972 = vsel %vm766, %v967, %v971
      %v973 = vshrl.u32 %v741, 16
      %v975 = vrot.slane %v973, 4
      %v976 = vor.u32 %v975, %v971
      %v977 = vrot.slane %v976, 4
      %v979 = vshll.u32 %v742, 16
      %v981 = vrot.slane %v979, 5
      %v982 = vsel %vm766, %v977, %v981
      %v984 = vshrl.u32 %v743, 16
      %v986 = vrot.slane %v984, 4
      %v987 = vshll.u32 %v743, 16
      %v989 = vrot.slane %v987, 5
      %v990 = vor.u32 %v986, %v989
      %v991 = vrot.slane %v990, 4
      %v993 = vshll.u32 %v744, 16
      %v995 = vrot.slane %v993, 5
      %v996 = vsel %vm766, %v991, %v995
      %v997 = vshrl.u32 %v744, 16
      %v999 = vrot.slane %v997, 4
      %v1000 = vor.u32 %v999, %v995
      %v1001 = vrot.slane %v1000, 4
      %v1003 = vshll.u32 %v745, 16
      %v1005 = vrot.slane %v1003, 5
      %v1006 = vsel %vm766, %v1001, %v1005
      %v1008 = vshrl.u32 %v746, 16
      %v1010 = vrot.slane %v1008, 4
      %v1011 = vshll.u32 %v746, 16
      %v1013 = vrot.slane %v1011, 5
      %v1014 = vor.u32 %v1010, %v1013
      %v1015 = vrot.slane %v1014, 4
      %v1017 = vshll.u32 %v747, 16
      %v1019 = vrot.slane %v1017, 5
      %v1020 = vsel %vm766, %v1015, %v1019
      %v1021 = vshrl.u32 %v747, 16
      %v1023 = vrot.slane %v1021, 4
      %v1024 = vor.u32 %v1023, %v1019
      %v1025 = vrot.slane %v1024, 4
      %v1027 = vshll.u32 %v748, 16
      %v1029 = vrot.slane %v1027, 5
      %v1030 = vsel %vm766, %v1025, %v1029
      %v1032 = vshrl.u32 %v749, 16
      %v1034 = vrot.slane %v1032, 4
      %v1035 = vshll.u32 %v749, 16
      %v1037 = vrot.slane %v1035, 5
      %v1038 = vor.u32 %v1034, %v1037
      %v1039 = vrot.slane %v1038, 4
      %v1041 = vshll.u32 %v750, 16
      %v1043 = vrot.slane %v1041, 5
      %v1044 = vsel %vm766, %v1039, %v1043
      %v1045 = vshrl.u32 %v750, 16
      %v1047 = vrot.slane %v1045, 4
      %v1048 = vor.u32 %v1047, %v1043
      %v1049 = vrot.slane %v1048, 4
      %v1051 = vshll.u32 %v751, 16
      %v1053 = vrot.slane %v1051, 5
      %v1054 = vsel %vm766, %v1049, %v1053
      %v1056 = vshrl.u32 %v752, 16
      %v1058 = vrot.slane %v1056, 4
      %v1059 = vshll.u32 %v752, 16
      %v1061 = vrot.slane %v1059, 5
      %v1062 = vor.u32 %v1058, %v1061
      %v1063 = vrot.slane %v1062, 4
      %v1065 = vshll.u32 %v753, 16
      %v1067 = vrot.slane %v1065, 5
      %v1068 = vsel %vm766, %v1063, %v1067
      %v1069 = vshrl.u32 %v753, 16
      %v1071 = vrot.slane %v1069, 4
      %v1072 = vor.u32 %v1071, %v1067
      %v1073 = vrot.slane %v1072, 4
      %v1075 = vshll.u32 %v754, 16
      %v1077 = vrot.slane %v1075, 5
      %v1078 = vsel %vm766, %v1073, %v1077
      %v1080 = vshrl.u32 %v755, 16
      %v1082 = vrot.slane %v1080, 4
      %v1083 = vshll.u32 %v755, 16
      %v1085 = vrot.slane %v1083, 5
      %v1086 = vor.u32 %v1082, %v1085
      %v1087 = vrot.slane %v1086, 4
      %v1089 = vshll.u32 %v756, 16
      %v1091 = vrot.slane %v1089, 5
      %v1092 = vsel %vm766, %v1087, %v1091
      %v1093 = vshrl.u32 %v756, 16
      %v1095 = vrot.slane %v1093, 4
      %v1096 = vor.u32 %v1095, %v1091
      %v1097 = vrot.slane %v1096, 4
      %v1099 = vshll.u32 %v757, 16
      %v1101 = vrot.slane %v1099, 5
      %v1102 = vsel %vm766, %v1097, %v1101
      %v1104 = vshrl.u32 %v758, 16
      %v1106 = vrot.slane %v1104, 4
      %v1107 = vshll.u32 %v758, 16
      %v1109 = vrot.slane %v1107, 5
      %v1110 = vor.u32 %v1106, %v1109
      %v1111 = vrot.slane %v1110, 4
      %v1113 = vshll.u32 %v759, 16
      %v1115 = vrot.slane %v1113, 5
      %v1116 = vsel %vm766, %v1111, %v1115
      %v1117 = vshrl.u32 %v759, 16
      %v1119 = vrot.slane %v1117, 4
      %v1120 = vor.u32 %v1119, %v1115
      %v1121 = vrot.slane %v1120, 4
      %v1123 = vshll.u32 %v760, 16
      %v1125 = vrot.slane %v1123, 5
      %v1126 = vsel %vm766, %v1121, %v1125
      %v1128 = vshrl.u32 %v761, 16
      %v1130 = vrot.slane %v1128, 4
      %v1131 = vshll.u32 %v761, 16
      %v1133 = vrot.slane %v1131, 5
      %v1134 = vor.u32 %v1130, %v1133
      %v1135 = vrot.slane %v1134, 4
      %v1137 = vshll.u32 %v762, 16
      %v1139 = vrot.slane %v1137, 5
      %v1140 = vsel %vm766, %v1135, %v1139
      %v1141 = vshrl.u32 %v762, 16
      %v1143 = vrot.slane %v1141, 4
      %v1144 = vor.u32 %v1143, %v1139
      %v1145 = vrot.slane %v1144, 4
      %v1147 = vshll.u32 %v763, 16
      %v1149 = vrot.slane %v1147, 5
      %v1150 = vsel %vm766, %v1145, %v1149
      %v1151 = vld [vmem:[%s4] sm:$0xf]
      %v1152 = vld [vmem:[%s4 + $0x4] sm:$0xf]
      %v1153 = vld [vmem:[%s4 + $0x8] sm:$0xf]
      %v1154 = vld [vmem:[%s4 + $0xc] sm:$0xf]
      %v1155 = vld [vmem:[%s4 + $0x10] sm:$0xf]
      %v1156 = vld [vmem:[%s4 + $0x14] sm:$0xf]
      %v1157 = vld [vmem:[%s4 + $0x18] sm:$0xf]
      %v1158 = vld [vmem:[%s4 + $0x1c] sm:$0xf]
      %v1159 = vld [vmem:[%s4 + $0x20] sm:$0xf]
      %v1160 = vld [vmem:[%s4 + $0x24] sm:$0xf]
      %v1161 = vld [vmem:[%s4 + $0x28] sm:$0xf]
      %v1162 = vld [vmem:[%s4 + $0x2c] sm:$0xf]
      %v1163 = vld [vmem:[%s4 + $0x30] sm:$0xf]
      %v1164 = vld [vmem:[%s4 + $0x34] sm:$0xf]
      %v1165 = vld [vmem:[%s4 + $0x38] sm:$0xf]
      %v1166 = vld [vmem:[%s4 + $0x3c] sm:$0xf]
      %v1167 = vld [vmem:[%s5] sm:$0x1]
      %v1169 = vlaneseq
      %v1170 = vshrl.u32 %v1169, 7
      %v1171 = vsub.s32 0, %v1170
      %v1172 = vrot.slane %v1167, %v1171
      %v1174 = vunpack.c.l.b16 %v780
      %v1175 = vunpack.c.l.b16 %v790
      %v1176 = vunpack.c.l.b16 %v804
      %v1177 = vunpack.c.l.b16 %v814
      %v1178 = vunpack.c.l.b16 %v828
      %v1179 = vunpack.c.l.b16 %v838
      %v1180 = vunpack.c.l.b16 %v852
      %v1181 = vunpack.c.l.b16 %v862
      %v1182 = vunpack.c.l.b16 %v876
      %v1183 = vunpack.c.l.b16 %v886
      %v1184 = vunpack.c.l.b16 %v900
      %v1185 = vunpack.c.l.b16 %v910
      %v1186 = vunpack.c.l.b16 %v924
      %v1187 = vunpack.c.l.b16 %v934
      %v1188 = vunpack.c.l.b16 %v948
      %v1189 = vunpack.c.l.b16 %v958
      %v1190 = vunpack.c.l.b16 %v972
      %v1191 = vunpack.c.l.b16 %v982
      %v1192 = vunpack.c.l.b16 %v996
      %v1193 = vunpack.c.l.b16 %v1006
      %v1194 = vunpack.c.l.b16 %v1020
      %v1195 = vunpack.c.l.b16 %v1030
      %v1196 = vunpack.c.l.b16 %v1044
      %v1197 = vunpack.c.l.b16 %v1054
      %v1198 = vunpack.c.l.b16 %v1068
      %v1199 = vunpack.c.l.b16 %v1078
      %v1200 = vunpack.c.l.b16 %v1092
      %v1201 = vunpack.c.l.b16 %v1102
      %v1202 = vunpack.c.l.b16 %v1116
      %v1203 = vunpack.c.l.b16 %v1126
      %v1204 = vunpack.c.l.b16 %v1140
      %v1205 = vunpack.c.l.b16 %v1150
      %v1206 = vpack.c.b16 %v1175, %v1174
      %v1207 = vpack.c.b16 %v1177, %v1176
      %v1208 = vpack.c.b16 %v1179, %v1178
      %v1209 = vpack.c.b16 %v1181, %v1180
      %v1210 = vpack.c.b16 %v1183, %v1182
      %v1211 = vpack.c.b16 %v1185, %v1184
      %v1212 = vpack.c.b16 %v1187, %v1186
      %v1213 = vpack.c.b16 %v1189, %v1188
      %v1214 = vpack.c.b16 %v1191, %v1190
      %v1215 = vpack.c.b16 %v1193, %v1192
      %v1216 = vpack.c.b16 %v1195, %v1194
      %v1217 = vpack.c.b16 %v1197, %v1196
      %v1218 = vpack.c.b16 %v1199, %v1198
      %v1219 = vpack.c.b16 %v1201, %v1200
      %v1220 = vpack.c.b16 %v1203, %v1202
      %v1221 = vpack.c.b16 %v1205, %v1204
      %v1254 = vunpack.c.l.b16 %v1151
      %v1255 = vunpack.c.l.b16 %v1152
      %v1256 = vunpack.c.l.b16 %v1153
      %v1257 = vunpack.c.l.b16 %v1154
      %v1258 = vunpack.c.l.b16 %v1155
      %v1259 = vunpack.c.l.b16 %v1156
      %v1260 = vunpack.c.l.b16 %v1157
      %v1261 = vunpack.c.l.b16 %v1158
      %v1262 = vunpack.c.l.b16 %v1159
      %v1263 = vunpack.c.l.b16 %v1160
      %v1264 = vunpack.c.l.b16 %v1161
      %v1265 = vunpack.c.l.b16 %v1162
      %v1266 = vunpack.c.l.b16 %v1163
      %v1267 = vunpack.c.l.b16 %v1164
      %v1268 = vunpack.c.l.b16 %v1165
      %v1269 = vunpack.c.l.b16 %v1166
      %v1270 = vpack.c.b16 %v1255, %v1254
      %v1271 = vpack.c.b16 %v1257, %v1256
      %v1272 = vpack.c.b16 %v1259, %v1258
      %v1273 = vpack.c.b16 %v1261, %v1260
      %v1274 = vpack.c.b16 %v1263, %v1262
      %v1275 = vpack.c.b16 %v1265, %v1264
      %v1276 = vpack.c.b16 %v1267, %v1266
      %v1277 = vpack.c.b16 %v1269, %v1268
      %1286 = vmatprep.subr.bf16.mxu0 0
      %1287 = vmatpush1.bf16.msra.mxu0 %v1270
      %1288 = vmatprep.subr.bf16.mxu0 0
      %1289 = vmatpush1.bf16.msra.mxu0 %v1271
      %1290 = vmatprep.subr.bf16.mxu0 0
      %1291 = vmatpush1.bf16.msra.mxu0 %v1272
      %1292 = vmatprep.subr.bf16.mxu0 0
      %1293 = vmatpush1.bf16.msra.mxu0 %v1273
      %1294 = vmatprep.subr.bf16.mxu0 0
      %1295 = vmatpush1.bf16.msra.mxu0 %v1274
      %1296 = vmatprep.subr.bf16.mxu0 0
      %1297 = vmatpush1.bf16.msra.mxu0 %v1275
      %1298 = vmatprep.subr.bf16.mxu0 0
      %1299 = vmatpush1.bf16.msra.mxu0 %v1276
      %1300 = vmatprep.subr.bf16.mxu0 0
      %1301 = vmatpush1.bf16.msra.mxu0 %v1277
      %1302 = vmatprep.subr.bf16.mxu0 0
      %1303 = vmatpush1.bf16.msra.mxu0 0
      %1304 = vmatprep.subr.bf16.mxu0 0
      %1305 = vmatpush1.bf16.msra.mxu0 0
      %1306 = vmatprep.subr.bf16.mxu0 0
      %1307 = vmatpush1.bf16.msra.mxu0 0
      %1308 = vmatprep.subr.bf16.mxu0 0
      %1309 = vmatpush1.bf16.msra.mxu0 0
      %1310 = vmatprep.subr.bf16.mxu0 0
      %1311 = vmatpush1.bf16.msra.mxu0 0
      %1312 = vmatprep.subr.bf16.mxu0 0
      %1313 = vmatpush1.bf16.msra.mxu0 0
      %1314 = vmatprep.subr.bf16.mxu0 0
      %1315 = vmatpush1.bf16.msra.mxu0 0
      %1316 = vmatprep.subr.bf16.mxu0 0
      %1317 = vmatpush1.bf16.msra.mxu0 0
      %1318 = vmatprep.mubr.bf16.mxu0 0
      %1319 = vmatmul.mubr.bf16.gmra.mrb[0].mxu0 %v1206
      %v1320 = vpop.f32.mrb[0].mxu0
      %v1321 = vadd.f32 %v1172, %v1320
      %v1322 = vpop.f32.mrb[0].mxu0
      %v1323 = vpop.f32.mrb[0].mxu0
      %v1324 = vadd.f32 %v1172, %v1323
      %v1325 = vpop.f32.mrb[0].mxu0
      %1326 = vmatprep.mubr.bf16.mxu0 0
      %1327 = vmatmul.mubr.bf16.gmra.mrb[0].mxu0 %v1207
      %v1328 = vpop.f32.mrb[0].mxu0
      %v1329 = vadd.f32 %v1172, %v1328
      %v1330 = vpop.f32.mrb[0].mxu0
      %v1331 = vpop.f32.mrb[0].mxu0
      %v1332 = vadd.f32 %v1172, %v1331
      %v1333 = vpop.f32.mrb[0].mxu0
      %1334 = vmatprep.mubr.bf16.mxu0 0
      %1335 = vmatmul.mubr.bf16.gmra.mrb[0].mxu0 %v1208
      %v1336 = vpop.f32.mrb[0].mxu0
      %v1337 = vadd.f32 %v1172, %v1336
      %v1338 = vpop.f32.mrb[0].mxu0
      %v1339 = vpop.f32.mrb[0].mxu0
      %v1340 = vadd.f32 %v1172, %v1339
      %v1341 = vpop.f32.mrb[0].mxu0
      %1342 = vmatprep.mubr.bf16.mxu0 0
      %1343 = vmatmul.mubr.bf16.gmra.mrb[0].mxu0 %v1209
      %v1344 = vpop.f32.mrb[0].mxu0
      %v1345 = vadd.f32 %v1172, %v1344
      %v1346 = vpop.f32.mrb[0].mxu0
      %v1347 = vpop.f32.mrb[0].mxu0
      %v1348 = vadd.f32 %v1172, %v1347
      %v1349 = vpop.f32.mrb[0].mxu0
      %1350 = vmatprep.mubr.bf16.mxu0 0
      %1351 = vmatmul.mubr.bf16.gmra.mrb[0].mxu0 %v1210
      %v1352 = vpop.f32.mrb[0].mxu0
      %v1353 = vadd.f32 %v1172, %v1352
      %v1354 = vpop.f32.mrb[0].mxu0
      %v1355 = vpop.f32.mrb[0].mxu0
      %v1356 = vadd.f32 %v1172, %v1355
      %v1357 = vpop.f32.mrb[0].mxu0
      %1358 = vmatprep.mubr.bf16.mxu0 0
      %1359 = vmatmul.mubr.bf16.gmra.mrb[0].mxu0 %v1211
      %v1360 = vpop.f32.mrb[0].mxu0
      %v1361 = vadd.f32 %v1172, %v1360
      %v1362 = vpop.f32.mrb[0].mxu0
      %v1363 = vpop.f32.mrb[0].mxu0
      %v1364 = vadd.f32 %v1172, %v1363
      %v1365 = vpop.f32.mrb[0].mxu0
      %1366 = vmatprep.mubr.bf16.mxu0 0
      %1367 = vmatmul.mubr.bf16.gmra.mrb[0].mxu0 %v1212
      %v1368 = vpop.f32.mrb[0].mxu0
      %v1369 = vadd.f32 %v1172, %v1368
      %v1370 = vpop.f32.mrb[0].mxu0
      %v1371 = vpop.f32.mrb[0].mxu0
      %v1372 = vadd.f32 %v1172, %v1371
      %v1373 = vpop.f32.mrb[0].mxu0
      %1374 = vmatprep.mubr.bf16.mxu0 0
      %1375 = vmatmul.mubr.bf16.gmra.mrb[0].mxu0 %v1213
      %v1376 = vpop.f32.mrb[0].mxu0
      %v1377 = vadd.f32 %v1172, %v1376
      %v1378 = vpop.f32.mrb[0].mxu0
      %v1379 = vpop.f32.mrb[0].mxu0
      %v1380 = vadd.f32 %v1172, %v1379
      %v1381 = vpop.f32.mrb[0].mxu0
      %1382 = vmatprep.mubr.bf16.mxu0 0
      %1383 = vmatmul.mubr.bf16.gmra.mrb[0].mxu0 %v1214
      %v1384 = vpop.f32.mrb[0].mxu0
      %v1385 = vadd.f32 %v1172, %v1384
      %v1386 = vpop.f32.mrb[0].mxu0
      %v1387 = vpop.f32.mrb[0].mxu0
      %v1388 = vadd.f32 %v1172, %v1387
      %v1389 = vpop.f32.mrb[0].mxu0
      %1390 = vmatprep.mubr.bf16.mxu0 0
      %1391 = vmatmul.mubr.bf16.gmra.mrb[0].mxu0 %v1215
      %v1392 = vpop.f32.mrb[0].mxu0
      %v1393 = vadd.f32 %v1172, %v1392
      %v1394 = vpop.f32.mrb[0].mxu0
      %v1395 = vpop.f32.mrb[0].mxu0
      %v1396 = vadd.f32 %v1172, %v1395
      %v1397 = vpop.f32.mrb[0].mxu0
      %1398 = vmatprep.mubr.bf16.mxu0 0
      %1399 = vmatmul.mubr.bf16.gmra.mrb[0].mxu0 %v1216
      %v1400 = vpop.f32.mrb[0].mxu0
      %v1401 = vadd.f32 %v1172, %v1400
      %v1402 = vpop.f32.mrb[0].mxu0
      %v1403 = vpop.f32.mrb[0].mxu0
      %v1404 = vadd.f32 %v1172, %v1403
      %v1405 = vpop.f32.mrb[0].mxu0
      %1406 = vmatprep.mubr.bf16.mxu0 0
      %1407 = vmatmul.mubr.bf16.gmra.mrb[0].mxu0 %v1217
      %v1408 = vpop.f32.mrb[0].mxu0
      %v1409 = vadd.f32 %v1172, %v1408
      %v1410 = vpop.f32.mrb[0].mxu0
      %v1411 = vpop.f32.mrb[0].mxu0
      %v1412 = vadd.f32 %v1172, %v1411
      %v1413 = vpop.f32.mrb[0].mxu0
      %1414 = vmatprep.mubr.bf16.mxu0 0
      %1415 = vmatmul.mubr.bf16.gmra.mrb[0].mxu0 %v1218
      %v1416 = vpop.f32.mrb[0].mxu0
      %v1417 = vadd.f32 %v1172, %v1416
      %v1418 = vpop.f32.mrb[0].mxu0
      %v1419 = vpop.f32.mrb[0].mxu0
      %v1420 = vadd.f32 %v1172, %v1419
      %v1421 = vpop.f32.mrb[0].mxu0
      %1422 = vmatprep.mubr.bf16.mxu0 0
      %1423 = vmatmul.mubr.bf16.gmra.mrb[0].mxu0 %v1219
      %v1424 = vpop.f32.mrb[0].mxu0
      %v1425 = vadd.f32 %v1172, %v1424
      %v1426 = vpop.f32.mrb[0].mxu0
      %v1427 = vpop.f32.mrb[0].mxu0
      %v1428 = vadd.f32 %v1172, %v1427
      %v1429 = vpop.f32.mrb[0].mxu0
      %1430 = vmatprep.mubr.bf16.mxu0 0
      %1431 = vmatmul.mubr.bf16.gmra.mrb[0].mxu0 %v1220
      %v1432 = vpop.f32.mrb[0].mxu0
      %v1433 = vadd.f32 %v1172, %v1432
      %v1434 = vpop.f32.mrb[0].mxu0
      %v1435 = vpop.f32.mrb[0].mxu0
      %v1436 = vadd.f32 %v1172, %v1435
      %v1437 = vpop.f32.mrb[0].mxu0
      %1438 = vmatprep.mubr.bf16.mxu0 0
      %1439 = vmatmul.mubr.bf16.gmra.mrb[0].mxu0 %v1221
      %v1440 = vpop.f32.mrb[0].mxu0
      %v1441 = vadd.f32 %v1172, %v1440
      %v1442 = vpop.f32.mrb[0].mxu0
      %v1443 = vpop.f32.mrb[0].mxu0
      %v1444 = vadd.f32 %v1172, %v1443
      %v1445 = vpop.f32.mrb[0].mxu0
      %1446 = vdwg.mxu0
      %v1447 = vadd.f32 %v680, %v1321
      %v1448 = vadd.f32 %v681, %v1324
      %v1449 = vadd.f32 %v682, %v1329
      %v1450 = vadd.f32 %v683, %v1332
      %v1451 = vadd.f32 %v684, %v1337
      %v1452 = vadd.f32 %v685, %v1340
      %v1453 = vadd.f32 %v686, %v1345
      %v1454 = vadd.f32 %v687, %v1348
      %v1455 = vadd.f32 %v688, %v1353
      %v1456 = vadd.f32 %v689, %v1356
      %v1457 = vadd.f32 %v690, %v1361
      %v1458 = vadd.f32 %v691, %v1364
      %v1459 = vadd.f32 %v692, %v1369
      %v1460 = vadd.f32 %v693, %v1372
      %v1461 = vadd.f32 %v694, %v1377
      %v1462 = vadd.f32 %v695, %v1380
      %v1463 = vadd.f32 %v696, %v1385
      %v1464 = vadd.f32 %v697, %v1388
      %v1465 = vadd.f32 %v698, %v1393
      %v1466 = vadd.f32 %v699, %v1396
      %v1467 = vadd.f32 %v700, %v1401
      %v1468 = vadd.f32 %v701, %v1404
      %v1469 = vadd.f32 %v702, %v1409
      %v1470 = vadd.f32 %v703, %v1412
      %v1471 = vadd.f32 %v704, %v1417
      %v1472 = vadd.f32 %v705, %v1420
      %v1473 = vadd.f32 %v706, %v1425
      %v1474 = vadd.f32 %v707, %v1428
      %v1475 = vadd.f32 %v708, %v1433
      %v1476 = vadd.f32 %v709, %v1436
      %v1477 = vadd.f32 %v710, %v1441
      %v1478 = vadd.f32 %v711, %v1444
      %1479 = vst [vmem:[%s342] sm:$0xff] %v1447
      %1480 = vst [vmem:[%s342 + $0x8] sm:$0xff] %v1448
      %1481 = vst [vmem:[%s342 + $0x10] sm:$0xff] %v1449
      %1482 = vst [vmem:[%s342 + $0x18] sm:$0xff] %v1450
      %1483 = vst [vmem:[%s342 + $0x20] sm:$0xff] %v1451
      %1484 = vst [vmem:[%s342 + $0x28] sm:$0xff] %v1452
      %1485 = vst [vmem:[%s342 + $0x30] sm:$0xff] %v1453
      %1486 = vst [vmem:[%s342 + $0x38] sm:$0xff] %v1454
      %1487 = vst [vmem:[%s342 + $0x40] sm:$0xff] %v1455
      %1488 = vst [vmem:[%s342 + $0x48] sm:$0xff] %v1456
      %1489 = vst [vmem:[%s342 + $0x50] sm:$0xff] %v1457
      %1490 = vst [vmem:[%s342 + $0x58] sm:$0xff] %v1458
      %1491 = vst [vmem:[%s342 + $0x60] sm:$0xff] %v1459
      %1492 = vst [vmem:[%s342 + $0x68] sm:$0xff] %v1460
      %1493 = vst [vmem:[%s342 + $0x70] sm:$0xff] %v1461
      %1494 = vst [vmem:[%s342 + $0x78] sm:$0xff] %v1462
      %1495 = vst [vmem:[%s342 + $0x80] sm:$0xff] %v1463
      %1496 = vst [vmem:[%s342 + $0x88] sm:$0xff] %v1464
      %1497 = vst [vmem:[%s342 + $0x90] sm:$0xff] %v1465
      %1498 = vst [vmem:[%s342 + $0x98] sm:$0xff] %v1466
      %1499 = vst [vmem:[%s342 + $0xa0] sm:$0xff] %v1467
      %1500 = vst [vmem:[%s342 + $0xa8] sm:$0xff] %v1468
      %1501 = vst [vmem:[%s342 + $0xb0] sm:$0xff] %v1469
      %1502 = vst [vmem:[%s342 + $0xb8] sm:$0xff] %v1470
      %1503 = vst [vmem:[%s342 + $0xc0] sm:$0xff] %v1471
      %1504 = vst [vmem:[%s342 + $0xc8] sm:$0xff] %v1472
      %1505 = vst [vmem:[%s342 + $0xd0] sm:$0xff] %v1473
      %1506 = vst [vmem:[%s342 + $0xd8] sm:$0xff] %v1474
      %1507 = vst [vmem:[%s342 + $0xe0] sm:$0xff] %v1475
      %1508 = vst [vmem:[%s342 + $0xe8] sm:$0xff] %v1476
      %1509 = vst [vmem:[%s342 + $0xf0] sm:$0xff] %v1477
      %1510 = vst [vmem:[%s342 + $0xf8] sm:$0xff] %v1478
      %s1511 = smul.u32 16, %s22
      %p1512 = scmp.lt.s32.totalorder %s21, 1
      %s1513 = scalar_select %p1512, %s21, 1
      %p1514 = scmp.lt.s32.totalorder %s1511, 15
      %s1515 = scalar_select %p1514, %s1511, 15
      %s1516 = smul.addr %s1515, 2
      %s1517 = smul.addr %s1513, 32
      %s1518 = sadd.s32 %s1516, %s1517
      %s1519 = smul.addr %s1518, 8
      %s1520 = scalar_lea.vmem %s6, %s1519
      // Predicated region
      $region45: #{_lambda_.7} parent=43 // pred_check
        %p1521 = pneg %p197
      $region46: #{_lambda_.7} parent=43 // pred_check_branch
        %1523 = sbr.rel (%p1521) target = $region48
      $region47: #{_lambda_.7} parent=43 // pred_region
        %s1524 = smul.u32 16, %s22
      $region48: #{_lambda_.7} parent=43 // pred_fallthru
        _
    $region44: #{_lambda_.7} parent=5 // pred_fallthru
      _
    %p1525 = scmp.le.s32.totalorder 2, %s12
    // Predicated region
    $region49: #{_lambda_.7} parent=5 // pred_check
      %p1526 = pneg %p1525
    $region50: #{_lambda_.7} parent=5 // pred_check_branch
      %1528 = sbr.rel (%p1526) target = $region52
    $region51: #{_lambda_.7} parent=5 // pred_region
      %s1529 = ssub.s32 %s12, 2
      // Predicated region
      $region53: #{_lambda_.7} parent=51 // pred_check
        %p1530 = pneg %p203
      $region54: #{_lambda_.7} parent=51 // pred_check_branch
        %1532 = sbr.rel (%p1530) target = $region56
      $region55: #{_lambda_.7} parent=51 // pred_region
        %s1533 = smul.u32 16, %s24
        %p1534 = scmp.lt.s32.totalorder %s23, 1
        %s1535 = scalar_select %p1534, %s23, 1
        %p1536 = scmp.lt.s32.totalorder %s1533, 15
        %s1537 = scalar_select %p1536, %s1533, 15
        %s1538 = smul.addr %s1537, 2
        %s1539 = smul.addr %s1535, 32
        %s1540 = sadd.s32 %s1538, %s1539
        %s1541 = smul.addr %s1540, 8
        %s1542 = scalar_lea.vmem %s6, %s1541
      $region56: #{_lambda_.7} parent=51 // pred_fallthru
        _
    $region52: #{_lambda_.7} parent=5 // pred_fallthru
      _
  $region6: #{_lambda_.7} parent=0 // loop_footer
    %s16 = sadd.s32 1, %s12
  $region7: #{_lambda_.7} parent=0 // loop_footer_branch
    %11 = sbr.rel target = $region3
  $region8: #{_lambda_.7} parent=0 // loop_exit
    _

// kernel: _lambda_.4
$region0: #{_lambda_.4}
  #allocation0 [shape = 'u32[]', space=smem, size = 0x4, offset = 0x4, fixed_abs, tag = 'smem constant byte address 0x4 - core index']
  #allocation1 [shape = 'u32[144,128]{1,0:T(1,128)}', space=vmem, size = 0x12000, scoped, tag = 'internal scratch']
  #allocation2 [shape = 'f32[64,128]{1,0:T(8,128)}', space=vmem, size = 0x8000, scoped, tag = 'scratch operand']
  %s0 = inlined_call_operand.vmem [shape: bf16[2,18,18,128], index: 0, kind: input, shape index: {}]
  %s1 = inlined_call_operand.vmem [shape: bf16[9,128,128], index: 1, kind: input, shape index: {}]
  %s2 = inlined_call_operand.vmem [shape: f32[1,128], index: 2, kind: input, shape index: {}]
  %s3 = inlined_call_operand.vmem [shape: bf16[2,16,16,128], index: 3, kind: output, shape index: {0}]
  %s4 = inlined_call_operand.vmem [shape: f32[2,4,2,128], index: 4, kind: output, shape index: {1}]
  %5 = xla_tuple %s3, %s4
  %s6 = sld [smem:[#allocation0]]
  $region53: #{_lambda_.4} parent=0
    _
  %s8 = ssub.s32 1, %s6
  %s9 = scalar_select 0, %s8, %s6
  loop: start=0, step=1, limit=10
  $region2: #{_lambda_.4} parent=0 // loop_pre_header
    _
  $region3: #{_lambda_.4} parent=0 // loop_header
    %s11 = sphi 0, %s15
    %p12 = scmp.ge.s32.totalorder %s11, 10
    %s18 = sphi 0, %s30
    %s19 = sphi 0, %s26
    %s20 = sphi 0, %s18
    %s21 = sphi 0, %s19
    %s22 = sphi 0, %s20
    %s23 = sphi 0, %s21
    %s33 = sphi 0, %s35
    %s36 = sphi 0, %s33
    %s37 = sphi 0, %s36
    %s53 = sphi 0, %s37
    %s57 = sphi 0, %s57
    %s59 = sphi 0, %s57
    %s60 = sphi 0, %s59
    %s74 = sphi 0, %s60
    %s78 = sphi 0, %s78
    %s80 = sphi 0, %s78
    %s81 = sphi 0, %s80
    %s95 = sphi 0, %s81
    %s103 = sphi 0, %s105
    %s106 = sphi 0, %s103
    %s107 = sphi 0, %s106
    %s123 = sphi 0, %s107
    %s131 = sphi 0, %s133
    %s134 = sphi 0, %s131
    %s135 = sphi 0, %s134
    %s151 = sphi 0, %s135
  $region4: #{_lambda_.4} parent=0 // loop_header_branch
    %14 = sbr.rel (%p12) target = $region8
  $region5: #{_lambda_.4} parent=0 // loop_body
    %s16 = ssub.s32 %s11, 1
    %s17 = ssub.s32 %s11, 2
    %s24 = sadd.s32 1, %s19
    %p25 = scmp.ge.s32.totalorder %s24, 4
    %s26 = scalar_select %p25, 0, %s24
    %s27 = sadd.s32 1, %s18
    %s28 = scalar_select %p25, %s27, %s18
    %p29 = scmp.ge.s32.totalorder %s28, 2
    %s30 = scalar_select %p29, 0, %s28
    %s31 = ssub.s32 %s18, %s30
    %p32 = scmp.eq.s32.totalorder %s31, 0
    %s34 = sadd.s32 %s33, 1
    %s35 = scalar_select %p32, %s33, %s34
    %p38 = pneg %p32
    %p39 = scmp.eq.s32.totalorder %s11, 7
    %p40 = por %p38, %p39
    %p41 = scmp.ne.s32.totalorder %s33, %s36
    %p42 = scmp.eq.s32.totalorder %s11, 0
    %p43 = por %p41, %p42
    %p44 = scmp.ne.s32.totalorder %s33, %s36
    %p45 = scmp.eq.s32.totalorder %s16, 7
    %p46 = por %p44, %p45
    %p47 = scmp.ne.s32.totalorder %s36, %s37
    %p48 = scmp.eq.s32.totalorder %s16, 0
    %p49 = por %p47, %p48
    %p50 = scmp.ne.s32.totalorder %s36, %s37
    %p51 = scmp.eq.s32.totalorder %s17, 7
    %p52 = por %p50, %p51
    %p54 = scmp.ne.s32.totalorder %s37, %s53
    %p55 = scmp.eq.s32.totalorder %s17, 0
    %p56 = por %p54, %p55
    %s58 = sadd.s32 %s57, 1
    %p61 = scmp.eq.s32.totalorder %s11, 7
    %p62 = scmp.ne.s32.totalorder %s57, %s59
    %p63 = scmp.eq.s32.totalorder %s11, 0
    %p64 = por %p62, %p63
    %p65 = scmp.ne.s32.totalorder %s57, %s59
    %p66 = scmp.eq.s32.totalorder %s16, 7
    %p67 = por %p65, %p66
    %p68 = scmp.ne.s32.totalorder %s59, %s60
    %p69 = scmp.eq.s32.totalorder %s16, 0
    %p70 = por %p68, %p69
    %p71 = scmp.ne.s32.totalorder %s59, %s60
    %p72 = scmp.eq.s32.totalorder %s17, 7
    %p73 = por %p71, %p72
    %p75 = scmp.ne.s32.totalorder %s60, %s74
    %p76 = scmp.eq.s32.totalorder %s17, 0
    %p77 = por %p75, %p76
    %s79 = sadd.s32 %s78, 1
    %p82 = scmp.eq.s32.totalorder %s11, 7
    %p83 = scmp.ne.s32.totalorder %s78, %s80
    %p84 = scmp.eq.s32.totalorder %s11, 0
    %p85 = por %p83, %p84
    %p86 = scmp.ne.s32.totalorder %s78, %s80
    %p87 = scmp.eq.s32.totalorder %s16, 7
    %p88 = por %p86, %p87
    %p89 = scmp.ne.s32.totalorder %s80, %s81
    %p90 = scmp.eq.s32.totalorder %s16, 0
    %p91 = por %p89, %p90
    %p92 = scmp.ne.s32.totalorder %s80, %s81
    %p93 = scmp.eq.s32.totalorder %s17, 7
    %p94 = por %p92, %p93
    %p96 = scmp.ne.s32.totalorder %s81, %s95
    %p97 = scmp.eq.s32.totalorder %s17, 0
    %p98 = por %p96, %p97
    %s99 = ssub.s32 %s18, %s30
    %s100 = ssub.s32 %s19, %s26
    %s101 = sor.u32 %s99, %s100
    %p102 = scmp.eq.s32.totalorder %s101, 0
    %s104 = sadd.s32 %s103, 1
    %s105 = scalar_select %p102, %s103, %s104
    %p108 = pneg %p102
    %p109 = scmp.eq.s32.totalorder %s11, 7
    %p110 = por %p108, %p109
    %p111 = scmp.ne.s32.totalorder %s103, %s106
    %p112 = scmp.eq.s32.totalorder %s11, 0
    %p113 = por %p111, %p112
    %p114 = scmp.ne.s32.totalorder %s103, %s106
    %p115 = scmp.eq.s32.totalorder %s16, 7
    %p116 = por %p114, %p115
    %p117 = scmp.ne.s32.totalorder %s106, %s107
    %p118 = scmp.eq.s32.totalorder %s16, 0
    %p119 = por %p117, %p118
    %p120 = scmp.ne.s32.totalorder %s106, %s107
    %p121 = scmp.eq.s32.totalorder %s17, 7
    %p122 = por %p120, %p121
    %p124 = scmp.ne.s32.totalorder %s107, %s123
    %p125 = scmp.eq.s32.totalorder %s17, 0
    %p126 = por %p124, %p125
    %s127 = ssub.s32 %s18, %s30
    %s128 = ssub.s32 %s19, %s26
    %s129 = sor.u32 %s127, %s128
    %p130 = scmp.eq.s32.totalorder %s129, 0
    %s132 = sadd.s32 %s131, 1
    %s133 = scalar_select %p130, %s131, %s132
    %p136 = pneg %p130
    %p137 = scmp.eq.s32.totalorder %s11, 7
    %p138 = por %p136, %p137
    %p139 = scmp.ne.s32.totalorder %s131, %s134
    %p140 = scmp.eq.s32.totalorder %s11, 0
    %p141 = por %p139, %p140
    %p142 = scmp.ne.s32.totalorder %s131, %s134
    %p143 = scmp.eq.s32.totalorder %s16, 7
    %p144 = por %p142, %p143
    %p145 = scmp.ne.s32.totalorder %s134, %s135
    %p146 = scmp.eq.s32.totalorder %s16, 0
    %p147 = por %p145, %p146
    %p148 = scmp.ne.s32.totalorder %s134, %s135
    %p149 = scmp.eq.s32.totalorder %s17, 7
    %p150 = por %p148, %p149
    %p152 = scmp.ne.s32.totalorder %s135, %s151
    %p153 = scmp.eq.s32.totalorder %s17, 0
    %p154 = por %p152, %p153
    %p155 = scmp.le.s32.totalorder 1, %s11
    %p156 = scmp.lt.s32.totalorder %s11, 9
    %p157 = pnand %p155, %p156
    %p158 = pneg %p157
    // Predicated region
    $region9: #{_lambda_.4} parent=5 // pred_check
      _
    $region10: #{_lambda_.4} parent=5 // pred_check_branch
      %160 = sbr.rel (%p157) target = $region12
    $region11: #{_lambda_.4} parent=5 // pred_region
      %s161 = ssub.s32 %s11, 1
      // Predicated region
      $region13: #{_lambda_.4} parent=11 // pred_check
        %p162 = pneg %p70
      $region14: #{_lambda_.4} parent=11 // pred_check_branch
        %164 = sbr.rel (%p162) target = $region16
      $region15: #{_lambda_.4} parent=11 // pred_region
        _
      $region16: #{_lambda_.4} parent=11 // pred_fallthru
        _
      // Predicated region
      $region17: #{_lambda_.4} parent=11 // pred_check
        %p165 = pneg %p91
      $region18: #{_lambda_.4} parent=11 // pred_check_branch
        %167 = sbr.rel (%p165) target = $region20
      $region19: #{_lambda_.4} parent=11 // pred_region
        _
      $region20: #{_lambda_.4} parent=11 // pred_fallthru
        _
    $region12: #{_lambda_.4} parent=5 // pred_fallthru
      _
    %p168 = scmp.lt.s32.totalorder %s11, 8
    // Predicated region
    $region21: #{_lambda_.4} parent=5 // pred_check
      %p169 = pneg %p168
    $region22: #{_lambda_.4} parent=5 // pred_check_branch
      %171 = sbr.rel (%p169) target = $region24
    $region23: #{_lambda_.4} parent=5 // pred_region
      // Predicated region
      $region25: #{_lambda_.4} parent=23 // pred_check
        %p172 = pneg %p43
      $region26: #{_lambda_.4} parent=23 // pred_check_branch
        %174 = sbr.rel (%p172) target = $region28
      $region27: #{_lambda_.4} parent=23 // pred_region
        %p175 = scmp.lt.s32.totalorder %s18, 1
        %s176 = scalar_select %p175, %s18, 1
        %s177 = smul.addr %s176, 54
        %s178 = smul.addr %s177, 4
        %s179 = scalar_lea.vmem %s0, %s178
      $region28: #{_lambda_.4} parent=23 // pred_fallthru
        _
    $region24: #{_lambda_.4} parent=5 // pred_fallthru
      _
    %p180 = scmp.le.s32.totalorder 1, %s11
    %p181 = scmp.lt.s32.totalorder %s11, 9
    %p182 = pnand %p180, %p181
    %p183 = pneg %p182
    // Predicated region
    $region29: #{_lambda_.4} parent=5 // pred_check
      _
    $region30: #{_lambda_.4} parent=5 // pred_check_branch
      %185 = sbr.rel (%p182) target = $region32
    $region31: #{_lambda_.4} parent=5 // pred_region
      %s186 = ssub.s32 %s11, 1
      %p187 = scmp.lt.s32.totalorder %s20, 1
      %s188 = scalar_select %p187, %s20, 1
      %s189 = smul.addr %s188, 54
      %s190 = smul.addr %s189, 4
      %s191 = scalar_lea.vmem %s0, %s190
      %p192 = pneg %p49
      %p193 = pneg %p46
      %p194 = pneg %p70
      %p195 = pneg %p67
      %p196 = pneg %p91
      %p197 = pneg %p88
      %p198 = pneg %p119
      %p199 = pneg %p116
      %s200 = smul.u32 4, %s21
      %p201 = scmp.lt.s32.totalorder %s20, 1
      %s202 = scalar_select %p201, %s20, 1
      %p203 = scmp.lt.s32.totalorder %s200, 15
      %s204 = scalar_select %p203, %s200, 15
      %s205 = smul.addr %s204, 2
      %s206 = smul.addr %s202, 32
      %s207 = sadd.s32 %s205, %s206
      %s208 = smul.addr %s207, 4
      %s209 = scalar_lea.vmem %s3, %s208
      %p210 = pneg %p147
      %p211 = pneg %p144
      %p212 = scmp.lt.s32.totalorder %s20, 1
      %s213 = scalar_select %p212, %s20, 1
      %p214 = scmp.lt.s32.totalorder %s21, 3
      %s215 = scalar_select %p214, %s21, 3
      %s216 = smul.addr %s213, 4
      %s217 = sadd.s32 %s215, %s216
      %s218 = smul.addr %s217, 2
      %s219 = scalar_lea.vmem %s4, %s218
      %p220 = scmp.lt.s32.totalorder %s20, 1
      %s221 = scalar_select %p220, %s20, 1
      %s222 = smul.addr %s221, 54
      %s223 = smul.addr %s222, 4
      %s224 = scalar_lea.vmem %s0, %s223
      %s225 = smul.u32 4, %s21
      %p226 = scmp.lt.s32.totalorder %s20, 1
      %s227 = scalar_select %p226, %s20, 1
      %p228 = scmp.lt.s32.totalorder %s225, 15
      %s229 = scalar_select %p228, %s225, 15
      %s230 = smul.addr %s229, 2
      %s231 = smul.addr %s227, 32
      %s232 = sadd.s32 %s230, %s231
      %s233 = smul.addr %s232, 4
      %s234 = scalar_lea.vmem %s3, %s233
      %s235 = smul.u32 4, %s21
      %p236 = scmp.lt.s32.totalorder %s20, 1
      %s237 = scalar_select %p236, %s20, 1
      %p238 = scmp.lt.s32.totalorder %s21, 3
      %s239 = scalar_select %p238, %s21, 3
      %s240 = smul.addr %s237, 4
      %s241 = sadd.s32 %s239, %s240
      %s242 = smul.addr %s241, 2
      %s243 = scalar_lea.vmem %s4, %s242
      %s245 = smul.u32 %s21, 4
      %s246 = smul.u32 %s245, 3
      %s247 = smul.addr %s246, 4
      %s248 = scalar_lea.vmem %s224, %s247
      %v249 = vld [vmem:[%s248] sm:$0xf]
      %v250 = vld [vmem:[%s248 + $0x4] sm:$0xf]
      %v251 = vld [vmem:[%s248 + $0xc] sm:$0xf]
      %v252 = vld [vmem:[%s248 + $0x10] sm:$0xf]
      %v253 = vld [vmem:[%s248 + $0x18] sm:$0xf]
      %v254 = vld [vmem:[%s248 + $0x1c] sm:$0xf]
      %v255 = vld [vmem:[%s248 + $0x24] sm:$0xf]
      %v256 = vld [vmem:[%s248 + $0x28] sm:$0xf]
      %v257 = vld [vmem:[%s1] sm:$0xf]
      %v258 = vld [vmem:[%s1 + $0x4] sm:$0xf]
      %v259 = vld [vmem:[%s1 + $0x8] sm:$0xf]
      %v260 = vld [vmem:[%s1 + $0xc] sm:$0xf]
      %v261 = vld [vmem:[%s1 + $0x10] sm:$0xf]
      %v262 = vld [vmem:[%s1 + $0x14] sm:$0xf]
      %v263 = vld [vmem:[%s1 + $0x18] sm:$0xf]
      %v264 = vld [vmem:[%s1 + $0x1c] sm:$0xf]
      %v265 = vld [vmem:[%s1 + $0x20] sm:$0xf]
      %v266 = vld [vmem:[%s1 + $0x24] sm:$0xf]
      %v267 = vld [vmem:[%s1 + $0x28] sm:$0xf]
      %v268 = vld [vmem:[%s1 + $0x2c] sm:$0xf]
      %v269 = vld [vmem:[%s1 + $0x30] sm:$0xf]
      %v270 = vld [vmem:[%s1 + $0x34] sm:$0xf]
      %v271 = vld [vmem:[%s1 + $0x38] sm:$0xf]
      %v272 = vld [vmem:[%s1 + $0x3c] sm:$0xf]
      %v281 = vunpack.c.l.b16 %v249
      %v282 = vunpack.c.l.b16 %v250
      %v283 = vunpack.c.l.b16 %v251
      %v284 = vunpack.c.l.b16 %v252
      %v285 = vunpack.c.l.b16 %v253
      %v286 = vunpack.c.l.b16 %v254
      %v287 = vunpack.c.l.b16 %v255
      %v288 = vunpack.c.l.b16 %v256
      %v289 = vpack.c.b16 %v282, %v281
      %v290 = vpack.c.b16 %v284, %v283
      %v291 = vpack.c.b16 %v286, %v285
      %v292 = vpack.c.b16 %v288, %v287
      %v313 = vunpack.c.l.b16 %v257
      %v314 = vunpack.c.l.b16 %v258
      %v315 = vunpack.c.l.b16 %v259
      %v316 = vunpack.c.l.b16 %v260
      %v317 = vunpack.c.l.b16 %v261
      %v318 = vunpack.c.l.b16 %v262
      %v319 = vunpack.c.l.b16 %v263
      %v320 = vunpack.c.l.b16 %v264
      %v321 = vunpack.c.l.b16 %v265
      %v322 = vunpack.c.l.b16 %v266
      %v323 = vunpack.c.l.b16 %v267
      %v324 = vunpack.c.l.b16 %v268
      %v325 = vunpack.c.l.b16 %v269
      %v326 = vunpack.c.l.b16 %v270
      %v327 = vunpack.c.l.b16 %v271
      %v328 = vunpack.c.l.b16 %v272
      %v329 = vpack.c.b16 %v314, %v313
      %v330 = vpack.c.b16 %v316, %v315
      %v331 = vpack.c.b16 %v318, %v317
      %v332 = vpack.c.b16 %v320, %v319
      %v333 = vpack.c.b16 %v322, %v321
      %v334 = vpack.c.b16 %v324, %v323
      %v335 = vpack.c.b16 %v326, %v325
      %v336 = vpack.c.b16 %v328, %v327
      %345 = vmatprep.subr.bf16.mxu0 0
      %346 = vmatpush1.bf16.msra.mxu0 %v329
      %347 = vmatprep.subr.bf16.mxu0 0
      %348 = vmatpush1.bf16.msra.mxu0 %v330
      %349 = vmatprep.subr.bf16.mxu0 0
      %350 = vmatpush1.bf16.msra.mxu0 %v331
      %351 = vmatprep.subr.bf16.mxu0 0
      %352 = vmatpush1.bf16.msra.mxu0 %v332
      %353 = vmatprep.subr.bf16.mxu0 0
      %354 = vmatpush1.bf16.msra.mxu0 %v333
      %355 = vmatprep.subr.bf16.mxu0 0
      %356 = vmatpush1.bf16.msra.mxu0 %v334
      %357 = vmatprep.subr.bf16.mxu0 0
      %358 = vmatpush1.bf16.msra.mxu0 %v335
      %359 = vmatprep.subr.bf16.mxu0 0
      %360 = vmatpush1.bf16.msra.mxu0 %v336
      %361 = vmatprep.subr.bf16.mxu0 0
      %362 = vmatpush1.bf16.msra.mxu0 0
      %363 = vmatprep.subr.bf16.mxu0 0
      %364 = vmatpush1.bf16.msra.mxu0 0
      %365 = vmatprep.subr.bf16.mxu0 0
      %366 = vmatpush1.bf16.msra.mxu0 0
      %367 = vmatprep.subr.bf16.mxu0 0
      %368 = vmatpush1.bf16.msra.mxu0 0
      %369 = vmatprep.subr.bf16.mxu0 0
      %370 = vmatpush1.bf16.msra.mxu0 0
      %371 = vmatprep.subr.bf16.mxu0 0
      %372 = vmatpush1.bf16.msra.mxu0 0
      %373 = vmatprep.subr.bf16.mxu0 0
      %374 = vmatpush1.bf16.msra.mxu0 0
      %375 = vmatprep.subr.bf16.mxu0 0
      %376 = vmatpush1.bf16.msra.mxu0 0
      %377 = vmatprep.mubr.bf16.mxu0 0
      %378 = vmatmul.mubr.bf16.gmra.mrb[0].mxu0 %v289
      %v379 = vpop.f32.mrb[0].mxu0
      %v380 = vadd.f32 0.0, %v379
      %v381 = vpop.f32.mrb[0].mxu0
      %v382 = vpop.f32.mrb[0].mxu0
      %v383 = vadd.f32 0.0, %v382
      %v384 = vpop.f32.mrb[0].mxu0
      %385 = vmatprep.mubr.bf16.mxu0 0
      %386 = vmatmul.mubr.bf16.gmra.mrb[0].mxu0 %v290
      %v387 = vpop.f32.mrb[0].mxu0
      %v388 = vadd.f32 0.0, %v387
      %v389 = vpop.f32.mrb[0].mxu0
      %v390 = vpop.f32.mrb[0].mxu0
      %v391 = vadd.f32 0.0, %v390
      %v392 = vpop.f32.mrb[0].mxu0
      %393 = vmatprep.mubr.bf16.mxu0 0
      %394 = vmatmul.mubr.bf16.gmra.mrb[0].mxu0 %v291
      %v395 = vpop.f32.mrb[0].mxu0
      %v396 = vadd.f32 0.0, %v395
      %v397 = vpop.f32.mrb[0].mxu0
      %v398 = vpop.f32.mrb[0].mxu0
      %v399 = vadd.f32 0.0, %v398
      %v400 = vpop.f32.mrb[0].mxu0
      %401 = vmatprep.mubr.bf16.mxu0 0
      %402 = vmatmul.mubr.bf16.gmra.mrb[0].mxu0 %v292
      %v403 = vpop.f32.mrb[0].mxu0
      %v404 = vadd.f32 0.0, %v403
      %v405 = vpop.f32.mrb[0].mxu0
      %v406 = vpop.f32.mrb[0].mxu0
      %v407 = vadd.f32 0.0, %v406
      %v408 = vpop.f32.mrb[0].mxu0
      %409 = vdwg.mxu0
      %410 = vst [vmem:[#allocation2] sm:$0xff] %v380
      %411 = vst [vmem:[#allocation2 + $0x8] sm:$0xff] %v383
      %412 = vst [vmem:[#allocation2 + $0x10] sm:$0xff] %v388
      %413 = vst [vmem:[#allocation2 + $0x18] sm:$0xff] %v391
      %414 = vst [vmem:[#allocation2 + $0x20] sm:$0xff] %v396
      %415 = vst [vmem:[#allocation2 + $0x28] sm:$0xff] %v399
      %416 = vst [vmem:[#allocation2 + $0x30] sm:$0xff] %v404
      %417 = vst [vmem:[#allocation2 + $0x38] sm:$0xff] %v407
      %v418 = vld [vmem:[%s248] sm:$0xf]
      %v419 = vld [vmem:[%s248 + $0x4] sm:$0xf]
      %v420 = vld [vmem:[%s248 + $0x8] sm:$0x1]
      %v421 = vld [vmem:[%s248 + $0xc] sm:$0xf]
      %v422 = vld [vmem:[%s248 + $0x10] sm:$0xf]
      %v423 = vld [vmem:[%s248 + $0x14] sm:$0x1]
      %v424 = vld [vmem:[%s248 + $0x18] sm:$0xf]
      %v425 = vld [vmem:[%s248 + $0x1c] sm:$0xf]
      %v426 = vld [vmem:[%s248 + $0x20] sm:$0x1]
      %v427 = vld [vmem:[%s248 + $0x24] sm:$0xf]
      %v428 = vld [vmem:[%s248 + $0x28] sm:$0xf]
      %v429 = vld [vmem:[%s248 + $0x2c] sm:$0x1]
      %vm430 = vsmask.f32 3328
      %vm431 = vsmask.f32 7440
      %vm432 = vmor %vm430, %vm431
      %v434 = vshrl.u32 %v418, 16
      %v436 = vrot.slane %v434, 4
      %v437 = vshll.u32 %v418, 16
      %v439 = vrot.slane %v437, 5
      %v440 = vor.u32 %v436, %v439
      %v441 = vrot.slane %v440, 4
      %v443 = vshll.u32 %v419, 16
      %v445 = vrot.slane %v443, 5
      %v446 = vsel %vm432, %v441, %v445
      %v447 = vshrl.u32 %v419, 16
      %v449 = vrot.slane %v447, 4
      %v450 = vor.u32 %v449, %v445
      %v451 = vrot.slane %v450, 4
      %v453 = vshll.u32 %v420, 16
      %v455 = vrot.slane %v453, 5
      %v456 = vsel %vm432, %v451, %v455
      %v458 = vshrl.u32 %v421, 16
      %v460 = vrot.slane %v458, 4
      %v461 = vshll.u32 %v421, 16
      %v463 = vrot.slane %v461, 5
      %v464 = vor.u32 %v460, %v463
      %v465 = vrot.slane %v464, 4
      %v467 = vshll.u32 %v422, 16
      %v469 = vrot.slane %v467, 5
      %v470 = vsel %vm432, %v465, %v469
      %v471 = vshrl.u32 %v422, 16
      %v473 = vrot.slane %v471, 4
      %v474 = vor.u32 %v473, %v469
      %v475 = vrot.slane %v474, 4
      %v477 = vshll.u32 %v423, 16
      %v479 = vrot.slane %v477, 5
      %v480 = vsel %vm432, %v475, %v479
      %v482 = vshrl.u32 %v424, 16
      %v484 = vrot.slane %v482, 4
      %v485 = vshll.u32 %v424, 16
      %v487 = vrot.slane %v485, 5
      %v488 = vor.u32 %v484, %v487
      %v489 = vrot.slane %v488, 4
      %v491 = vshll.u32 %v425, 16
      %v493 = vrot.slane %v491, 5
      %v494 = vsel %vm432, %v489, %v493
      %v495 = vshrl.u32 %v425, 16
      %v497 = vrot.slane %v495, 4
      %v498 = vor.u32 %v497, %v493
      %v499 = vrot.slane %v498, 4
      %v501 = vshll.u32 %v426, 16
      %v503 = vrot.slane %v501, 5
      %v504 = vsel %vm432, %v499, %v503
      %v506 = vshrl.u32 %v427, 16
      %v508 = vrot.slane %v506, 4
      %v509 = vshll.u32 %v427, 16
      %v511 = vrot.slane %v509, 5
      %v512 = vor.u32 %v508, %v511
      %v513 = vrot.slane %v512, 4
      %v515 = vshll.u32 %v428, 16
      %v517 = vrot.slane %v515, 5
      %v518 = vsel %vm432, %v513, %v517
      %v519 = vshrl.u32 %v428, 16
      %v521 = vrot.slane %v519, 4
      %v522 = vor.u32 %v521, %v517
      %v523 = vrot.slane %v522, 4
      %v525 = vshll.u32 %v429, 16
      %v527 = vrot.slane %v525, 5
      %v528 = vsel %vm432, %v523, %v527
      %s529 = scalar_lea.vmem %s1, 64
      %v530 = vld [vmem:[%s529] sm:$0xf]
      %v531 = vld [vmem:[%s529 + $0x4] sm:$0xf]
      %v532 = vld [vmem:[%s529 + $0x8] sm:$0xf]
      %v533 = vld [vmem:[%s529 + $0xc] sm:$0xf]
      %v534 = vld [vmem:[%s529 + $0x10] sm:$0xf]
      %v535 = vld [vmem:[%s529 + $0x14] sm:$0xf]
      %v536 = vld [vmem:[%s529 + $0x18] sm:$0xf]
      %v537 = vld [vmem:[%s529 + $0x1c] sm:$0xf]
      %v538 = vld [vmem:[%s529 + $0x20] sm:$0xf]
      %v539 = vld [vmem:[%s529 + $0x24] sm:$0xf]
      %v540 = vld [vmem:[%s529 + $0x28] sm:$0xf]
      %v541 = vld [vmem:[%s529 + $0x2c] sm:$0xf]
      %v542 = vld [vmem:[%s529 + $0x30] sm:$0xf]
      %v543 = vld [vmem:[%s529 + $0x34] sm:$0xf]
      %v544 = vld [vmem:[%s529 + $0x38] sm:$0xf]
      %v545 = vld [vmem:[%s529 + $0x3c] sm:$0xf]
      %v546 = vunpack.c.l.b16 %v446
      %v547 = vunpack.c.l.b16 %v456
      %v548 = vunpack.c.l.b16 %v470
      %v549 = vunpack.c.l.b16 %v480
      %v550 = vunpack.c.l.b16 %v494
      %v551 = vunpack.c.l.b16 %v504
      %v552 = vunpack.c.l.b16 %v518
      %v553 = vunpack.c.l.b16 %v528
      %v554 = vpack.c.b16 %v547, %v546
      %v555 = vpack.c.b16 %v549, %v548
      %v556 = vpack.c.b16 %v551, %v550
      %v557 = vpack.c.b16 %v553, %v552
      %v578 = vunpack.c.l.b16 %v530
      %v579 = vunpack.c.l.b16 %v531
      %v580 = vunpack.c.l.b16 %v532
      %v581 = vunpack.c.l.b16 %v533
      %v582 = vunpack.c.l.b16 %v534
      %v583 = vunpack.c.l.b16 %v535
      %v584 = vunpack.c.l.b16 %v536
      %v585 = vunpack.c.l.b16 %v537
      %v586 = vunpack.c.l.b16 %v538
      %v587 = vunpack.c.l.b16 %v539
      %v588 = vunpack.c.l.b16 %v540
      %v589 = vunpack.c.l.b16 %v541
      %v590 = vunpack.c.l.b16 %v542
      %v591 = vunpack.c.l.b16 %v543
      %v592 = vunpack.c.l.b16 %v544
      %v593 = vunpack.c.l.b16 %v545
      %v594 = vpack.c.b16 %v579, %v578
      %v595 = vpack.c.b16 %v581, %v580
      %v596 = vpack.c.b16 %v583, %v582
      %v597 = vpack.c.b16 %v585, %v584
      %v598 = vpack.c.b16 %v587, %v586
      %v599 = vpack.c.b16 %v589, %v588
      %v600 = vpack.c.b16 %v591, %v590
      %v601 = vpack.c.b16 %v593, %v592
      %610 = vmatprep.subr.bf16.mxu0 0
      %611 = vmatpush1.bf16.msra.mxu0 %v594
      %612 = vmatprep.subr.bf16.mxu0 0
      %613 = vmatpush1.bf16.msra.mxu0 %v595
      %614 = vmatprep.subr.bf16.mxu0 0
      %615 = vmatpush1.bf16.msra.mxu0 %v596
      %616 = vmatprep.subr.bf16.mxu0 0
      %617 = vmatpush1.bf16.msra.mxu0 %v597
      %618 = vmatprep.subr.bf16.mxu0 0
      %619 = vmatpush1.bf16.msra.mxu0 %v598
      %620 = vmatprep.subr.bf16.mxu0 0
      %621 = vmatpush1.bf16.msra.mxu0 %v599
      %622 = vmatprep.subr.bf16.mxu0 0
      %623 = vmatpush1.bf16.msra.mxu0 %v600
      %624 = vmatprep.subr.bf16.mxu0 0
      %625 = vmatpush1.bf16.msra.mxu0 %v601
      %626 = vmatprep.subr.bf16.mxu0 0
      %627 = vmatpush1.bf16.msra.mxu0 0
      %628 = vmatprep.subr.bf16.mxu0 0
      %629 = vmatpush1.bf16.msra.mxu0 0
      %630 = vmatprep.subr.bf16.mxu0 0
      %631 = vmatpush1.bf16.msra.mxu0 0
      %632 = vmatprep.subr.bf16.mxu0 0
      %633 = vmatpush1.bf16.msra.mxu0 0
      %634 = vmatprep.subr.bf16.mxu0 0
      %635 = vmatpush1.bf16.msra.mxu0 0
      %636 = vmatprep.subr.bf16.mxu0 0
      %637 = vmatpush1.bf16.msra.mxu0 0
      %638 = vmatprep.subr.bf16.mxu0 0
      %639 = vmatpush1.bf16.msra.mxu0 0
      %640 = vmatprep.subr.bf16.mxu0 0
      %641 = vmatpush1.bf16.msra.mxu0 0
      %642 = vmatprep.mubr.bf16.mxu0 0
      %643 = vmatmul.mubr.bf16.gmra.mrb[0].mxu0 %v554
      %v644 = vpop.f32.mrb[0].mxu0
      %v645 = vadd.f32 0.0, %v644
      %v646 = vpop.f32.mrb[0].mxu0
      %v647 = vpop.f32.mrb[0].mxu0
      %v648 = vadd.f32 0.0, %v647
      %v649 = vpop.f32.mrb[0].mxu0
      %650 = vmatprep.mubr.bf16.mxu0 0
      %651 = vmatmul.mubr.bf16.gmra.mrb[0].mxu0 %v555
      %v652 = vpop.f32.mrb[0].mxu0
      %v653 = vadd.f32 0.0, %v652
      %v654 = vpop.f32.mrb[0].mxu0
      %v655 = vpop.f32.mrb[0].mxu0
      %v656 = vadd.f32 0.0, %v655
      %v657 = vpop.f32.mrb[0].mxu0
      %658 = vmatprep.mubr.bf16.mxu0 0
      %659 = vmatmul.mubr.bf16.gmra.mrb[0].mxu0 %v556
      %v660 = vpop.f32.mrb[0].mxu0
      %v661 = vadd.f32 0.0, %v660
      %v662 = vpop.f32.mrb[0].mxu0
      %v663 = vpop.f32.mrb[0].mxu0
      %v664 = vadd.f32 0.0, %v663
      %v665 = vpop.f32.mrb[0].mxu0
      %666 = vmatprep.mubr.bf16.mxu0 0
      %667 = vmatmul.mubr.bf16.gmra.mrb[0].mxu0 %v557
      %v668 = vpop.f32.mrb[0].mxu0
      %v669 = vadd.f32 0.0, %v668
      %v670 = vpop.f32.mrb[0].mxu0
      %v671 = vpop.f32.mrb[0].mxu0
      %v672 = vadd.f32 0.0, %v671
      %v673 = vpop.f32.mrb[0].mxu0
      %674 = vdwg.mxu0
      %v675 = vld [vmem:[#allocation2] sm:$0xff]
      %v676 = vld [vmem:[#allocation2 + $0x8] sm:$0xff]
      %v677 = vld [vmem:[#allocation2 + $0x10] sm:$0xff]
      %v678 = vld [vmem:[#allocation2 + $0x18] sm:$0xff]
      %v679 = vld [vmem:[#allocation2 + $0x20] sm:$0xff]
      %v680 = vld [vmem:[#allocation2 + $0x28] sm:$0xff]
      %v681 = vld [vmem:[#allocation2 + $0x30] sm:$0xff]
      %v682 = vld [vmem:[#allocation2 + $0x38] sm:$0xff]
      %v683 = vadd.f32 %v675, %v645
      %v684 = vadd.f32 %v676, %v648
      %v685 = vadd.f32 %v677, %v653
      %v686 = vadd.f32 %v678, %v656
      %v687 = vadd.f32 %v679, %v661
      %v688 = vadd.f32 %v680, %v664
      %v689 = vadd.f32 %v681, %v669
      %v690 = vadd.f32 %v682, %v672
      %691 = vst [vmem:[#allocation2] sm:$0xff] %v683
      %692 = vst [vmem:[#allocation2 + $0x8] sm:$0xff] %v684
      %693 = vst [vmem:[#allocation2 + $0x10] sm:$0xff] %v685
      %694 = vst [vmem:[#allocation2 + $0x18] sm:$0xff] %v686
      %695 = vst [vmem:[#allocation2 + $0x20] sm:$0xff] %v687
      %696 = vst [vmem:[#allocation2 + $0x28] sm:$0xff] %v688
      %697 = vst [vmem:[#allocation2 + $0x30] sm:$0xff] %v689
      %698 = vst [vmem:[#allocation2 + $0x38] sm:$0xff] %v690
      %v699 = vld [vmem:[%s248] sm:$0xe]
      %v700 = vld [vmem:[%s248 + $0x4] sm:$0xf]
      %v701 = vld [vmem:[%s248 + $0x8] sm:$0x1]
      %v702 = vld [vmem:[%s248 + $0xc] sm:$0xe]
      %v703 = vld [vmem:[%s248 + $0x10] sm:$0xf]
      %v704 = vld [vmem:[%s248 + $0x14] sm:$0x1]
      %v705 = vld [vmem:[%s248 + $0x18] sm:$0xe]
      %v706 = vld [vmem:[%s248 + $0x1c] sm:$0xf]
      %v707 = vld [vmem:[%s248 + $0x20] sm:$0x1]
      %v708 = vld [vmem:[%s248 + $0x24] sm:$0xe]
      %v709 = vld [vmem:[%s248 + $0x28] sm:$0xf]
      %v710 = vld [vmem:[%s248 + $0x2c] sm:$0x1]
      %vm723 = vcmask 1042432
      %vm724 = vcmask 1046532
      %vm725 = vmor %vm723, %vm724
      %v726 = vrot.slane %v699, 5
      %v727 = vrot.slane %v726, 4
      %v728 = vrot.slane %v700, 5
      %v729 = vsel %vm725, %v727, %v728
      %v730 = vrot.slane %v728, 4
      %v731 = vrot.slane %v701, 5
      %v732 = vsel %vm725, %v730, %v731
      %v733 = vrot.slane %v702, 5
      %v734 = vrot.slane %v733, 4
      %v735 = vrot.slane %v703, 5
      %v736 = vsel %vm725, %v734, %v735
      %v737 = vrot.slane %v735, 4
      %v738 = vrot.slane %v704, 5
      %v739 = vsel %vm725, %v737, %v738
      %v740 = vrot.slane %v705, 5
      %v741 = vrot.slane %v740, 4
      %v742 = vrot.slane %v706, 5
      %v743 = vsel %vm725, %v741, %v742
      %v744 = vrot.slane %v742, 4
      %v745 = vrot.slane %v707, 5
      %v746 = vsel %vm725, %v744, %v745
      %v747 = vrot.slane %v708, 5
      %v748 = vrot.slane %v747, 4
      %v749 = vrot.slane %v709, 5
      %v750 = vsel %vm725, %v748, %v749
      %v751 = vrot.slane %v749, 4
      %v752 = vrot.slane %v710, 5
      %v753 = vsel %vm725, %v751, %v752
      %s754 = scalar_lea.vmem %s1, 128
      %v755 = vld [vmem:[%s754] sm:$0xf]
      %v756 = vld [vmem:[%s754 + $0x4] sm:$0xf]
      %v757 = vld [vmem:[%s754 + $0x8] sm:$0xf]
      %v758 = vld [vmem:[%s754 + $0xc] sm:$0xf]
      %v759 = vld [vmem:[%s754 + $0x10] sm:$0xf]
      %v760 = vld [vmem:[%s754 + $0x14] sm:$0xf]
      %v761 = vld [vmem:[%s754 + $0x18] sm:$0xf]
      %v762 = vld [vmem:[%s754 + $0x1c] sm:$0xf]
      %v763 = vld [vmem:[%s754 + $0x20] sm:$0xf]
      %v764 = vld [vmem:[%s754 + $0x24] sm:$0xf]
      %v765 = vld [vmem:[%s754 + $0x28] sm:$0xf]
      %v766 = vld [vmem:[%s754 + $0x2c] sm:$0xf]
      %v767 = vld [vmem:[%s754 + $0x30] sm:$0xf]
      %v768 = vld [vmem:[%s754 + $0x34] sm:$0xf]
      %v769 = vld [vmem:[%s754 + $0x38] sm:$0xf]
      %v770 = vld [vmem:[%s754 + $0x3c] sm:$0xf]
      %v771 = vunpack.c.l.b16 %v729
      %v772 = vunpack.c.l.b16 %v732
      %v773 = vunpack.c.l.b16 %v736
      %v774 = vunpack.c.l.b16 %v739
      %v775 = vunpack.c.l.b16 %v743
      %v776 = vunpack.c.l.b16 %v746
      %v777 = vunpack.c.l.b16 %v750
      %v778 = vunpack.c.l.b16 %v753
      %v779 = vpack.c.b16 %v772, %v771
      %v780 = vpack.c.b16 %v774, %v773
      %v781 = vpack.c.b16 %v776, %v775
      %v782 = vpack.c.b16 %v778, %v777
      %v803 = vunpack.c.l.b16 %v755
      %v804 = vunpack.c.l.b16 %v756
      %v805 = vunpack.c.l.b16 %v757
      %v806 = vunpack.c.l.b16 %v758
      %v807 = vunpack.c.l.b16 %v759
      %v808 = vunpack.c.l.b16 %v760
      %v809 = vunpack.c.l.b16 %v761
      %v810 = vunpack.c.l.b16 %v762
      %v811 = vunpack.c.l.b16 %v763
      %v812 = vunpack.c.l.b16 %v764
      %v813 = vunpack.c.l.b16 %v765
      %v814 = vunpack.c.l.b16 %v766
      %v815 = vunpack.c.l.b16 %v767
      %v816 = vunpack.c.l.b16 %v768
      %v817 = vunpack.c.l.b16 %v769
      %v818 = vunpack.c.l.b16 %v770
      %v819 = vpack.c.b16 %v804, %v803
      %v820 = vpack.c.b16 %v806, %v805
      %v821 = vpack.c.b16 %v808, %v807
      %v822 = vpack.c.b16 %v810, %v809
      %v823 = vpack.c.b16 %v812, %v811
      %v824 = vpack.c.b16 %v814, %v813
      %v825 = vpack.c.b16 %v816, %v815
      %v826 = vpack.c.b16 %v818, %v817
      %835 = vmatprep.subr.bf16.mxu0 0
      %836 = vmatpush1.bf16.msra.mxu0 %v819
      %837 = vmatprep.subr.bf16.mxu0 0
      %838 = vmatpush1.bf16.msra.mxu0 %v820
      %839 = vmatprep.subr.bf16.mxu0 0
      %840 = vmatpush1.bf16.msra.mxu0 %v821
      %841 = vmatprep.subr.bf16.mxu0 0
      %842 = vmatpush1.bf16.msra.mxu0 %v822
      %843 = vmatprep.subr.bf16.mxu0 0
      %844 = vmatpush1.bf16.msra.mxu0 %v823
      %845 = vmatprep.subr.bf16.mxu0 0
      %846 = vmatpush1.bf16.msra.mxu0 %v824
      %847 = vmatprep.subr.bf16.mxu0 0
      %848 = vmatpush1.bf16.msra.mxu0 %v825
      %849 = vmatprep.subr.bf16.mxu0 0
      %850 = vmatpush1.bf16.msra.mxu0 %v826
      %851 = vmatprep.subr.bf16.mxu0 0
      %852 = vmatpush1.bf16.msra.mxu0 0
      %853 = vmatprep.subr.bf16.mxu0 0
      %854 = vmatpush1.bf16.msra.mxu0 0
      %855 = vmatprep.subr.bf16.mxu0 0
      %856 = vmatpush1.bf16.msra.mxu0 0
      %857 = vmatprep.subr.bf16.mxu0 0
      %858 = vmatpush1.bf16.msra.mxu0 0
      %859 = vmatprep.subr.bf16.mxu0 0
      %860 = vmatpush1.bf16.msra.mxu0 0
      %861 = vmatprep.subr.bf16.mxu0 0
      %862 = vmatpush1.bf16.msra.mxu0 0
      %863 = vmatprep.subr.bf16.mxu0 0
      %864 = vmatpush1.bf16.msra.mxu0 0
      %865 = vmatprep.subr.bf16.mxu0 0
      %866 = vmatpush1.bf16.msra.mxu0 0
      %867 = vmatprep.mubr.bf16.mxu0 0
      %868 = vmatmul.mubr.bf16.gmra.mrb[0].mxu0 %v779
      %v869 = vpop.f32.mrb[0].mxu0
      %v870 = vadd.f32 0.0, %v869
      %v871 = vpop.f32.mrb[0].mxu0
      %v872 = vpop.f32.mrb[0].mxu0
      %v873 = vadd.f32 0.0, %v872
      %v874 = vpop.f32.mrb[0].mxu0
      %875 = vmatprep.mubr.bf16.mxu0 0
      %876 = vmatmul.mubr.bf16.gmra.mrb[0].mxu0 %v780
      %v877 = vpop.f32.mrb[0].mxu0
      %v878 = vadd.f32 0.0, %v877
      %v879 = vpop.f32.mrb[0].mxu0
      %v880 = vpop.f32.mrb[0].mxu0
      %v881 = vadd.f32 0.0, %v880
      %v882 = vpop.f32.mrb[0].mxu0
      %883 = vmatprep.mubr.bf16.mxu0 0
      %884 = vmatmul.mubr.bf16.gmra.mrb[0].mxu0 %v781
      %v885 = vpop.f32.mrb[0].mxu0
      %v886 = vadd.f32 0.0, %v885
      %v887 = vpop.f32.mrb[0].mxu0
      %v888 = vpop.f32.mrb[0].mxu0
      %v889 = vadd.f32 0.0, %v888
      %v890 = vpop.f32.mrb[0].mxu0
      %891 = vmatprep.mubr.bf16.mxu0 0
      %892 = vmatmul.mubr.bf16.gmra.mrb[0].mxu0 %v782
      %v893 = vpop.f32.mrb[0].mxu0
      %v894 = vadd.f32 0.0, %v893
      %v895 = vpop.f32.mrb[0].mxu0
      %v896 = vpop.f32.mrb[0].mxu0
      %v897 = vadd.f32 0.0, %v896
      %v898 = vpop.f32.mrb[0].mxu0
      %899 = vdwg.mxu0
      %v900 = vld [vmem:[#allocation2] sm:$0xff]
      %v901 = vld [vmem:[#allocation2 + $0x8] sm:$0xff]
      %v902 = vld [vmem:[#allocation2 + $0x10] sm:$0xff]
      %v903 = vld [vmem:[#allocation2 + $0x18] sm:$0xff]
      %v904 = vld [vmem:[#allocation2 + $0x20] sm:$0xff]
      %v905 = vld [vmem:[#allocation2 + $0x28] sm:$0xff]
      %v906 = vld [vmem:[#allocation2 + $0x30] sm:$0xff]
      %v907 = vld [vmem:[#allocation2 + $0x38] sm:$0xff]
      %v908 = vadd.f32 %v900, %v870
      %v909 = vadd.f32 %v901, %v873
      %v910 = vadd.f32 %v902, %v878
      %v911 = vadd.f32 %v903, %v881
      %v912 = vadd.f32 %v904, %v886
      %v913 = vadd.f32 %v905, %v889
      %v914 = vadd.f32 %v906, %v894
      %v915 = vadd.f32 %v907, %v897
      %916 = vst [vmem:[#allocation2] sm:$0xff] %v908
      %917 = vst [vmem:[#allocation2 + $0x8] sm:$0xff] %v909
      %918 = vst [vmem:[#allocation2 + $0x10] sm:$0xff] %v910
      %919 = vst [vmem:[#allocation2 + $0x18] sm:$0xff] %v911
      %920 = vst [vmem:[#allocation2 + $0x20] sm:$0xff] %v912
      %921 = vst [vmem:[#allocation2 + $0x28] sm:$0xff] %v913
      %922 = vst [vmem:[#allocation2 + $0x30] sm:$0xff] %v914
      %923 = vst [vmem:[#allocation2 + $0x38] sm:$0xff] %v915
      %s924 = sadd.s32 %s245, 1
      %s925 = smul.u32 %s924, 3
      %s926 = smul.addr %s925, 4
      %s927 = scalar_lea.vmem %s224, %s926
      %v928 = vld [vmem:[%s927] sm:$0xf]
      %v929 = vld [vmem:[%s927 + $0x4] sm:$0xf]
      %v930 = vld [vmem:[%s927 + $0xc] sm:$0xf]
      %v931 = vld [vmem:[%s927 + $0x10] sm:$0xf]
      %v932 = vld [vmem:[%s927 + $0x18] sm:$0xf]
      %v933 = vld [vmem:[%s927 + $0x1c] sm:$0xf]
      %v934 = vld [vmem:[%s927 + $0x24] sm:$0xf]
      %v935 = vld [vmem:[%s927 + $0x28] sm:$0xf]
      %s936 = scalar_lea.vmem %s1, 192
      %v937 = vld [vmem:[%s936] sm:$0xf]
      %v938 = vld [vmem:[%s936 + $0x4] sm:$0xf]
      %v939 = vld [vmem:[%s936 + $0x8] sm:$0xf]
      %v940 = vld [vmem:[%s936 + $0xc] sm:$0xf]
      %v941 = vld [vmem:[%s936 + $0x10] sm:$0xf]
      %v942 = vld [vmem:[%s936 + $0x14] sm:$0xf]
      %v943 = vld [vmem:[%s936 + $0x18] sm:$0xf]
      %v944 = vld [vmem:[%s936 + $0x1c] sm:$0xf]
      %v945 = vld [vmem:[%s936 + $0x20] sm:$0xf]
      %v946 = vld [vmem:[%s936 + $0x24] sm:$0xf]
      %v947 = vld [vmem:[%s936 + $0x28] sm:$0xf]
      %v948 = vld [vmem:[%s936 + $0x2c] sm:$0xf]
      %v949 = vld [vmem:[%s936 + $0x30] sm:$0xf]
      %v950 = vld [vmem:[%s936 + $0x34] sm:$0xf]
      %v951 = vld [vmem:[%s936 + $0x38] sm:$0xf]
      %v952 = vld [vmem:[%s936 + $0x3c] sm:$0xf]
      %v961 = vunpack.c.l.b16 %v928
      %v962 = vunpack.c.l.b16 %v929
      %v963 = vunpack.c.l.b16 %v930
      %v964 = vunpack.c.l.b16 %v931
      %v965 = vunpack.c.l.b16 %v932
      %v966 = vunpack.c.l.b16 %v933
      %v967 = vunpack.c.l.b16 %v934
      %v968 = vunpack.c.l.b16 %v935
      %v969 = vpack.c.b16 %v962, %v961
      %v970 = vpack.c.b16 %v964, %v963
      %v971 = vpack.c.b16 %v966, %v965
      %v972 = vpack.c.b16 %v968, %v967
      %v993 = vunpack.c.l.b16 %v937
      %v994 = vunpack.c.l.b16 %v938
      %v995 = vunpack.c.l.b16 %v939
      %v996 = vunpack.c.l.b16 %v940
      %v997 = vunpack.c.l.b16 %v941
      %v998 = vunpack.c.l.b16 %v942
      %v999 = vunpack.c.l.b16 %v943
      %v1000 = vunpack.c.l.b16 %v944
      %v1001 = vunpack.c.l.b16 %v945
      %v1002 = vunpack.c.l.b16 %v946
      %v1003 = vunpack.c.l.b16 %v947
      %v1004 = vunpack.c.l.b16 %v948
      %v1005 = vunpack.c.l.b16 %v949
      %v1006 = vunpack.c.l.b16 %v950
      %v1007 = vunpack.c.l.b16 %v951
      %v1008 = vunpack.c.l.b16 %v952
      %v1009 = vpack.c.b16 %v994, %v993
      %v1010 = vpack.c.b16 %v996, %v995
      %v1011 = vpack.c.b16 %v998, %v997
      %v1012 = vpack.c.b16 %v1000, %v999
      %v1013 = vpack.c.b16 %v1002, %v1001
      %v1014 = vpack.c.b16 %v1004, %v1003
      %v1015 = vpack.c.b16 %v1006, %v1005
      %v1016 = vpack.c.b16 %v1008, %v1007
      %1025 = vmatprep.subr.bf16.mxu0 0
      %1026 = vmatpush1.bf16.msra.mxu0 %v1009
      %1027 = vmatprep.subr.bf16.mxu0 0
      %1028 = vmatpush1.bf16.msra.mxu0 %v1010
      %1029 = vmatprep.subr.bf16.mxu0 0
      %1030 = vmatpush1.bf16.msra.mxu0 %v1011
      %1031 = vmatprep.subr.bf16.mxu0 0
      %1032 = vmatpush1.bf16.msra.mxu0 %v1012
      %1033 = vmatprep.subr.bf16.mxu0 0
      %1034 = vmatpush1.bf16.msra.mxu0 %v1013
      %1035 = vmatprep.subr.bf16.mxu0 0
      %1036 = vmatpush1.bf16.msra.mxu0 %v1014
      %1037 = vmatprep.subr.bf16.mxu0 0
      %1038 = vmatpush1.bf16.msra.mxu0 %v1015
      %1039 = vmatprep.subr.bf16.mxu0 0
      %1040 = vmatpush1.bf16.msra.mxu0 %v1016
      %1041 = vmatprep.subr.bf16.mxu0 0
      %1042 = vmatpush1.bf16.msra.mxu0 0
      %1043 = vmatprep.subr.bf16.mxu0 0
      %1044 = vmatpush1.bf16.msra.mxu0 0
      %1045 = vmatprep.subr.bf16.mxu0 0
      %1046 = vmatpush1.bf16.msra.mxu0 0
      %1047 = vmatprep.subr.bf16.mxu0 0
      %1048 = vmatpush1.bf16.msra.mxu0 0
      %1049 = vmatprep.subr.bf16.mxu0 0
      %1050 = vmatpush1.bf16.msra.mxu0 0
      %1051 = vmatprep.subr.bf16.mxu0 0
      %1052 = vmatpush1.bf16.msra.mxu0 0
      %1053 = vmatprep.subr.bf16.mxu0 0
      %1054 = vmatpush1.bf16.msra.mxu0 0
      %1055 = vmatprep.subr.bf16.mxu0 0
      %1056 = vmatpush1.bf16.msra.mxu0 0
      %1057 = vmatprep.mubr.bf16.mxu0 0
      %1058 = vmatmul.mubr.bf16.gmra.mrb[0].mxu0 %v969
      %v1059 = vpop.f32.mrb[0].mxu0
      %v1060 = vadd.f32 0.0, %v1059
      %v1061 = vpop.f32.mrb[0].mxu0
      %v1062 = vpop.f32.mrb[0].mxu0
      %v1063 = vadd.f32 0.0, %v1062
      %v1064 = vpop.f32.mrb[0].mxu0
      %1065 = vmatprep.mubr.bf16.mxu0 0
      %1066 = vmatmul.mubr.bf16.gmra.mrb[0].mxu0 %v970
      %v1067 = vpop.f32.mrb[0].mxu0
      %v1068 = vadd.f32 0.0, %v1067
      %v1069 = vpop.f32.mrb[0].mxu0
      %v1070 = vpop.f32.mrb[0].mxu0
      %v1071 = vadd.f32 0.0, %v1070
      %v1072 = vpop.f32.mrb[0].mxu0
      %1073 = vmatprep.mubr.bf16.mxu0 0
      %1074 = vmatmul.mubr.bf16.gmra.mrb[0].mxu0 %v971
      %v1075 = vpop.f32.mrb[0].mxu0
      %v1076 = vadd.f32 0.0, %v1075
      %v1077 = vpop.f32.mrb[0].mxu0
      %v1078 = vpop.f32.mrb[0].mxu0
      %v1079 = vadd.f32 0.0, %v1078
      %v1080 = vpop.f32.mrb[0].mxu0
      %1081 = vmatprep.mubr.bf16.mxu0 0
      %1082 = vmatmul.mubr.bf16.gmra.mrb[0].mxu0 %v972
      %v1083 = vpop.f32.mrb[0].mxu0
      %v1084 = vadd.f32 0.0, %v1083
      %v1085 = vpop.f32.mrb[0].mxu0
      %v1086 = vpop.f32.mrb[0].mxu0
      %v1087 = vadd.f32 0.0, %v1086
      %v1088 = vpop.f32.mrb[0].mxu0
      %1089 = vdwg.mxu0
      %v1090 = vld [vmem:[#allocation2] sm:$0xff]
      %v1091 = vld [vmem:[#allocation2 + $0x8] sm:$0xff]
      %v1092 = vld [vmem:[#allocation2 + $0x10] sm:$0xff]
      %v1093 = vld [vmem:[#allocation2 + $0x18] sm:$0xff]
      %v1094 = vld [vmem:[#allocation2 + $0x20] sm:$0xff]
      %v1095 = vld [vmem:[#allocation2 + $0x28] sm:$0xff]
      %v1096 = vld [vmem:[#allocation2 + $0x30] sm:$0xff]
      %v1097 = vld [vmem:[#allocation2 + $0x38] sm:$0xff]
      %v1098 = vadd.f32 %v1090, %v1060
      %v1099 = vadd.f32 %v1091, %v1063
      %v1100 = vadd.f32 %v1092, %v1068
      %v1101 = vadd.f32 %v1093, %v1071
      %v1102 = vadd.f32 %v1094, %v1076
      %v1103 = vadd.f32 %v1095, %v1079
      %v1104 = vadd.f32 %v1096, %v1084
      %v1105 = vadd.f32 %v1097, %v1087
      %1106 = vst [vmem:[#allocation2] sm:$0xff] %v1098
      %1107 = vst [vmem:[#allocation2 + $0x8] sm:$0xff] %v1099
      %1108 = vst [vmem:[#allocation2 + $0x10] sm:$0xff] %v1100
      %1109 = vst [vmem:[#allocation2 + $0x18] sm:$0xff] %v1101
      %1110 = vst [vmem:[#allocation2 + $0x20] sm:$0xff] %v1102
      %1111 = vst [vmem:[#allocation2 + $0x28] sm:$0xff] %v1103
      %1112 = vst [vmem:[#allocation2 + $0x30] sm:$0xff] %v1104
      %1113 = vst [vmem:[#allocation2 + $0x38] sm:$0xff] %v1105
      %v1114 = vld [vmem:[%s927] sm:$0xf]
      %v1115 = vld [vmem:[%s927 + $0x4] sm:$0xf]
      %v1116 = vld [vmem:[%s927 + $0x8] sm:$0x1]
      %v1117 = vld [vmem:[%s927 + $0xc] sm:$0xf]
      %v1118 = vld [vmem:[%s927 + $0x10] sm:$0xf]
      %v1119 = vld [vmem:[%s927 + $0x14] sm:$0x1]
      %v1120 = vld [vmem:[%s927 + $0x18] sm:$0xf]
      %v1121 = vld [vmem:[%s927 + $0x1c] sm:$0xf]
      %v1122 = vld [vmem:[%s927 + $0x20] sm:$0x1]
      %v1123 = vld [vmem:[%s927 + $0x24] sm:$0xf]
      %v1124 = vld [vmem:[%s927 + $0x28] sm:$0xf]
      %v1125 = vld [vmem:[%s927 + $0x2c] sm:$0x1]
      %v1127 = vshrl.u32 %v1114, 16
      %v1129 = vrot.slane %v1127, 4
      %v1130 = vshll.u32 %v1114, 16
      %v1132 = vrot.slane %v1130, 5
      %v1133 = vor.u32 %v1129, %v1132
      %v1134 = vrot.slane %v1133, 4
      %v1136 = vshll.u32 %v1115, 16
      %v1138 = vrot.slane %v1136, 5
      %v1139 = vsel %vm432, %v1134, %v1138
      %v1140 = vshrl.u32 %v1115, 16
      %v1142 = vrot.slane %v1140, 4
      %v1143 = vor.u32 %v1142, %v1138
      %v1144 = vrot.slane %v1143, 4
      %v1146 = vshll.u32 %v1116, 16
      %v1148 = vrot.slane %v1146, 5
      %v1149 = vsel %vm432, %v1144, %v1148
      %v1151 = vshrl.u32 %v1117, 16
      %v1153 = vrot.slane %v1151, 4
      %v1154 = vshll.u32 %v1117, 16
      %v1156 = vrot.slane %v1154, 5
      %v1157 = vor.u32 %v1153, %v1156
      %v1158 = vrot.slane %v1157, 4
      %v1160 = vshll.u32 %v1118, 16
      %v1162 = vrot.slane %v1160, 5
      %v1163 = vsel %vm432, %v1158, %v1162
      %v1164 = vshrl.u32 %v1118, 16
      %v1166 = vrot.slane %v1164, 4
      %v1167 = vor.u32 %v1166, %v1162
      %v1168 = vrot.slane %v1167, 4
      %v1170 = vshll.u32 %v1119, 16
      %v1172 = vrot.slane %v1170, 5
      %v1173 = vsel %vm432, %v1168, %v1172
      %v1175 = vshrl.u32 %v1120, 16
      %v1177 = vrot.slane %v1175, 4
      %v1178 = vshll.u32 %v1120, 16
      %v1180 = vrot.slane %v1178, 5
      %v1181 = vor.u32 %v1177, %v1180
      %v1182 = vrot.slane %v1181, 4
      %v1184 = vshll.u32 %v1121, 16
      %v1186 = vrot.slane %v1184, 5
      %v1187 = vsel %vm432, %v1182, %v1186
      %v1188 = vshrl.u32 %v1121, 16
      %v1190 = vrot.slane %v1188, 4
      %v1191 = vor.u32 %v1190, %v1186
      %v1192 = vrot.slane %v1191, 4
      %v1194 = vshll.u32 %v1122, 16
      %v1196 = vrot.slane %v1194, 5
      %v1197 = vsel %vm432, %v1192, %v1196
      %v1199 = vshrl.u32 %v1123, 16
      %v1201 = vrot.slane %v1199, 4
      %v1202 = vshll.u32 %v1123, 16
      %v1204 = vrot.slane %v1202, 5
      %v1205 = vor.u32 %v1201, %v1204
      %v1206 = vrot.slane %v1205, 4
      %v1208 = vshll.u32 %v1124, 16
      %v1210 = vrot.slane %v1208, 5
      %v1211 = vsel %vm432, %v1206, %v1210
      %v1212 = vshrl.u32 %v1124, 16
      %v1214 = vrot.slane %v1212, 4
      %v1215 = vor.u32 %v1214, %v1210
      %v1216 = vrot.slane %v1215, 4
      %v1218 = vshll.u32 %v1125, 16
      %v1220 = vrot.slane %v1218, 5
      %v1221 = vsel %vm432, %v1216, %v1220
      %s1222 = scalar_lea.vmem %s1, 256
      %v1223 = vld [vmem:[%s1222] sm:$0xf]
      %v1224 = vld [vmem:[%s1222 + $0x4] sm:$0xf]
      %v1225 = vld [vmem:[%s1222 + $0x8] sm:$0xf]
      %v1226 = vld [vmem:[%s1222 + $0xc] sm:$0xf]
      %v1227 = vld [vmem:[%s1222 + $0x10] sm:$0xf]
      %v1228 = vld [vmem:[%s1222 + $0x14] sm:$0xf]
      %v1229 = vld [vmem:[%s1222 + $0x18] sm:$0xf]
      %v1230 = vld [vmem:[%s1222 + $0x1c] sm:$0xf]
      %v1231 = vld [vmem:[%s1222 + $0x20] sm:$0xf]
      %v1232 = vld [vmem:[%s1222 + $0x24] sm:$0xf]
      %v1233 = vld [vmem:[%s1222 + $0x28] sm:$0xf]
      %v1234 = vld [vmem:[%s1222 + $0x2c] sm:$0xf]
      %v1235 = vld [vmem:[%s1222 + $0x30] sm:$0xf]
      %v1236 = vld [vmem:[%s1222 + $0x34] sm:$0xf]
      %v1237 = vld [vmem:[%s1222 + $0x38] sm:$0xf]
      %v1238 = vld [vmem:[%s1222 + $0x3c] sm:$0xf]
      %v1239 = vunpack.c.l.b16 %v1139
      %v1240 = vunpack.c.l.b16 %v1149
      %v1241 = vunpack.c.l.b16 %v1163
      %v1242 = vunpack.c.l.b16 %v1173
      %v1243 = vunpack.c.l.b16 %v1187
      %v1244 = vunpack.c.l.b16 %v1197
      %v1245 = vunpack.c.l.b16 %v1211
      %v1246 = vunpack.c.l.b16 %v1221
      %v1247 = vpack.c.b16 %v1240, %v1239
      %v1248 = vpack.c.b16 %v1242, %v1241
      %v1249 = vpack.c.b16 %v1244, %v1243
      %v1250 = vpack.c.b16 %v1246, %v1245
      %v1271 = vunpack.c.l.b16 %v1223
      %v1272 = vunpack.c.l.b16 %v1224
      %v1273 = vunpack.c.l.b16 %v1225
      %v1274 = vunpack.c.l.b16 %v1226
      %v1275 = vunpack.c.l.b16 %v1227
      %v1276 = vunpack.c.l.b16 %v1228
      %v1277 = vunpack.c.l.b16 %v1229
      %v1278 = vunpack.c.l.b16 %v1230
      %v1279 = vunpack.c.l.b16 %v1231
      %v1280 = vunpack.c.l.b16 %v1232
      %v1281 = vunpack.c.l.b16 %v1233
      %v1282 = vunpack.c.l.b16 %v1234
      %v1283 = vunpack.c.l.b16 %v1235
      %v1284 = vunpack.c.l.b16 %v1236
      %v1285 = vunpack.c.l.b16 %v1237
      %v1286 = vunpack.c.l.b16 %v1238
      %v1287 = vpack.c.b16 %v1272, %v1271
      %v1288 = vpack.c.b16 %v1274, %v1273
      %v1289 = vpack.c.b16 %v1276, %v1275
      %v1290 = vpack.c.b16 %v1278, %v1277
      %v1291 = vpack.c.b16 %v1280, %v1279
      %v1292 = vpack.c.b16 %v1282, %v1281
      %v1293 = vpack.c.b16 %v1284, %v1283
      %v1294 = vpack.c.b16 %v1286, %v1285
      %1303 = vmatprep.subr.bf16.mxu0 0
      %1304 = vmatpush1.bf16.msra.mxu0 %v1287
      %1305 = vmatprep.subr.bf16.mxu0 0
      %1306 = vmatpush1.bf16.msra.mxu0 %v1288
      %1307 = vmatprep.subr.bf16.mxu0 0
      %1308 = vmatpush1.bf16.msra.mxu0 %v1289
      %1309 = vmatprep.subr.bf16.mxu0 0
      %1310 = vmatpush1.bf16.msra.mxu0 %v1290
      %1311 = vmatprep.subr.bf16.mxu0 0
      %1312 = vmatpush1.bf16.msra.mxu0 %v1291
      %1313 = vmatprep.subr.bf16.mxu0 0
      %1314 = vmatpush1.bf16.msra.mxu0 %v1292
      %1315 = vmatprep.subr.bf16.mxu0 0
      %1316 = vmatpush1.bf16.msra.mxu0 %v1293
      %1317 = vmatprep.subr.bf16.mxu0 0
      %1318 = vmatpush1.bf16.msra.mxu0 %v1294
      %1319 = vmatprep.subr.bf16.mxu0 0
      %1320 = vmatpush1.bf16.msra.mxu0 0
      %1321 = vmatprep.subr.bf16.mxu0 0
      %1322 = vmatpush1.bf16.msra.mxu0 0
      %1323 = vmatprep.subr.bf16.mxu0 0
      %1324 = vmatpush1.bf16.msra.mxu0 0
      %1325 = vmatprep.subr.bf16.mxu0 0
      %1326 = vmatpush1.bf16.msra.mxu0 0
      %1327 = vmatprep.subr.bf16.mxu0 0
      %1328 = vmatpush1.bf16.msra.mxu0 0
      %1329 = vmatprep.subr.bf16.mxu0 0
      %1330 = vmatpush1.bf16.msra.mxu0 0
      %1331 = vmatprep.subr.bf16.mxu0 0
      %1332 = vmatpush1.bf16.msra.mxu0 0
      %1333 = vmatprep.subr.bf16.mxu0 0
      %1334 = vmatpush1.bf16.msra.mxu0 0
      %1335 = vmatprep.mubr.bf16.mxu0 0
      %1336 = vmatmul.mubr.bf16.gmra.mrb[0].mxu0 %v1247
      %v1337 = vpop.f32.mrb[0].mxu0
      %v1338 = vadd.f32 0.0, %v1337
      %v1339 = vpop.f32.mrb[0].mxu0
      %v1340 = vpop.f32.mrb[0].mxu0
      %v1341 = vadd.f32 0.0, %v1340
      %v1342 = vpop.f32.mrb[0].mxu0
      %1343 = vmatprep.mubr.bf16.mxu0 0
      %1344 = vmatmul.mubr.bf16.gmra.mrb[0].mxu0 %v1248
      %v1345 = vpop.f32.mrb[0].mxu0
      %v1346 = vadd.f32 0.0, %v1345
      %v1347 = vpop.f32.mrb[0].mxu0
      %v1348 = vpop.f32.mrb[0].mxu0
      %v1349 = vadd.f32 0.0, %v1348
      %v1350 = vpop.f32.mrb[0].mxu0
      %1351 = vmatprep.mubr.bf16.mxu0 0
      %1352 = vmatmul.mubr.bf16.gmra.mrb[0].mxu0 %v1249
      %v1353 = vpop.f32.mrb[0].mxu0
      %v1354 = vadd.f32 0.0, %v1353
      %v1355 = vpop.f32.mrb[0].mxu0
      %v1356 = vpop.f32.mrb[0].mxu0
      %v1357 = vadd.f32 0.0, %v1356
      %v1358 = vpop.f32.mrb[0].mxu0
      %1359 = vmatprep.mubr.bf16.mxu0 0
      %1360 = vmatmul.mubr.bf16.gmra.mrb[0].mxu0 %v1250
      %v1361 = vpop.f32.mrb[0].mxu0
      %v1362 = vadd.f32 0.0, %v1361
      %v1363 = vpop.f32.mrb[0].mxu0
      %v1364 = vpop.f32.mrb[0].mxu0
      %v1365 = vadd.f32 0.0, %v1364
      %v1366 = vpop.f32.mrb[0].mxu0
      %1367 = vdwg.mxu0
      %v1368 = vld [vmem:[#allocation2] sm:$0xff]
      %v1369 = vld [vmem:[#allocation2 + $0x8] sm:$0xff]
      %v1370 = vld [vmem:[#allocation2 + $0x10] sm:$0xff]
      %v1371 = vld [vmem:[#allocation2 + $0x18] sm:$0xff]
      %v1372 = vld [vmem:[#allocation2 + $0x20] sm:$0xff]
      %v1373 = vld [vmem:[#allocation2 + $0x28] sm:$0xff]
      %v1374 = vld [vmem:[#allocation2 + $0x30] sm:$0xff]
      %v1375 = vld [vmem:[#allocation2 + $0x38] sm:$0xff]
      %v1376 = vadd.f32 %v1368, %v1338
      %v1377 = vadd.f32 %v1369, %v1341
      %v1378 = vadd.f32 %v1370, %v1346
      %v1379 = vadd.f32 %v1371, %v1349
      %v1380 = vadd.f32 %v1372, %v1354
      %v1381 = vadd.f32 %v1373, %v1357
      %v1382 = vadd.f32 %v1374, %v1362
      %v1383 = vadd.f32 %v1375, %v1365
      %1384 = vst [vmem:[#allocation2] sm:$0xff] %v1376
      %1385 = vst [vmem:[#allocation2 + $0x8] sm:$0xff] %v1377
      %1386 = vst [vmem:[#allocation2 + $0x10] sm:$0xff] %v1378
      %1387 = vst [vmem:[#allocation2 + $0x18] sm:$0xff] %v1379
      %1388 = vst [vmem:[#allocation2 + $0x20] sm:$0xff] %v1380
      %1389 = vst [vmem:[#allocation2 + $0x28] sm:$0xff] %v1381
      %1390 = vst [vmem:[#allocation2 + $0x30] sm:$0xff] %v1382
      %1391 = vst [vmem:[#allocation2 + $0x38] sm:$0xff] %v1383
      %v1392 = vld [vmem:[%s927] sm:$0xe]
      %v1393 = vld [vmem:[%s927 + $0x4] sm:$0xf]
      %v1394 = vld [vmem:[%s927 + $0x8] sm:$0x1]
      %v1395 = vld [vmem:[%s927 + $0xc] sm:$0xe]
      %v1396 = vld [vmem:[%s927 + $0x10] sm:$0xf]
      %v1397 = vld [vmem:[%s927 + $0x14] sm:$0x1]
      %v1398 = vld [vmem:[%s927 + $0x18] sm:$0xe]
      %v1399 = vld [vmem:[%s927 + $0x1c] sm:$0xf]
      %v1400 = vld [vmem:[%s927 + $0x20] sm:$0x1]
      %v1401 = vld [vmem:[%s927 + $0x24] sm:$0xe]
      %v1402 = vld [vmem:[%s927 + $0x28] sm:$0xf]
      %v1403 = vld [vmem:[%s927 + $0x2c] sm:$0x1]
      %v1416 = vrot.slane %v1392, 5
      %v1417 = vrot.slane %v1416, 4
      %v1418 = vrot.slane %v1393, 5
      %v1419 = vsel %vm725, %v1417, %v1418
      %v1420 = vrot.slane %v1418, 4
      %v1421 = vrot.slane %v1394, 5
      %v1422 = vsel %vm725, %v1420, %v1421
      %v1423 = vrot.slane %v1395, 5
      %v1424 = vrot.slane %v1423, 4
      %v1425 = vrot.slane %v1396, 5
      %v1426 = vsel %vm725, %v1424, %v1425
      %v1427 = vrot.slane %v1425, 4
      %v1428 = vrot.slane %v1397, 5
      %v1429 = vsel %vm725, %v1427, %v1428
      %v1430 = vrot.slane %v1398, 5
      %v1431 = vrot.slane %v1430, 4
      %v1432 = vrot.slane %v1399, 5
      %v1433 = vsel %vm725, %v1431, %v1432
      %v1434 = vrot.slane %v1432, 4
      %v1435 = vrot.slane %v1400, 5
      %v1436 = vsel %vm725, %v1434, %v1435
      %v1437 = vrot.slane %v1401, 5
      %v1438 = vrot.slane %v1437, 4
      %v1439 = vrot.slane %v1402, 5
      %v1440 = vsel %vm725, %v1438, %v1439
      %v1441 = vrot.slane %v1439, 4
      %v1442 = vrot.slane %v1403, 5
      %v1443 = vsel %vm725, %v1441, %v1442
      %s1444 = scalar_lea.vmem %s1, 320
      %v1445 = vld [vmem:[%s1444] sm:$0xf]
      %v1446 = vld [vmem:[%s1444 + $0x4] sm:$0xf]
      %v1447 = vld [vmem:[%s1444 + $0x8] sm:$0xf]
      %v1448 = vld [vmem:[%s1444 + $0xc] sm:$0xf]
      %v1449 = vld [vmem:[%s1444 + $0x10] sm:$0xf]
      %v1450 = vld [vmem:[%s1444 + $0x14] sm:$0xf]
      %v1451 = vld [vmem:[%s1444 + $0x18] sm:$0xf]
      %v1452 = vld [vmem:[%s1444 + $0x1c] sm:$0xf]
      %v1453 = vld [vmem:[%s1444 + $0x20] sm:$0xf]
      %v1454 = vld [vmem:[%s1444 + $0x24] sm:$0xf]
      %v1455 = vld [vmem:[%s1444 + $0x28] sm:$0xf]
      %v1456 = vld [vmem:[%s1444 + $0x2c] sm:$0xf]
      %v1457 = vld [vmem:[%s1444 + $0x30] sm:$0xf]
      %v1458 = vld [vmem:[%s1444 + $0x34] sm:$0xf]
      %v1459 = vld [vmem:[%s1444 + $0x38] sm:$0xf]
      %v1460 = vld [vmem:[%s1444 + $0x3c] sm:$0xf]
      %v1461 = vunpack.c.l.b16 %v1419
      %v1462 = vunpack.c.l.b16 %v1422
      %v1463 = vunpack.c.l.b16 %v1426
      %v1464 = vunpack.c.l.b16 %v1429
      %v1465 = vunpack.c.l.b16 %v1433
      %v1466 = vunpack.c.l.b16 %v1436
      %v1467 = vunpack.c.l.b16 %v1440
      %v1468 = vunpack.c.l.b16 %v1443
      %v1469 = vpack.c.b16 %v1462, %v1461
      %v1470 = vpack.c.b16 %v1464, %v1463
      %v1471 = vpack.c.b16 %v1466, %v1465
      %v1472 = vpack.c.b16 %v1468, %v1467
      %v1493 = vunpack.c.l.b16 %v1445
      %v1494 = vunpack.c.l.b16 %v1446
      %v1495 = vunpack.c.l.b16 %v1447
      %v1496 = vunpack.c.l.b16 %v1448
      %v1497 = vunpack.c.l.b16 %v1449
      %v1498 = vunpack.c.l.b16 %v1450
      %v1499 = vunpack.c.l.b16 %v1451
      %v1500 = vunpack.c.l.b16 %v1452
      %v1501 = vunpack.c.l.b16 %v1453
      %v1502 = vunpack.c.l.b16 %v1454
      %v1503 = vunpack.c.l.b16 %v1455
      %v1504 = vunpack.c.l.b16 %v1456
      %v1505 = vunpack.c.l.b16 %v1457
      %v1506 = vunpack.c.l.b16 %v1458
      %v1507 = vunpack.c.l.b16 %v1459
      %v1508 = vunpack.c.l.b16 %v1460
      %v1509 = vpack.c.b16 %v1494, %v1493
      %v1510 = vpack.c.b16 %v1496, %v1495
      %v1511 = vpack.c.b16 %v1498, %v1497
      %v1512 = vpack.c.b16 %v1500, %v1499
      %v1513 = vpack.c.b16 %v1502, %v1501
      %v1514 = vpack.c.b16 %v1504, %v1503
      %v1515 = vpack.c.b16 %v1506, %v1505
      %v1516 = vpack.c.b16 %v1508, %v1507
      %1525 = vmatprep.subr.bf16.mxu0 0
      %1526 = vmatpush1.bf16.msra.mxu0 %v1509
      %1527 = vmatprep.subr.bf16.mxu0 0
      %1528 = vmatpush1.bf16.msra.mxu0 %v1510
      %1529 = vmatprep.subr.bf16.mxu0 0
      %1530 = vmatpush1.bf16.msra.mxu0 %v1511
      %1531 = vmatprep.subr.bf16.mxu0 0
      %1532 = vmatpush1.bf16.msra.mxu0 %v1512
      %1533 = vmatprep.subr.bf16.mxu0 0
      %1534 = vmatpush1.bf16.msra.mxu0 %v1513
      %1535 = vmatprep.subr.bf16.mxu0 0
      %1536 = vmatpush1.bf16.msra.mxu0 %v1514
      %1537 = vmatprep.subr.bf16.mxu0 0
      %1538 = vmatpush1.bf16.msra.mxu0 %v1515
      %1539 = vmatprep.subr.bf16.mxu0 0
      %1540 = vmatpush1.bf16.msra.mxu0 %v1516
      %1541 = vmatprep.subr.bf16.mxu0 0
      %1542 = vmatpush1.bf16.msra.mxu0 0
      %1543 = vmatprep.subr.bf16.mxu0 0
      %1544 = vmatpush1.bf16.msra.mxu0 0
      %1545 = vmatprep.subr.bf16.mxu0 0
      %1546 = vmatpush1.bf16.msra.mxu0 0
      %1547 = vmatprep.subr.bf16.mxu0 0
      %1548 = vmatpush1.bf16.msra.mxu0 0
      %1549 = vmatprep.subr.bf16.mxu0 0
      %1550 = vmatpush1.bf16.msra.mxu0 0
      %1551 = vmatprep.subr.bf16.mxu0 0
      %1552 = vmatpush1.bf16.msra.mxu0 0
      %1553 = vmatprep.subr.bf16.mxu0 0
      %1554 = vmatpush1.bf16.msra.mxu0 0
      %1555 = vmatprep.subr.bf16.mxu0 0
      %1556 = vmatpush1.bf16.msra.mxu0 0
      %1557 = vmatprep.mubr.bf16.mxu0 0
      %1558 = vmatmul.mubr.bf16.gmra.mrb[0].mxu0 %v1469
      %v1559 = vpop.f32.mrb[0].mxu0
      %v1560 = vadd.f32 0.0, %v1559
      %v1561 = vpop.f32.mrb[0].mxu0
      %v1562 = vpop.f32.mrb[0].mxu0
      %v1563 = vadd.f32 0.0, %v1562
      %v1564 = vpop.f32.mrb[0].mxu0
      %1565 = vmatprep.mubr.bf16.mxu0 0
      %1566 = vmatmul.mubr.bf16.gmra.mrb[0].mxu0 %v1470
      %v1567 = vpop.f32.mrb[0].mxu0
      %v1568 = vadd.f32 0.0, %v1567
      %v1569 = vpop.f32.mrb[0].mxu0
      %v1570 = vpop.f32.mrb[0].mxu0
      %v1571 = vadd.f32 0.0, %v1570
      %v1572 = vpop.f32.mrb[0].mxu0
      %1573 = vmatprep.mubr.bf16.mxu0 0
      %1574 = vmatmul.mubr.bf16.gmra.mrb[0].mxu0 %v1471
      %v1575 = vpop.f32.mrb[0].mxu0
      %v1576 = vadd.f32 0.0, %v1575
      %v1577 = vpop.f32.mrb[0].mxu0
      %v1578 = vpop.f32.mrb[0].mxu0
      %v1579 = vadd.f32 0.0, %v1578
      %v1580 = vpop.f32.mrb[0].mxu0
      %1581 = vmatprep.mubr.bf16.mxu0 0
      %1582 = vmatmul.mubr.bf16.gmra.mrb[0].mxu0 %v1472
      %v1583 = vpop.f32.mrb[0].mxu0
      %v1584 = vadd.f32 0.0, %v1583
      %v1585 = vpop.f32.mrb[0].mxu0
      %v1586 = vpop.f32.mrb[0].mxu0
      %v1587 = vadd.f32 0.0, %v1586
      %v1588 = vpop.f32.mrb[0].mxu0
      %1589 = vdwg.mxu0
      %v1590 = vld [vmem:[#allocation2] sm:$0xff]
      %v1591 = vld [vmem:[#allocation2 + $0x8] sm:$0xff]
      %v1592 = vld [vmem:[#allocation2 + $0x10] sm:$0xff]
      %v1593 = vld [vmem:[#allocation2 + $0x18] sm:$0xff]
      %v1594 = vld [vmem:[#allocation2 + $0x20] sm:$0xff]
      %v1595 = vld [vmem:[#allocation2 + $0x28] sm:$0xff]
      %v1596 = vld [vmem:[#allocation2 + $0x30] sm:$0xff]
      %v1597 = vld [vmem:[#allocation2 + $0x38] sm:$0xff]
      %v1598 = vadd.f32 %v1590, %v1560
      %v1599 = vadd.f32 %v1591, %v1563
      %v1600 = vadd.f32 %v1592, %v1568
      %v1601 = vadd.f32 %v1593, %v1571
      %v1602 = vadd.f32 %v1594, %v1576
      %v1603 = vadd.f32 %v1595, %v1579
      %v1604 = vadd.f32 %v1596, %v1584
      %v1605 = vadd.f32 %v1597, %v1587
      %1606 = vst [vmem:[#allocation2] sm:$0xff] %v1598
      %1607 = vst [vmem:[#allocation2 + $0x8] sm:$0xff] %v1599
      %1608 = vst [vmem:[#allocation2 + $0x10] sm:$0xff] %v1600
      %1609 = vst [vmem:[#allocation2 + $0x18] sm:$0xff] %v1601
      %1610 = vst [vmem:[#allocation2 + $0x20] sm:$0xff] %v1602
      %1611 = vst [vmem:[#allocation2 + $0x28] sm:$0xff] %v1603
      %1612 = vst [vmem:[#allocation2 + $0x30] sm:$0xff] %v1604
      %1613 = vst [vmem:[#allocation2 + $0x38] sm:$0xff] %v1605
      %s1614 = sadd.s32 %s245, 2
      %s1615 = smul.u32 %s1614, 3
      %s1616 = smul.addr %s1615, 4
      %s1617 = scalar_lea.vmem %s224, %s1616
      %v1618 = vld [vmem:[%s1617] sm:$0xf]
      %v1619 = vld [vmem:[%s1617 + $0x4] sm:$0xf]
      %v1620 = vld [vmem:[%s1617 + $0xc] sm:$0xf]
      %v1621 = vld [vmem:[%s1617 + $0x10] sm:$0xf]
      %v1622 = vld [vmem:[%s1617 + $0x18] sm:$0xf]
      %v1623 = vld [vmem:[%s1617 + $0x1c] sm:$0xf]
      %v1624 = vld [vmem:[%s1617 + $0x24] sm:$0xf]
      %v1625 = vld [vmem:[%s1617 + $0x28] sm:$0xf]
      %s1626 = scalar_lea.vmem %s1, 384
      %v1627 = vld [vmem:[%s1626] sm:$0xf]
      %v1628 = vld [vmem:[%s1626 + $0x4] sm:$0xf]
      %v1629 = vld [vmem:[%s1626 + $0x8] sm:$0xf]
      %v1630 = vld [vmem:[%s1626 + $0xc] sm:$0xf]
      %v1631 = vld [vmem:[%s1626 + $0x10] sm:$0xf]
      %v1632 = vld [vmem:[%s1626 + $0x14] sm:$0xf]
      %v1633 = vld [vmem:[%s1626 + $0x18] sm:$0xf]
      %v1634 = vld [vmem:[%s1626 + $0x1c] sm:$0xf]
      %v1635 = vld [vmem:[%s1626 + $0x20] sm:$0xf]
      %v1636 = vld [vmem:[%s1626 + $0x24] sm:$0xf]
      %v1637 = vld [vmem:[%s1626 + $0x28] sm:$0xf]
      %v1638 = vld [vmem:[%s1626 + $0x2c] sm:$0xf]
      %v1639 = vld [vmem:[%s1626 + $0x30] sm:$0xf]
      %v1640 = vld [vmem:[%s1626 + $0x34] sm:$0xf]
      %v1641 = vld [vmem:[%s1626 + $0x38] sm:$0xf]
      %v1642 = vld [vmem:[%s1626 + $0x3c] sm:$0xf]
      %v1651 = vunpack.c.l.b16 %v1618
      %v1652 = vunpack.c.l.b16 %v1619
      %v1653 = vunpack.c.l.b16 %v1620
      %v1654 = vunpack.c.l.b16 %v1621
      %v1655 = vunpack.c.l.b16 %v1622
      %v1656 = vunpack.c.l.b16 %v1623
      %v1657 = vunpack.c.l.b16 %v1624
      %v1658 = vunpack.c.l.b16 %v1625
      %v1659 = vpack.c.b16 %v1652, %v1651
      %v1660 = vpack.c.b16 %v1654, %v1653
      %v1661 = vpack.c.b16 %v1656, %v1655
      %v1662 = vpack.c.b16 %v1658, %v1657
      %v1683 = vunpack.c.l.b16 %v1627
      %v1684 = vunpack.c.l.b16 %v1628
      %v1685 = vunpack.c.l.b16 %v1629
      %v1686 = vunpack.c.l.b16 %v1630
      %v1687 = vunpack.c.l.b16 %v1631
      %v1688 = vunpack.c.l.b16 %v1632
      %v1689 = vunpack.c.l.b16 %v1633
      %v1690 = vunpack.c.l.b16 %v1634
      %v1691 = vunpack.c.l.b16 %v1635
      %v1692 = vunpack.c.l.b16 %v1636
      %v1693 = vunpack.c.l.b16 %v1637
      %v1694 = vunpack.c.l.b16 %v1638
      %v1695 = vunpack.c.l.b16 %v1639
      %v1696 = vunpack.c.l.b16 %v1640
      %v1697 = vunpack.c.l.b16 %v1641
      %v1698 = vunpack.c.l.b16 %v1642
      %v1699 = vpack.c.b16 %v1684, %v1683
      %v1700 = vpack.c.b16 %v1686, %v1685
      %v1701 = vpack.c.b16 %v1688, %v1687
      %v1702 = vpack.c.b16 %v1690, %v1689
      %v1703 = vpack.c.b16 %v1692, %v1691
      %v1704 = vpack.c.b16 %v1694, %v1693
      %v1705 = vpack.c.b16 %v1696, %v1695
      %v1706 = vpack.c.b16 %v1698, %v1697
      %1715 = vmatprep.subr.bf16.mxu0 0
      %1716 = vmatpush1.bf16.msra.mxu0 %v1699
      %1717 = vmatprep.subr.bf16.mxu0 0
      %1718 = vmatpush1.bf16.msra.mxu0 %v1700
      %1719 = vmatprep.subr.bf16.mxu0 0
      %1720 = vmatpush1.bf16.msra.mxu0 %v1701
      %1721 = vmatprep.subr.bf16.mxu0 0
      %1722 = vmatpush1.bf16.msra.mxu0 %v1702
      %1723 = vmatprep.subr.bf16.mxu0 0
      %1724 = vmatpush1.bf16.msra.mxu0 %v1703
      %1725 = vmatprep.subr.bf16.mxu0 0
      %1726 = vmatpush1.bf16.msra.mxu0 %v1704
      %1727 = vmatprep.subr.bf16.mxu0 0
      %1728 = vmatpush1.bf16.msra.mxu0 %v1705
      %1729 = vmatprep.subr.bf16.mxu0 0
      %1730 = vmatpush1.bf16.msra.mxu0 %v1706
      %1731 = vmatprep.subr.bf16.mxu0 0
      %1732 = vmatpush1.bf16.msra.mxu0 0
      %1733 = vmatprep.subr.bf16.mxu0 0
      %1734 = vmatpush1.bf16.msra.mxu0 0
      %1735 = vmatprep.subr.bf16.mxu0 0
      %1736 = vmatpush1.bf16.msra.mxu0 0
      %1737 = vmatprep.subr.bf16.mxu0 0
      %1738 = vmatpush1.bf16.msra.mxu0 0
      %1739 = vmatprep.subr.bf16.mxu0 0
      %1740 = vmatpush1.bf16.msra.mxu0 0
      %1741 = vmatprep.subr.bf16.mxu0 0
      %1742 = vmatpush1.bf16.msra.mxu0 0
      %1743 = vmatprep.subr.bf16.mxu0 0
      %1744 = vmatpush1.bf16.msra.mxu0 0
      %1745 = vmatprep.subr.bf16.mxu0 0
      %1746 = vmatpush1.bf16.msra.mxu0 0
      %1747 = vmatprep.mubr.bf16.mxu0 0
      %1748 = vmatmul.mubr.bf16.gmra.mrb[0].mxu0 %v1659
      %v1749 = vpop.f32.mrb[0].mxu0
      %v1750 = vadd.f32 0.0, %v1749
      %v1751 = vpop.f32.mrb[0].mxu0
      %v1752 = vpop.f32.mrb[0].mxu0
      %v1753 = vadd.f32 0.0, %v1752
      %v1754 = vpop.f32.mrb[0].mxu0
      %1755 = vmatprep.mubr.bf16.mxu0 0
      %1756 = vmatmul.mubr.bf16.gmra.mrb[0].mxu0 %v1660
      %v1757 = vpop.f32.mrb[0].mxu0
      %v1758 = vadd.f32 0.0, %v1757
      %v1759 = vpop.f32.mrb[0].mxu0
      %v1760 = vpop.f32.mrb[0].mxu0
      %v1761 = vadd.f32 0.0, %v1760
      %v1762 = vpop.f32.mrb[0].mxu0
      %1763 = vmatprep.mubr.bf16.mxu0 0
      %1764 = vmatmul.mubr.bf16.gmra.mrb[0].mxu0 %v1661
      %v1765 = vpop.f32.mrb[0].mxu0
      %v1766 = vadd.f32 0.0, %v1765
      %v1767 = vpop.f32.mrb[0].mxu0
      %v1768 = vpop.f32.mrb[0].mxu0
      %v1769 = vadd.f32 0.0, %v1768
      %v1770 = vpop.f32.mrb[0].mxu0
      %1771 = vmatprep.mubr.bf16.mxu0 0
      %1772 = vmatmul.mubr.bf16.gmra.mrb[0].mxu0 %v1662
      %v1773 = vpop.f32.mrb[0].mxu0
      %v1774 = vadd.f32 0.0, %v1773
      %v1775 = vpop.f32.mrb[0].mxu0
      %v1776 = vpop.f32.mrb[0].mxu0
      %v1777 = vadd.f32 0.0, %v1776
      %v1778 = vpop.f32.mrb[0].mxu0
      %1779 = vdwg.mxu0
      %v1780 = vld [vmem:[#allocation2] sm:$0xff]
      %v1781 = vld [vmem:[#allocation2 + $0x8] sm:$0xff]
      %v1782 = vld [vmem:[#allocation2 + $0x10] sm:$0xff]
      %v1783 = vld [vmem:[#allocation2 + $0x18] sm:$0xff]
      %v1784 = vld [vmem:[#allocation2 + $0x20] sm:$0xff]
      %v1785 = vld [vmem:[#allocation2 + $0x28] sm:$0xff]
      %v1786 = vld [vmem:[#allocation2 + $0x30] sm:$0xff]
      %v1787 = vld [vmem:[#allocation2 + $0x38] sm:$0xff]
      %v1788 = vadd.f32 %v1780, %v1750
      %v1789 = vadd.f32 %v1781, %v1753
      %v1790 = vadd.f32 %v1782, %v1758
      %v1791 = vadd.f32 %v1783, %v1761
      %v1792 = vadd.f32 %v1784, %v1766
      %v1793 = vadd.f32 %v1785, %v1769
      %v1794 = vadd.f32 %v1786, %v1774
      %v1795 = vadd.f32 %v1787, %v1777
      %1796 = vst [vmem:[#allocation2] sm:$0xff] %v1788
      %1797 = vst [vmem:[#allocation2 + $0x8] sm:$0xff] %v1789
      %1798 = vst [vmem:[#allocation2 + $0x10] sm:$0xff] %v1790
      %1799 = vst [vmem:[#allocation2 + $0x18] sm:$0xff] %v1791
      %1800 = vst [vmem:[#allocation2 + $0x20] sm:$0xff] %v1792
      %1801 = vst [vmem:[#allocation2 + $0x28] sm:$0xff] %v1793
      %1802 = vst [vmem:[#allocation2 + $0x30] sm:$0xff] %v1794
      %1803 = vst [vmem:[#allocation2 + $0x38] sm:$0xff] %v1795
      %v1804 = vld [vmem:[%s1617] sm:$0xf]
      %v1805 = vld [vmem:[%s1617 + $0x4] sm:$0xf]
      %v1806 = vld [vmem:[%s1617 + $0x8] sm:$0x1]
      %v1807 = vld [vmem:[%s1617 + $0xc] sm:$0xf]
      %v1808 = vld [vmem:[%s1617 + $0x10] sm:$0xf]
      %v1809 = vld [vmem:[%s1617 + $0x14] sm:$0x1]
      %v1810 = vld [vmem:[%s1617 + $0x18] sm:$0xf]
      %v1811 = vld [vmem:[%s1617 + $0x1c] sm:$0xf]
      %v1812 = vld [vmem:[%s1617 + $0x20] sm:$0x1]
      %v1813 = vld [vmem:[%s1617 + $0x24] sm:$0xf]
      %v1814 = vld [vmem:[%s1617 + $0x28] sm:$0xf]
      %v1815 = vld [vmem:[%s1617 + $0x2c] sm:$0x1]
      %v1817 = vshrl.u32 %v1804, 16
      %v1819 = vrot.slane %v1817, 4
      %v1820 = vshll.u32 %v1804, 16
      %v1822 = vrot.slane %v1820, 5
      %v1823 = vor.u32 %v1819, %v1822
      %v1824 = vrot.slane %v1823, 4
      %v1826 = vshll.u32 %v1805, 16
      %v1828 = vrot.slane %v1826, 5
      %v1829 = vsel %vm432, %v1824, %v1828
      %v1830 = vshrl.u32 %v1805, 16
      %v1832 = vrot.slane %v1830, 4
      %v1833 = vor.u32 %v1832, %v1828
      %v1834 = vrot.slane %v1833, 4
      %v1836 = vshll.u32 %v1806, 16
      %v1838 = vrot.slane %v1836, 5
      %v1839 = vsel %vm432, %v1834, %v1838
      %v1841 = vshrl.u32 %v1807, 16
      %v1843 = vrot.slane %v1841, 4
      %v1844 = vshll.u32 %v1807, 16
      %v1846 = vrot.slane %v1844, 5
      %v1847 = vor.u32 %v1843, %v1846
      %v1848 = vrot.slane %v1847, 4
      %v1850 = vshll.u32 %v1808, 16
      %v1852 = vrot.slane %v1850, 5
      %v1853 = vsel %vm432, %v1848, %v1852
      %v1854 = vshrl.u32 %v1808, 16
      %v1856 = vrot.slane %v1854, 4
      %v1857 = vor.u32 %v1856, %v1852
      %v1858 = vrot.slane %v1857, 4
      %v1860 = vshll.u32 %v1809, 16
      %v1862 = vrot.slane %v1860, 5
      %v1863 = vsel %vm432, %v1858, %v1862
      %v1865 = vshrl.u32 %v1810, 16
      %v1867 = vrot.slane %v1865, 4
      %v1868 = vshll.u32 %v1810, 16
      %v1870 = vrot.slane %v1868, 5
      %v1871 = vor.u32 %v1867, %v1870
      %v1872 = vrot.slane %v1871, 4
      %v1874 = vshll.u32 %v1811, 16
      %v1876 = vrot.slane %v1874, 5
      %v1877 = vsel %vm432, %v1872, %v1876
      %v1878 = vshrl.u32 %v1811, 16
      %v1880 = vrot.slane %v1878, 4
      %v1881 = vor.u32 %v1880, %v1876
      %v1882 = vrot.slane %v1881, 4
      %v1884 = vshll.u32 %v1812, 16
      %v1886 = vrot.slane %v1884, 5
      %v1887 = vsel %vm432, %v1882, %v1886
      %v1889 = vshrl.u32 %v1813, 16
      %v1891 = vrot.slane %v1889, 4
      %v1892 = vshll.u32 %v1813, 16
      %v1894 = vrot.slane %v1892, 5
      %v1895 = vor.u32 %v1891, %v1894
      %v1896 = vrot.slane %v1895, 4
      %v1898 = vshll.u32 %v1814, 16
      %v1900 = vrot.slane %v1898, 5
      %v1901 = vsel %vm432, %v1896, %v1900
      %v1902 = vshrl.u32 %v1814, 16
      %v1904 = vrot.slane %v1902, 4
      %v1905 = vor.u32 %v1904, %v1900
      %v1906 = vrot.slane %v1905, 4
      %v1908 = vshll.u32 %v1815, 16
      %v1910 = vrot.slane %v1908, 5
      %v1911 = vsel %vm432, %v1906, %v1910
      %s1912 = scalar_lea.vmem %s1, 448
      %v1913 = vld [vmem:[%s1912] sm:$0xf]
      %v1914 = vld [vmem:[%s1912 + $0x4] sm:$0xf]
      %v1915 = vld [vmem:[%s1912 + $0x8] sm:$0xf]
      %v1916 = vld [vmem:[%s1912 + $0xc] sm:$0xf]
      %v1917 = vld [vmem:[%s1912 + $0x10] sm:$0xf]
      %v1918 = vld [vmem:[%s1912 + $0x14] sm:$0xf]
      %v1919 = vld [vmem:[%s1912 + $0x18] sm:$0xf]
      %v1920 = vld [vmem:[%s1912 + $0x1c] sm:$0xf]
      %v1921 = vld [vmem:[%s1912 + $0x20] sm:$0xf]
      %v1922 = vld [vmem:[%s1912 + $0x24] sm:$0xf]
      %v1923 = vld [vmem:[%s1912 + $0x28] sm:$0xf]
      %v1924 = vld [vmem:[%s1912 + $0x2c] sm:$0xf]
      %v1925 = vld [vmem:[%s1912 + $0x30] sm:$0xf]
      %v1926 = vld [vmem:[%s1912 + $0x34] sm:$0xf]
      %v1927 = vld [vmem:[%s1912 + $0x38] sm:$0xf]
      %v1928 = vld [vmem:[%s1912 + $0x3c] sm:$0xf]
      %v1929 = vunpack.c.l.b16 %v1829
      %v1930 = vunpack.c.l.b16 %v1839
      %v1931 = vunpack.c.l.b16 %v1853
      %v1932 = vunpack.c.l.b16 %v1863
      %v1933 = vunpack.c.l.b16 %v1877
      %v1934 = vunpack.c.l.b16 %v1887
      %v1935 = vunpack.c.l.b16 %v1901
      %v1936 = vunpack.c.l.b16 %v1911
      %v1937 = vpack.c.b16 %v1930, %v1929
      %v1938 = vpack.c.b16 %v1932, %v1931
      %v1939 = vpack.c.b16 %v1934, %v1933
      %v1940 = vpack.c.b16 %v1936, %v1935
      %v1961 = vunpack.c.l.b16 %v1913
      %v1962 = vunpack.c.l.b16 %v1914
      %v1963 = vunpack.c.l.b16 %v1915
      %v1964 = vunpack.c.l.b16 %v1916
      %v1965 = vunpack.c.l.b16 %v1917
      %v1966 = vunpack.c.l.b16 %v1918
      %v1967 = vunpack.c.l.b16 %v1919
      %v1968 = vunpack.c.l.b16 %v1920
      %v1969 = vunpack.c.l.b16 %v1921
      %v1970 = vunpack.c.l.b16 %v1922
      %v1971 = vunpack.c.l.b16 %v1923
      %v1972 = vunpack.c.l.b16 %v1924
      %v1973 = vunpack.c.l.b16 %v1925
      %v1974 = vunpack.c.l.b16 %v1926
      %v1975 = vunpack.c.l.b16 %v1927
      %v1976 = vunpack.c.l.b16 %v1928
      %v1977 = vpack.c.b16 %v1962, %v1961
      %v1978 = vpack.c.b16 %v1964, %v1963
      %v1979 = vpack.c.b16 %v1966, %v1965
      %v1980 = vpack.c.b16 %v1968, %v1967
      %v1981 = vpack.c.b16 %v1970, %v1969
      %v1982 = vpack.c.b16 %v1972, %v1971
      %v1983 = vpack.c.b16 %v1974, %v1973
      %v1984 = vpack.c.b16 %v1976, %v1975
      %1993 = vmatprep.subr.bf16.mxu0 0
      %1994 = vmatpush1.bf16.msra.mxu0 %v1977
      %1995 = vmatprep.subr.bf16.mxu0 0
      %1996 = vmatpush1.bf16.msra.mxu0 %v1978
      %1997 = vmatprep.subr.bf16.mxu0 0
      %1998 = vmatpush1.bf16.msra.mxu0 %v1979
      %1999 = vmatprep.subr.bf16.mxu0 0
      %2000 = vmatpush1.bf16.msra.mxu0 %v1980
      %2001 = vmatprep.subr.bf16.mxu0 0
      %2002 = vmatpush1.bf16.msra.mxu0 %v1981
      %2003 = vmatprep.subr.bf16.mxu0 0
      %2004 = vmatpush1.bf16.msra.mxu0 %v1982
      %2005 = vmatprep.subr.bf16.mxu0 0
      %2006 = vmatpush1.bf16.msra.mxu0 %v1983
      %2007 = vmatprep.subr.bf16.mxu0 0
      %2008 = vmatpush1.bf16.msra.mxu0 %v1984
      %2009 = vmatprep.subr.bf16.mxu0 0
      %2010 = vmatpush1.bf16.msra.mxu0 0
      %2011 = vmatprep.subr.bf16.mxu0 0
      %2012 = vmatpush1.bf16.msra.mxu0 0
      %2013 = vmatprep.subr.bf16.mxu0 0
      %2014 = vmatpush1.bf16.msra.mxu0 0
      %2015 = vmatprep.subr.bf16.mxu0 0
      %2016 = vmatpush1.bf16.msra.mxu0 0
      %2017 = vmatprep.subr.bf16.mxu0 0
      %2018 = vmatpush1.bf16.msra.mxu0 0
      %2019 = vmatprep.subr.bf16.mxu0 0
      %2020 = vmatpush1.bf16.msra.mxu0 0
      %2021 = vmatprep.subr.bf16.mxu0 0
      %2022 = vmatpush1.bf16.msra.mxu0 0
      %2023 = vmatprep.subr.bf16.mxu0 0
      %2024 = vmatpush1.bf16.msra.mxu0 0
      %2025 = vmatprep.mubr.bf16.mxu0 0
      %2026 = vmatmul.mubr.bf16.gmra.mrb[0].mxu0 %v1937
      %v2027 = vpop.f32.mrb[0].mxu0
      %v2028 = vadd.f32 0.0, %v2027
      %v2029 = vpop.f32.mrb[0].mxu0
      %v2030 = vpop.f32.mrb[0].mxu0
      %v2031 = vadd.f32 0.0, %v2030
      %v2032 = vpop.f32.mrb[0].mxu0
      %2033 = vmatprep.mubr.bf16.mxu0 0
      %2034 = vmatmul.mubr.bf16.gmra.mrb[0].mxu0 %v1938
      %v2035 = vpop.f32.mrb[0].mxu0
      %v2036 = vadd.f32 0.0, %v2035
      %v2037 = vpop.f32.mrb[0].mxu0
      %v2038 = vpop.f32.mrb[0].mxu0
      %v2039 = vadd.f32 0.0, %v2038
      %v2040 = vpop.f32.mrb[0].mxu0
      %2041 = vmatprep.mubr.bf16.mxu0 0
      %2042 = vmatmul.mubr.bf16.gmra.mrb[0].mxu0 %v1939
      %v2043 = vpop.f32.mrb[0].mxu0
      %v2044 = vadd.f32 0.0, %v2043
      %v2045 = vpop.f32.mrb[0].mxu0
      %v2046 = vpop.f32.mrb[0].mxu0
      %v2047 = vadd.f32 0.0, %v2046
      %v2048 = vpop.f32.mrb[0].mxu0
      %2049 = vmatprep.mubr.bf16.mxu0 0
      %2050 = vmatmul.mubr.bf16.gmra.mrb[0].mxu0 %v1940
      %v2051 = vpop.f32.mrb[0].mxu0
      %v2052 = vadd.f32 0.0, %v2051
      %v2053 = vpop.f32.mrb[0].mxu0
      %v2054 = vpop.f32.mrb[0].mxu0
      %v2055 = vadd.f32 0.0, %v2054
      %v2056 = vpop.f32.mrb[0].mxu0
      %2057 = vdwg.mxu0
      %v2058 = vld [vmem:[#allocation2] sm:$0xff]
      %v2059 = vld [vmem:[#allocation2 + $0x8] sm:$0xff]
      %v2060 = vld [vmem:[#allocation2 + $0x10] sm:$0xff]
      %v2061 = vld [vmem:[#allocation2 + $0x18] sm:$0xff]
      %v2062 = vld [vmem:[#allocation2 + $0x20] sm:$0xff]
      %v2063 = vld [vmem:[#allocation2 + $0x28] sm:$0xff]
      %v2064 = vld [vmem:[#allocation2 + $0x30] sm:$0xff]
      %v2065 = vld [vmem:[#allocation2 + $0x38] sm:$0xff]
      %v2066 = vadd.f32 %v2058, %v2028
      %v2067 = vadd.f32 %v2059, %v2031
      %v2068 = vadd.f32 %v2060, %v2036
      %v2069 = vadd.f32 %v2061, %v2039
      %v2070 = vadd.f32 %v2062, %v2044
      %v2071 = vadd.f32 %v2063, %v2047
      %v2072 = vadd.f32 %v2064, %v2052
      %v2073 = vadd.f32 %v2065, %v2055
      %2074 = vst [vmem:[#allocation2] sm:$0xff] %v2066
      %2075 = vst [vmem:[#allocation2 + $0x8] sm:$0xff] %v2067
      %2076 = vst [vmem:[#allocation2 + $0x10] sm:$0xff] %v2068
      %2077 = vst [vmem:[#allocation2 + $0x18] sm:$0xff] %v2069
      %2078 = vst [vmem:[#allocation2 + $0x20] sm:$0xff] %v2070
      %2079 = vst [vmem:[#allocation2 + $0x28] sm:$0xff] %v2071
      %2080 = vst [vmem:[#allocation2 + $0x30] sm:$0xff] %v2072
      %2081 = vst [vmem:[#allocation2 + $0x38] sm:$0xff] %v2073
      %v2082 = vld [vmem:[%s1617] sm:$0xe]
      %v2083 = vld [vmem:[%s1617 + $0x4] sm:$0xf]
      %v2084 = vld [vmem:[%s1617 + $0x8] sm:$0x1]
      %v2085 = vld [vmem:[%s1617 + $0xc] sm:$0xe]
      %v2086 = vld [vmem:[%s1617 + $0x10] sm:$0xf]
      %v2087 = vld [vmem:[%s1617 + $0x14] sm:$0x1]
      %v2088 = vld [vmem:[%s1617 + $0x18] sm:$0xe]
      %v2089 = vld [vmem:[%s1617 + $0x1c] sm:$0xf]
      %v2090 = vld [vmem:[%s1617 + $0x20] sm:$0x1]
      %v2091 = vld [vmem:[%s1617 + $0x24] sm:$0xe]
      %v2092 = vld [vmem:[%s1617 + $0x28] sm:$0xf]
      %v2093 = vld [vmem:[%s1617 + $0x2c] sm:$0x1]
      %v2106 = vrot.slane %v2082, 5
      %v2107 = vrot.slane %v2106, 4
      %v2108 = vrot.slane %v2083, 5
      %v2109 = vsel %vm725, %v2107, %v2108
      %v2110 = vrot.slane %v2108, 4
      %v2111 = vrot.slane %v2084, 5
      %v2112 = vsel %vm725, %v2110, %v2111
      %v2113 = vrot.slane %v2085, 5
      %v2114 = vrot.slane %v2113, 4
      %v2115 = vrot.slane %v2086, 5
      %v2116 = vsel %vm725, %v2114, %v2115
      %v2117 = vrot.slane %v2115, 4
      %v2118 = vrot.slane %v2087, 5
      %v2119 = vsel %vm725, %v2117, %v2118
      %v2120 = vrot.slane %v2088, 5
      %v2121 = vrot.slane %v2120, 4
      %v2122 = vrot.slane %v2089, 5
      %v2123 = vsel %vm725, %v2121, %v2122
      %v2124 = vrot.slane %v2122, 4
      %v2125 = vrot.slane %v2090, 5
      %v2126 = vsel %vm725, %v2124, %v2125
      %v2127 = vrot.slane %v2091, 5
      %v2128 = vrot.slane %v2127, 4
      %v2129 = vrot.slane %v2092, 5
      %v2130 = vsel %vm725, %v2128, %v2129
      %v2131 = vrot.slane %v2129, 4
      %v2132 = vrot.slane %v2093, 5
      %v2133 = vsel %vm725, %v2131, %v2132
      %s2134 = scalar_lea.vmem %s1, 512
      %v2135 = vld [vmem:[%s2134] sm:$0xf]
      %v2136 = vld [vmem:[%s2134 + $0x4] sm:$0xf]
      %v2137 = vld [vmem:[%s2134 + $0x8] sm:$0xf]
      %v2138 = vld [vmem:[%s2134 + $0xc] sm:$0xf]
      %v2139 = vld [vmem:[%s2134 + $0x10] sm:$0xf]
      %v2140 = vld [vmem:[%s2134 + $0x14] sm:$0xf]
      %v2141 = vld [vmem:[%s2134 + $0x18] sm:$0xf]
      %v2142 = vld [vmem:[%s2134 + $0x1c] sm:$0xf]
      %v2143 = vld [vmem:[%s2134 + $0x20] sm:$0xf]
      %v2144 = vld [vmem:[%s2134 + $0x24] sm:$0xf]
      %v2145 = vld [vmem:[%s2134 + $0x28] sm:$0xf]
      %v2146 = vld [vmem:[%s2134 + $0x2c] sm:$0xf]
      %v2147 = vld [vmem:[%s2134 + $0x30] sm:$0xf]
      %v2148 = vld [vmem:[%s2134 + $0x34] sm:$0xf]
      %v2149 = vld [vmem:[%s2134 + $0x38] sm:$0xf]
      %v2150 = vld [vmem:[%s2134 + $0x3c] sm:$0xf]
      %v2151 = vunpack.c.l.b16 %v2109
      %v2152 = vunpack.c.l.b16 %v2112
      %v2153 = vunpack.c.l.b16 %v2116
      %v2154 = vunpack.c.l.b16 %v2119
      %v2155 = vunpack.c.l.b16 %v2123
      %v2156 = vunpack.c.l.b16 %v2126
      %v2157 = vunpack.c.l.b16 %v2130
      %v2158 = vunpack.c.l.b16 %v2133
      %v2159 = vpack.c.b16 %v2152, %v2151
      %v2160 = vpack.c.b16 %v2154, %v2153
      %v2161 = vpack.c.b16 %v2156, %v2155
      %v2162 = vpack.c.b16 %v2158, %v2157
      %v2183 = vunpack.c.l.b16 %v2135
      %v2184 = vunpack.c.l.b16 %v2136
      %v2185 = vunpack.c.l.b16 %v2137
      %v2186 = vunpack.c.l.b16 %v2138
      %v2187 = vunpack.c.l.b16 %v2139
      %v2188 = vunpack.c.l.b16 %v2140
      %v2189 = vunpack.c.l.b16 %v2141
      %v2190 = vunpack.c.l.b16 %v2142
      %v2191 = vunpack.c.l.b16 %v2143
      %v2192 = vunpack.c.l.b16 %v2144
      %v2193 = vunpack.c.l.b16 %v2145
      %v2194 = vunpack.c.l.b16 %v2146
      %v2195 = vunpack.c.l.b16 %v2147
      %v2196 = vunpack.c.l.b16 %v2148
      %v2197 = vunpack.c.l.b16 %v2149
      %v2198 = vunpack.c.l.b16 %v2150
      %v2199 = vpack.c.b16 %v2184, %v2183
      %v2200 = vpack.c.b16 %v2186, %v2185
      %v2201 = vpack.c.b16 %v2188, %v2187
      %v2202 = vpack.c.b16 %v2190, %v2189
      %v2203 = vpack.c.b16 %v2192, %v2191
      %v2204 = vpack.c.b16 %v2194, %v2193
      %v2205 = vpack.c.b16 %v2196, %v2195
      %v2206 = vpack.c.b16 %v2198, %v2197
      %2215 = vmatprep.subr.bf16.mxu0 0
      %2216 = vmatpush1.bf16.msra.mxu0 %v2199
      %2217 = vmatprep.subr.bf16.mxu0 0
      %2218 = vmatpush1.bf16.msra.mxu0 %v2200
      %2219 = vmatprep.subr.bf16.mxu0 0
      %2220 = vmatpush1.bf16.msra.mxu0 %v2201
      %2221 = vmatprep.subr.bf16.mxu0 0
      %2222 = vmatpush1.bf16.msra.mxu0 %v2202
      %2223 = vmatprep.subr.bf16.mxu0 0
      %2224 = vmatpush1.bf16.msra.mxu0 %v2203
      %2225 = vmatprep.subr.bf16.mxu0 0
      %2226 = vmatpush1.bf16.msra.mxu0 %v2204
      %2227 = vmatprep.subr.bf16.mxu0 0
      %2228 = vmatpush1.bf16.msra.mxu0 %v2205
      %2229 = vmatprep.subr.bf16.mxu0 0
      %2230 = vmatpush1.bf16.msra.mxu0 %v2206
      %2231 = vmatprep.subr.bf16.mxu0 0
      %2232 = vmatpush1.bf16.msra.mxu0 0
      %2233 = vmatprep.subr.bf16.mxu0 0
      %2234 = vmatpush1.bf16.msra.mxu0 0
      %2235 = vmatprep.subr.bf16.mxu0 0
      %2236 = vmatpush1.bf16.msra.mxu0 0
      %2237 = vmatprep.subr.bf16.mxu0 0
      %2238 = vmatpush1.bf16.msra.mxu0 0
      %2239 = vmatprep.subr.bf16.mxu0 0
      %2240 = vmatpush1.bf16.msra.mxu0 0
      %2241 = vmatprep.subr.bf16.mxu0 0
      %2242 = vmatpush1.bf16.msra.mxu0 0
      %2243 = vmatprep.subr.bf16.mxu0 0
      %2244 = vmatpush1.bf16.msra.mxu0 0
      %2245 = vmatprep.subr.bf16.mxu0 0
      %2246 = vmatpush1.bf16.msra.mxu0 0
      %2247 = vmatprep.mubr.bf16.mxu0 0
      %2248 = vmatmul.mubr.bf16.gmra.mrb[0].mxu0 %v2159
      %v2249 = vpop.f32.mrb[0].mxu0
      %v2250 = vadd.f32 0.0, %v2249
      %v2251 = vpop.f32.mrb[0].mxu0
      %v2252 = vpop.f32.mrb[0].mxu0
      %v2253 = vadd.f32 0.0, %v2252
      %v2254 = vpop.f32.mrb[0].mxu0
      %2255 = vmatprep.mubr.bf16.mxu0 0
      %2256 = vmatmul.mubr.bf16.gmra.mrb[0].mxu0 %v2160
      %v2257 = vpop.f32.mrb[0].mxu0
      %v2258 = vadd.f32 0.0, %v2257
      %v2259 = vpop.f32.mrb[0].mxu0
      %v2260 = vpop.f32.mrb[0].mxu0
      %v2261 = vadd.f32 0.0, %v2260
      %v2262 = vpop.f32.mrb[0].mxu0
      %2263 = vmatprep.mubr.bf16.mxu0 0
      %2264 = vmatmul.mubr.bf16.gmra.mrb[0].mxu0 %v2161
      %v2265 = vpop.f32.mrb[0].mxu0
      %v2266 = vadd.f32 0.0, %v2265
      %v2267 = vpop.f32.mrb[0].mxu0
      %v2268 = vpop.f32.mrb[0].mxu0
      %v2269 = vadd.f32 0.0, %v2268
      %v2270 = vpop.f32.mrb[0].mxu0
      %2271 = vmatprep.mubr.bf16.mxu0 0
      %2272 = vmatmul.mubr.bf16.gmra.mrb[0].mxu0 %v2162
      %v2273 = vpop.f32.mrb[0].mxu0
      %v2274 = vadd.f32 0.0, %v2273
      %v2275 = vpop.f32.mrb[0].mxu0
      %v2276 = vpop.f32.mrb[0].mxu0
      %v2277 = vadd.f32 0.0, %v2276
      %v2278 = vpop.f32.mrb[0].mxu0
      %2279 = vdwg.mxu0
      %v2280 = vld [vmem:[#allocation2] sm:$0xff]
      %v2281 = vld [vmem:[#allocation2 + $0x8] sm:$0xff]
      %v2282 = vld [vmem:[#allocation2 + $0x10] sm:$0xff]
      %v2283 = vld [vmem:[#allocation2 + $0x18] sm:$0xff]
      %v2284 = vld [vmem:[#allocation2 + $0x20] sm:$0xff]
      %v2285 = vld [vmem:[#allocation2 + $0x28] sm:$0xff]
      %v2286 = vld [vmem:[#allocation2 + $0x30] sm:$0xff]
      %v2287 = vld [vmem:[#allocation2 + $0x38] sm:$0xff]
      %v2288 = vadd.f32 %v2280, %v2250
      %v2289 = vadd.f32 %v2281, %v2253
      %v2290 = vadd.f32 %v2282, %v2258
      %v2291 = vadd.f32 %v2283, %v2261
      %v2292 = vadd.f32 %v2284, %v2266
      %v2293 = vadd.f32 %v2285, %v2269
      %v2294 = vadd.f32 %v2286, %v2274
      %v2295 = vadd.f32 %v2287, %v2277
      %2296 = vst [vmem:[#allocation2] sm:$0xff] %v2288
      %2297 = vst [vmem:[#allocation2 + $0x8] sm:$0xff] %v2289
      %2298 = vst [vmem:[#allocation2 + $0x10] sm:$0xff] %v2290
      %2299 = vst [vmem:[#allocation2 + $0x18] sm:$0xff] %v2291
      %2300 = vst [vmem:[#allocation2 + $0x20] sm:$0xff] %v2292
      %2301 = vst [vmem:[#allocation2 + $0x28] sm:$0xff] %v2293
      %2302 = vst [vmem:[#allocation2 + $0x30] sm:$0xff] %v2294
      %2303 = vst [vmem:[#allocation2 + $0x38] sm:$0xff] %v2295
      %v2304 = vld [vmem:[#allocation2] sm:$0xff]
      %v2305 = vld [vmem:[#allocation2 + $0x8] sm:$0xff]
      %v2306 = vld [vmem:[#allocation2 + $0x10] sm:$0xff]
      %v2307 = vld [vmem:[#allocation2 + $0x18] sm:$0xff]
      %v2308 = vld [vmem:[#allocation2 + $0x20] sm:$0xff]
      %v2309 = vld [vmem:[#allocation2 + $0x28] sm:$0xff]
      %v2310 = vld [vmem:[#allocation2 + $0x30] sm:$0xff]
      %v2311 = vld [vmem:[#allocation2 + $0x38] sm:$0xff]
      %v2312 = vld [vmem:[%s2] sm:$0x1]
      %v2314 = vlaneseq
      %v2315 = vshrl.u32 %v2314, 7
      %v2316 = vsub.s32 0, %v2315
      %v2317 = vrot.slane %v2312, %v2316
      %v2319 = vadd.f32 %v2304, %v2317
      %v2320 = vadd.f32 %v2305, %v2317
      %v2321 = vadd.f32 %v2306, %v2317
      %v2322 = vadd.f32 %v2307, %v2317
      %v2323 = vadd.f32 %v2308, %v2317
      %v2324 = vadd.f32 %v2309, %v2317
      %v2325 = vadd.f32 %v2310, %v2317
      %v2326 = vadd.f32 %v2311, %v2317
      %v2327 = vpack.c.bf16 %v2320, %v2319
      %v2328 = vpack.c.bf16 %v2322, %v2321
      %v2329 = vpack.c.bf16 %v2324, %v2323
      %v2330 = vpack.c.bf16 %v2326, %v2325
      %v2335 = vunpack.c.l.b16 %v2327
      %v2336 = vunpack.c.h.b16 %v2327
      %v2337 = vunpack.c.l.b16 %v2328
      %v2338 = vunpack.c.h.b16 %v2328
      %v2339 = vunpack.c.l.b16 %v2329
      %v2340 = vunpack.c.h.b16 %v2329
      %v2341 = vunpack.c.l.b16 %v2330
      %v2342 = vunpack.c.h.b16 %v2330
      %v2343 = vpack.c.b16 %v2335, %v2335
      %v2344 = vpack.c.b16 %v2336, %v2336
      %v2345 = vpack.c.b16 %v2337, %v2337
      %v2346 = vpack.c.b16 %v2338, %v2338
      %v2347 = vpack.c.b16 %v2339, %v2339
      %v2348 = vpack.c.b16 %v2340, %v2340
      %v2349 = vpack.c.b16 %v2341, %v2341
      %v2350 = vpack.c.b16 %v2342, %v2342
      %2359 = vst [vmem:[%s234] sm:$0xf] %v2343
      %2360 = vst [vmem:[%s234 + $0x4] sm:$0xf] %v2344
      %2361 = vst [vmem:[%s234 + $0x8] sm:$0xf] %v2345
      %2362 = vst [vmem:[%s234 + $0xc] sm:$0xf] %v2346
      %2363 = vst [vmem:[%s234 + $0x10] sm:$0xf] %v2347
      %2364 = vst [vmem:[%s234 + $0x14] sm:$0xf] %v2348
      %2365 = vst [vmem:[%s234 + $0x18] sm:$0xf] %v2349
      %2366 = vst [vmem:[%s234 + $0x1c] sm:$0xf] %v2350
      %v2367 = vadd.f32 %v2319, %v2320
      %v2368 = vadd.f32 %v2367, %v2321
      %v2369 = vadd.f32 %v2368, %v2322
      %v2370 = vadd.f32 %v2369, %v2323
      %v2371 = vadd.f32 %v2370, %v2324
      %v2372 = vadd.f32 %v2371, %v2325
      %v2373 = vadd.f32 %v2372, %v2326
      %v2374 = vrot.slane %v2373, 4
      %v2375 = vadd.f32 %v2373, %v2374
      %v2376 = vrot.slane %v2375, 2
      %v2377 = vadd.f32 %v2375, %v2376
      %v2378 = vrot.slane %v2377, 1
      %v2379 = vadd.f32 %v2377, %v2378
      %v2380 = vmul.f32 %v2319, %v2319
      %v2381 = vmul.f32 %v2320, %v2320
      %v2382 = vmul.f32 %v2321, %v2321
      %v2383 = vmul.f32 %v2322, %v2322
      %v2384 = vmul.f32 %v2323, %v2323
      %v2385 = vmul.f32 %v2324, %v2324
      %v2386 = vmul.f32 %v2325, %v2325
      %v2387 = vmul.f32 %v2326, %v2326
      %v2388 = vadd.f32 %v2380, %v2381
      %v2389 = vadd.f32 %v2388, %v2382
      %v2390 = vadd.f32 %v2389, %v2383
      %v2391 = vadd.f32 %v2390, %v2384
      %v2392 = vadd.f32 %v2391, %v2385
      %v2393 = vadd.f32 %v2392, %v2386
      %v2394 = vadd.f32 %v2393, %v2387
      %v2395 = vrot.slane %v2394, 4
      %v2396 = vadd.f32 %v2394, %v2395
      %v2397 = vrot.slane %v2396, 2
      %v2398 = vadd.f32 %v2396, %v2397
      %v2399 = vrot.slane %v2398, 1
      %v2400 = vadd.f32 %v2398, %v2399
      %vm2401 = vcmask 1040384
      %v2402 = vsel %vm2401, %v2379, %v2400
      %2403 = vst [vmem:[%s243] sm:$0x3] %v2402
      %s2404 = smul.u32 4, %s21
      %p2405 = scmp.lt.s32.totalorder %s20, 1
      %s2406 = scalar_select %p2405, %s20, 1
      %p2407 = scmp.lt.s32.totalorder %s2404, 15
      %s2408 = scalar_select %p2407, %s2404, 15
      %s2409 = smul.addr %s2408, 2
      %s2410 = smul.addr %s2406, 32
      %s2411 = sadd.s32 %s2409, %s2410
      %s2412 = smul.addr %s2411, 4
      %s2413 = scalar_lea.vmem %s3, %s2412
      %p2414 = scmp.lt.s32.totalorder %s20, 1
      %s2415 = scalar_select %p2414, %s20, 1
      %p2416 = scmp.lt.s32.totalorder %s21, 3
      %s2417 = scalar_select %p2416, %s21, 3
      %s2418 = smul.addr %s2415, 4
      %s2419 = sadd.s32 %s2417, %s2418
      %s2420 = smul.addr %s2419, 2
      %s2421 = scalar_lea.vmem %s4, %s2420
      // Predicated region
      $region33: #{_lambda_.4} parent=31 // pred_check
        %p2422 = pneg %p116
      $region34: #{_lambda_.4} parent=31 // pred_check_branch
        %2424 = sbr.rel (%p2422) target = $region36
      $region35: #{_lambda_.4} parent=31 // pred_region
        %s2425 = smul.u32 4, %s21
      $region36: #{_lambda_.4} parent=31 // pred_fallthru
        _
      // Predicated region
      $region37: #{_lambda_.4} parent=31 // pred_check
        %p2426 = pneg %p144
      $region38: #{_lambda_.4} parent=31 // pred_check_branch
        %2428 = sbr.rel (%p2426) target = $region40
      $region39: #{_lambda_.4} parent=31 // pred_region
        _
      $region40: #{_lambda_.4} parent=31 // pred_fallthru
        _
    $region32: #{_lambda_.4} parent=5 // pred_fallthru
      _
    %p2429 = scmp.le.s32.totalorder 2, %s11
    // Predicated region
    $region41: #{_lambda_.4} parent=5 // pred_check
      %p2430 = pneg %p2429
    $region42: #{_lambda_.4} parent=5 // pred_check_branch
      %2432 = sbr.rel (%p2430) target = $region44
    $region43: #{_lambda_.4} parent=5 // pred_region
      %s2433 = ssub.s32 %s11, 2
      // Predicated region
      $region45: #{_lambda_.4} parent=43 // pred_check
        %p2434 = pneg %p122
      $region46: #{_lambda_.4} parent=43 // pred_check_branch
        %2436 = sbr.rel (%p2434) target = $region48
      $region47: #{_lambda_.4} parent=43 // pred_region
        %s2437 = smul.u32 4, %s23
        %p2438 = scmp.lt.s32.totalorder %s22, 1
        %s2439 = scalar_select %p2438, %s22, 1
        %p2440 = scmp.lt.s32.totalorder %s2437, 15
        %s2441 = scalar_select %p2440, %s2437, 15
        %s2442 = smul.addr %s2441, 2
        %s2443 = smul.addr %s2439, 32
        %s2444 = sadd.s32 %s2442, %s2443
        %s2445 = smul.addr %s2444, 4
        %s2446 = scalar_lea.vmem %s3, %s2445
      $region48: #{_lambda_.4} parent=43 // pred_fallthru
        _
      // Predicated region
      $region49: #{_lambda_.4} parent=43 // pred_check
        %p2447 = pneg %p150
      $region50: #{_lambda_.4} parent=43 // pred_check_branch
        %2449 = sbr.rel (%p2447) target = $region52
      $region51: #{_lambda_.4} parent=43 // pred_region
        %p2450 = scmp.lt.s32.totalorder %s22, 1
        %s2451 = scalar_select %p2450, %s22, 1
        %p2452 = scmp.lt.s32.totalorder %s23, 3
        %s2453 = scalar_select %p2452, %s23, 3
        %s2454 = smul.addr %s2451, 4
        %s2455 = sadd.s32 %s2453, %s2454
        %s2456 = smul.addr %s2455, 2
        %s2457 = scalar_lea.vmem %s4, %s2456
      $region52: #{_lambda_.4} parent=43 // pred_fallthru
        _
    $region44: #{_lambda_.4} parent=5 // pred_fallthru
      _
  $region6: #{_lambda_.4} parent=0 // loop_footer
    %s15 = sadd.s32 1, %s11
  $region7: #{_lambda_.4} parent=0 // loop_footer_branch
    %10 = sbr.rel target = $region3
  $region8: #{_lambda_.4} parent=0 // loop_exit
    _

</llo_original>
